<compile_context>
chip_gen: v5e
topology: v5e:2x2
jax: 0.10.0
libtpu: 0.0.40
codegen_flags: <defaults>
</compile_context>

<pallas_src>
import functools
from typing import NamedTuple

import jax
import jax.numpy as jnp
from jax import lax
from jax.experimental import pallas as pl
from jax.experimental.pallas import tpu as pltpu


_COMPUTE_DTYPE = jnp.bfloat16
_DEFAULT_PANEL_BYTES = 4 * 1024 * 1024   # per weight-panel VMEM buffer (bf16)
_MAX_UNROLL = 64                          # static unroll limit for the panel loop
_VMEM_LIMIT_BYTES = 48 * 1024 * 1024      # > worst-case ~25 MiB, < v7x 64 MiB physical
_LEAKY_SLOPE = 0.1


# ----------------------------------------------------------------------------
# Tiling helpers
# ----------------------------------------------------------------------------
class _LayerCfg(NamedTuple):
    k_pad: int
    n_pad: int
    tk: int
    tn: int
    nk: int
    nn: int
    act: str          # "relu" | "leaky_relu" | "none"


def _round_up(x, m):
    return ((x + m - 1) // m) * m


def _pick_tn(n_pad, budget_elems):
    for c in (2048, 1024, 512, 256, 128):
        if n_pad % c == 0 and c * 128 <= budget_elems:
            return c
    return 128


def _pick_tk(k_pad, tn, budget_elems):
    limit = max(128, budget_elems // tn)
    for c in (4096, 2048, 1024, 512, 256, 128):
        if c <= limit and k_pad % c == 0:
            return c
    return 128


# ----------------------------------------------------------------------------
# Kernel building blocks
# ----------------------------------------------------------------------------
def _when(pred, fn):
    """pl.when for traced predicates, plain Python `if` for static ones."""
    if isinstance(pred, bool):
        if pred:
            fn()
    else:
        pl.when(pred)(fn)


def _mk_writer(dst_ref, is_final):
    """Writer for one activated (Mp, tn) tile of a layer's output."""
    if is_final:
        def write(n_off, y):                      # dst is the (1, Mp, Np) out block
            dst_ref[0, :, pl.ds(n_off, y.shape[1])] = y.astype(dst_ref.dtype)
    else:
        def write(n_off, y):                      # dst is a (Mp, Np) VMEM scratch
            dst_ref[:, pl.ds(n_off, y.shape[1])] = y.astype(dst_ref.dtype)
    return write


def _emit_layer(cfg, base, in_ref, w_hbm, b_ref, wbuf, sem, acc, out_write, slope):
    """y = act(in @ W + b) for one layer, streaming W panels from HBM.

    Panels are ordered n-major / k-minor (panel p -> n = p // nk, k = p % nk).
    Panel 0 has already been started (primed at kernel entry).
    """
    npan = cfg.nk * cfg.nn

    def step(p):
        slot = p & 1
        # Wait for the panel we are about to consume.
        pltpu.make_async_copy(w_hbm.at[0], wbuf.at[slot], sem.at[slot]).wait()

        # Prefetch the next panel of this layer into the other slot.
        def _prefetch():
            nslot = (p + 1) & 1
            pltpu.make_async_copy(w_hbm.at[base + p + 1], wbuf.at[nslot],
                                  sem.at[nslot]).start()
        _when(p + 1 < npan, _prefetch)

        k = p % cfg.nk
        n = p // cfg.nk

        def _zero():
            acc[...] = jnp.zeros_like(acc)
        _when(k == 0, _zero)

        k_off = k * cfg.tk
        if not isinstance(k_off, int):
            k_off = pl.multiple_of(k_off, cfg.tk)
        # bf16 x bf16 -> f32 accumulate on the MXU; activation is VMEM-resident.
        acc[...] += jnp.dot(in_ref[:, pl.ds(k_off, cfg.tk)], wbuf[slot],
                            preferred_element_type=jnp.float32)

        def _epilogue():
            n_off = n * cfg.tn
            if not isinstance(n_off, int):
                n_off = pl.multiple_of(n_off, cfg.tn)
            y = acc[...] + b_ref[0, :, pl.ds(n_off, cfg.tn)]   # f32 bias add
            if cfg.act == "relu":
                y = jnp.maximum(y, 0.0)
            elif cfg.act == "leaky_relu":
                y = jnp.where(y >= 0.0, y, slope * y)
            out_write(n_off, y)
        _when(k == cfg.nk - 1, _epilogue)

    if npan <= _MAX_UNROLL:
        # Practically always: a handful of panels -> static unroll gives the
        # LLO scheduler full visibility and makes every offset a constant.
        for p in range(npan):
            step(p)
    else:
        def body(p, carry):
            step(p)
            return carry
        lax.fori_loop(0, npan, body, 0)


def _make_chain_kernel(cfgs, slope):
    """Fused MLP chain kernel (one grid step == one stacked block)."""
    num_layers = len(cfgs)

    def kernel(*refs):
        x_ref = refs[0]
        w_refs = [refs[1 + 2 * l] for l in range(num_layers)]
        b_refs = [refs[2 + 2 * l] for l in range(num_layers)]
        o_ref = refs[1 + 2 * num_layers]
        s0 = 2 + 2 * num_layers
        wbufs = [refs[s0 + 3 * l] for l in range(num_layers)]
        sems = [refs[s0 + 3 * l + 1] for l in range(num_layers)]
        accs = [refs[s0 + 3 * l + 2] for l in range(num_layers)]
        hbufs = [refs[s0 + 3 * num_layers + l] for l in range(num_layers - 1)]

        blk = pl.program_id(0)

        # Prime: launch the first weight panel of EVERY layer immediately so
        # the DMA engine never idles at layer boundaries.
        bases = []
        for l, cfg in enumerate(cfgs):
            npan = cfg.nk * cfg.nn
            base = blk * npan
            bases.append(base)
            pltpu.make_async_copy(w_refs[l].at[base], wbufs[l].at[0],
                                  sems[l].at[0]).start()

        # Layers run back-to-back; the activation never leaves VMEM.
        for l, cfg in enumerate(cfgs):
            in_ref = x_ref if l == 0 else hbufs[l - 1]
            is_final = (l == num_layers - 1)
            dst = o_ref if is_final else hbufs[l]
            _emit_layer(cfg, bases[l], in_ref, w_refs[l], b_refs[l],
                        wbufs[l], sems[l], accs[l],
                        _mk_writer(dst, is_final), slope)

    return kernel


# ----------------------------------------------------------------------------
# Fused MLP chain wrapper
# ----------------------------------------------------------------------------
def fused_mlp_chain(chain_arrays, cfgs, num_blocks, x_p, out_dtype,
                    slope=_LEAKY_SLOPE):
    """Run `num_blocks` independent L-layer MLPs on the shared input x_p.

    chain_arrays: per layer (w_panels (B*npan, tk, tn) bf16, bias (B, 1, Np) f32)
    x_p:          (Mp, K0p) bf16 padded input, resident in VMEM.
    Returns (num_blocks, Mp, N_last_p) in out_dtype.
    """
    m_p, k0_p = x_p.shape
    assert k0_p == cfgs[0].k_pad and m_p % 8 == 0
    num_layers = len(cfgs)

    inputs = [x_p]
    in_specs = [pl.BlockSpec((m_p, cfgs[0].k_pad), lambda b: (0, 0))]  # resident
    for l in range(num_layers):
        w_panels, bias = chain_arrays[l]
        cfg = cfgs[l]
        assert w_panels.shape == (num_blocks * cfg.nk * cfg.nn, cfg.tk, cfg.tn)
        assert bias.shape == (num_blocks, 1, cfg.n_pad)
        inputs.append(w_panels)
        in_specs.append(pl.BlockSpec(memory_space=pl.ANY))      # stream manually
        inputs.append(bias)
        in_specs.append(pl.BlockSpec((1, 1, cfg.n_pad), lambda b: (b, 0, 0)))

    scratch = []
    for cfg in cfgs:
        scratch.append(pltpu.VMEM((2, cfg.tk, cfg.tn), _COMPUTE_DTYPE))  # panels
        scratch.append(pltpu.SemaphoreType.DMA((2,)))
        scratch.append(pltpu.VMEM((m_p, cfg.tn), jnp.float32))           # f32 acc
    for cfg in cfgs[:-1]:
        scratch.append(pltpu.VMEM((m_p, cfg.n_pad), _COMPUTE_DTYPE))     # h (bf16)

    out_shape = jax.ShapeDtypeStruct((num_blocks, m_p, cfgs[-1].n_pad), out_dtype)
    out_spec = pl.BlockSpec((1, m_p, cfgs[-1].n_pad), lambda b: (b, 0, 0))

    return pl.pallas_call(
        _make_chain_kernel(cfgs, slope),
        out_shape=out_shape,
        grid_spec=pltpu.PrefetchScalarGridSpec(
            num_scalar_prefetch=0,
            grid=(num_blocks,),
            in_specs=in_specs,
            out_specs=out_spec,
            scratch_shapes=scratch,
        ),
        compiler_params=pltpu.CompilerParams(
            # Blocks are independent -> shard across TensorCores on v7x.
            dimension_semantics=("parallel",),
            vmem_limit_bytes=_VMEM_LIMIT_BYTES,
        ),
    )(*inputs)


# ----------------------------------------------------------------------------
# Parameter construction + one-time padding / panelization (off the hot path)
# ----------------------------------------------------------------------------
def _init_linear(key, in_size, out_size):
    kw, kb = jax.random.split(key)
    bound = 1.0 / jnp.sqrt(jnp.float32(in_size))
    w = jax.random.uniform(kw, (in_size, out_size), jnp.float32, -bound, bound)
    b = jax.random.uniform(kb, (out_size,), jnp.float32, -bound, bound)
    return w, b


def init_hyper_network(key, hyper_dims, in_size, initial_hidden, hyper_hidden):
    keys = jax.random.split(key, 2 + 3 * len(hyper_dims))
    params = {
        "initial": [
            _init_linear(keys[0], in_size, initial_hidden),
            _init_linear(keys[1], initial_hidden, initial_hidden),
        ],
        "blocks": [],
    }
    for i, dim in enumerate(hyper_dims):
        out_size = dim[0] * dim[1]
        k0, k1, k2 = keys[2 + 3 * i: 5 + 3 * i]
        params["blocks"].append([
            _init_linear(k0, initial_hidden, hyper_hidden),
            _init_linear(k1, hyper_hidden, hyper_hidden),
            _init_linear(k2, hyper_hidden, out_size),
        ])
    return params


def _prep_chain(per_block_layers, acts, panel_budget_bytes):
    """Pad, bf16-cast and re-tile the weights of a stack of identical chains.

    per_block_layers: list[B] of list[L] of (w (K, N) f32, b (N,) f32).
    Layer N dims may differ across blocks (padded to the common max).
    """
    num_layers = len(per_block_layers[0])
    itemsize = jnp.dtype(_COMPUTE_DTYPE).itemsize
    budget_elems = max(128 * 128, panel_budget_bytes // itemsize)

    cfgs, arrays = [], []
    for l in range(num_layers):
        k_dim = per_block_layers[0][l][0].shape[0]
        n_dim = max(blk[l][0].shape[1] for blk in per_block_layers)
        k_pad = _round_up(k_dim, 128)
        n_pad = _round_up(n_dim, 128)
        tn = _pick_tn(n_pad, budget_elems)
        tk = _pick_tk(k_pad, tn, budget_elems)
        nk, nn = k_pad // tk, n_pad // tn
        cfgs.append(_LayerCfg(k_pad, n_pad, tk, tn, nk, nn, acts[l]))

        w_panels, biases = [], []
        for blk in per_block_layers:
            w, b = blk[l]
            assert w.shape[0] == k_dim
            wp = jnp.zeros((k_pad, n_pad), _COMPUTE_DTYPE)
            wp = wp.at[:w.shape[0], :w.shape[1]].set(w.astype(_COMPUTE_DTYPE))
            # Re-tile into contiguous (tk, tn) panels, n-major / k-minor.
            wt = (wp.reshape(nk, tk, nn, tn)
                    .transpose(2, 0, 1, 3)
                    .reshape(nn * nk, tk, tn))
            w_panels.append(wt)
            bp = jnp.zeros((1, n_pad), jnp.float32).at[0, :b.shape[0]].set(b)
            biases.append(bp)
        arrays.append((jnp.concatenate(w_panels, axis=0),   # (B*npan, tk, tn)
                       jnp.stack(biases, axis=0)))          # (B, 1, n_pad)
    return cfgs, arrays


def prepare_hyper_params(params, panel_budget_bytes=_DEFAULT_PANEL_BYTES):
    init_cfgs, init_arrays = _prep_chain([params["initial"]],
                                         ("relu", "relu"),
                                         panel_budget_bytes)
    blk_cfgs, blk_arrays = _prep_chain(params["blocks"],
                                       ("relu", "relu", "leaky_relu"),
                                       panel_budget_bytes)
    arrays = {"initial": init_arrays, "blocks": blk_arrays}
    meta = {"initial": (1, init_cfgs),
            "blocks": (len(params["blocks"]), blk_cfgs)}
    return arrays, meta


# ----------------------------------------------------------------------------
# Forward pass (mirrors HyperNetwork.forward / HyperBlock.forward)
# ----------------------------------------------------------------------------
def hyper_network_forward(arrays, x, *, meta, hyper_dims):
    m_dim, k_dim = x.shape
    m_p = _round_up(m_dim, 8)
    nb_init, init_cfgs = meta["initial"]
    nb_blk, blk_cfgs = meta["blocks"]

    # Single pad + bf16 cast of the input; everything downstream stays padded bf16.
    xp = jnp.zeros((m_p, init_cfgs[0].k_pad), _COMPUTE_DTYPE)
    xp = xp.at[:m_dim, :k_dim].set(x.astype(_COMPUTE_DTYPE))

    # initial_block: Linear -> ReLU -> Linear -> ReLU, fused in one call.
    h = fused_mlp_chain(arrays["initial"], init_cfgs, nb_init, xp,
                        out_dtype=_COMPUTE_DTYPE)[0]        # (Mp, hid_pad) bf16
    assert h.shape[1] == blk_cfgs[0].k_pad

    # All HyperBlocks fused in one call, grid ("parallel") over blocks.
    y = fused_mlp_chain(arrays["blocks"], blk_cfgs, nb_blk, h,
                        out_dtype=jnp.float32)              # (B, Mp, out_pad)

    results = []
    for b, dim in enumerate(hyper_dims):
        out_size = dim[0] * dim[1]
        results.append(y[b, :m_dim, :out_size].reshape(-1, dim[0], dim[1]))
    return results


# ----------------------------------------------------------------------------
# Pure-JAX reference (emulates the kernel's bf16-operand / f32-accumulate dots)
# ----------------------------------------------------------------------------
def _ref_forward(params, x, hyper_dims):
    def lin(a, w, b):
        a16 = a.astype(_COMPUTE_DTYPE).astype(jnp.float32)
        w16 = w.astype(_COMPUTE_DTYPE).astype(jnp.float32)
        return jnp.dot(a16, w16, precision=jax.lax.Precision.HIGHEST) + b

    (w0, b0), (w1, b1) = params["initial"]
    h = jax.nn.relu(lin(x, w0, b0))
    h = jax.nn.relu(lin(h, w1, b1))
    outs = []
    for dim, block in zip(hyper_dims, params["blocks"]):
        (bw0, bb0), (bw1, bb1), (bw2, bb2) = block
        y = jax.nn.relu(lin(h, bw0, bb0))
        y = jax.nn.relu(lin(y, bw1, bb1))
        y = lin(y, bw2, bb2)
        y = jnp.where(y >= 0.0, y, _LEAKY_SLOPE * y)
        outs.append(y.reshape(-1, dim[0], dim[1]))
    return outs


if __name__ == "__main__":
    # Small shapes consistent with the module: batch=2, in_size=64,
    # initial hidden=128 (stand-in for 1024), hyper hidden=512 (stand-in for 4096).
    batch = 2
    in_size = 64
    initial_hidden = 128
    hyper_hidden = 512
    hyper_dims = ((4, 8), (3, 5))

    key = jax.random.PRNGKey(0)
    kx, kp = jax.random.split(key)
    x = jax.random.normal(kx, (batch, in_size), jnp.float32)

    params = init_hyper_network(kp, hyper_dims, in_size, initial_hidden,
                                hyper_hidden)
    # Tiny panel budget at test scale so the multi-panel double-buffered DMA
    # streaming path (k-accumulation + multi-n epilogues) is actually exercised;
    # production uses the 4 MiB default.
    arrays, meta = prepare_hyper_params(params, panel_budget_bytes=64 * 1024)

    fwd = jax.jit(functools.partial(hyper_network_forward,
                                    meta=meta, hyper_dims=hyper_dims))
    results = jax.block_until_ready(fwd(arrays, x))

    # sanity: shapes + numerics vs pure-JAX reference (bf16 matmuls emulated)
    refs = _ref_forward(params, x, hyper_dims)
    for out, ref, dim in zip(results, refs, hyper_dims):
        assert out.shape == (batch, dim[0], dim[1]), out.shape
        assert jnp.allclose(out, ref, atol=1e-2, rtol=1e-2), (
            float(jnp.max(jnp.abs(out - ref))))

    print("KERNEL_OK")
</pallas_src>

<mosaic_0001>
module attributes {stable_mosaic.version = 11 : i64} {
  func.func @kernel(%arg0: i32, %arg1: memref<8x128xbf16, #tpu.memory_space<vmem>>, %arg2: memref<1x128x128xbf16, #tpu.memory_space<any>>, %arg3: memref<1x1x128xf32, #tpu.memory_space<vmem>>, %arg4: memref<1x128x128xbf16, #tpu.memory_space<any>>, %arg5: memref<1x1x128xf32, #tpu.memory_space<vmem>>, %arg6: memref<1x8x128xbf16, #tpu.memory_space<vmem>>, %arg7: memref<2x128x128xbf16, #tpu.memory_space<vmem>>, %arg8: memref<2x!tpu.dma_semaphore, #tpu.memory_space<semaphore_mem>>, %arg9: memref<8x128xf32, #tpu.memory_space<vmem>>, %arg10: memref<2x128x128xbf16, #tpu.memory_space<vmem>>, %arg11: memref<2x!tpu.dma_semaphore, #tpu.memory_space<semaphore_mem>>, %arg12: memref<8x128xf32, #tpu.memory_space<vmem>>, %arg13: memref<8x128xbf16, #tpu.memory_space<vmem>>) attributes {dimension_semantics = [#tpu.dimension_semantics<parallel>], iteration_bounds = array<i64: 1>, scalar_prefetch = 0 : i64, scratch_operands = 7 : i64, tpu.core_type = #tpu.core_type<tc>, window_params = [{pipeline_mode = #tpu.pipeline_mode<synchronous>, transform_indices = @transform_0, window_bounds = array<i64: 8, 128>}, {}, {transform_indices = @transform_2, window_bounds = array<i64: 1, 1, 128>}, {}, {transform_indices = @transform_4, window_bounds = array<i64: 1, 1, 128>}, {transform_indices = @transform_5, window_bounds = array<i64: 1, 8, 128>}]} {
    %c1_i32 = arith.constant 1 : i32
    %0 = arith.muli %arg0, %c1_i32 : i32
    %c0_i32 = arith.constant 0 : i32
    %c0_i32_0 = arith.constant 0 : i32
    %c0_i32_1 = arith.constant 0 : i32
    %c0_i32_2 = arith.constant 0 : i32
    %1 = tpu.memref_slice %arg2[%0, %c0_i32_1, %c0_i32_2] : memref<1x128x128xbf16, #tpu.memory_space<any>> -> memref<1x128x128xbf16, #tpu.memory_space<any>>
    %2 = tpu.memref_squeeze %1 : memref<1x128x128xbf16, #tpu.memory_space<any>> -> memref<128x128xbf16, #tpu.memory_space<any>>
    %c0_i32_3 = arith.constant 0 : i32
    %c0_i32_4 = arith.constant 0 : i32
    %3 = tpu.memref_slice %arg7[%c0_i32, %c0_i32_3, %c0_i32_4] : memref<2x128x128xbf16, #tpu.memory_space<vmem>> -> memref<1x128x128xbf16, #tpu.memory_space<vmem>>
    %4 = tpu.memref_squeeze %3 : memref<1x128x128xbf16, #tpu.memory_space<vmem>> -> memref<128x128xbf16, #tpu.memory_space<vmem>>
    %5 = tpu.memref_slice %arg8[%c0_i32_0] : memref<2x!tpu.dma_semaphore, #tpu.memory_space<semaphore_mem>> -> memref<1x!tpu.dma_semaphore, #tpu.memory_space<semaphore_mem>>
    %6 = tpu.memref_squeeze %5 : memref<1x!tpu.dma_semaphore, #tpu.memory_space<semaphore_mem>> -> memref<!tpu.dma_semaphore, #tpu.memory_space<semaphore_mem>>
    tpu.enqueue_dma source(%2 : memref<128x128xbf16, #tpu.memory_space<any>>) target(%4 : memref<128x128xbf16, #tpu.memory_space<vmem>>) target_semaphore(%6 : memref<!tpu.dma_semaphore, #tpu.memory_space<semaphore_mem>>)
    %c1_i32_5 = arith.constant 1 : i32
    %7 = arith.muli %arg0, %c1_i32_5 : i32
    %c0_i32_6 = arith.constant 0 : i32
    %c0_i32_7 = arith.constant 0 : i32
    %c0_i32_8 = arith.constant 0 : i32
    %c0_i32_9 = arith.constant 0 : i32
    %8 = tpu.memref_slice %arg4[%7, %c0_i32_8, %c0_i32_9] : memref<1x128x128xbf16, #tpu.memory_space<any>> -> memref<1x128x128xbf16, #tpu.memory_space<any>>
    %9 = tpu.memref_squeeze %8 : memref<1x128x128xbf16, #tpu.memory_space<any>> -> memref<128x128xbf16, #tpu.memory_space<any>>
    %c0_i32_10 = arith.constant 0 : i32
    %c0_i32_11 = arith.constant 0 : i32
    %10 = tpu.memref_slice %arg10[%c0_i32_6, %c0_i32_10, %c0_i32_11] : memref<2x128x128xbf16, #tpu.memory_space<vmem>> -> memref<1x128x128xbf16, #tpu.memory_space<vmem>>
    %11 = tpu.memref_squeeze %10 : memref<1x128x128xbf16, #tpu.memory_space<vmem>> -> memref<128x128xbf16, #tpu.memory_space<vmem>>
    %12 = tpu.memref_slice %arg11[%c0_i32_7] : memref<2x!tpu.dma_semaphore, #tpu.memory_space<semaphore_mem>> -> memref<1x!tpu.dma_semaphore, #tpu.memory_space<semaphore_mem>>
    %13 = tpu.memref_squeeze %12 : memref<1x!tpu.dma_semaphore, #tpu.memory_space<semaphore_mem>> -> memref<!tpu.dma_semaphore, #tpu.memory_space<semaphore_mem>>
    tpu.enqueue_dma source(%9 : memref<128x128xbf16, #tpu.memory_space<any>>) target(%11 : memref<128x128xbf16, #tpu.memory_space<vmem>>) target_semaphore(%13 : memref<!tpu.dma_semaphore, #tpu.memory_space<semaphore_mem>>)
    %c0_i32_12 = arith.constant 0 : i32
    %c0_i32_13 = arith.constant 0 : i32
    %c0_i32_14 = arith.constant 0 : i32
    %c0_i32_15 = arith.constant 0 : i32
    %c0_i32_16 = arith.constant 0 : i32
    %14 = tpu.memref_slice %arg2[%c0_i32_12, %c0_i32_15, %c0_i32_16] : memref<1x128x128xbf16, #tpu.memory_space<any>> -> memref<1x128x128xbf16, #tpu.memory_space<any>>
    %15 = tpu.memref_squeeze %14 : memref<1x128x128xbf16, #tpu.memory_space<any>> -> memref<128x128xbf16, #tpu.memory_space<any>>
    %c0_i32_17 = arith.constant 0 : i32
    %c0_i32_18 = arith.constant 0 : i32
    %16 = tpu.memref_slice %arg7[%c0_i32_13, %c0_i32_17, %c0_i32_18] : memref<2x128x128xbf16, #tpu.memory_space<vmem>> -> memref<1x128x128xbf16, #tpu.memory_space<vmem>>
    %17 = tpu.memref_squeeze %16 : memref<1x128x128xbf16, #tpu.memory_space<vmem>> -> memref<128x128xbf16, #tpu.memory_space<vmem>>
    %18 = tpu.memref_slice %arg8[%c0_i32_14] : memref<2x!tpu.dma_semaphore, #tpu.memory_space<semaphore_mem>> -> memref<1x!tpu.dma_semaphore, #tpu.memory_space<semaphore_mem>>
    %19 = tpu.memref_squeeze %18 : memref<1x!tpu.dma_semaphore, #tpu.memory_space<semaphore_mem>> -> memref<!tpu.dma_semaphore, #tpu.memory_space<semaphore_mem>>
    tpu.wait_dma2 semaphore(%19 : memref<!tpu.dma_semaphore, #tpu.memory_space<semaphore_mem>>) src(%15 : memref<128x128xbf16, #tpu.memory_space<any>>) dst(%17 : memref<128x128xbf16, #tpu.memory_space<vmem>>)
    %cst = arith.constant 0.000000e+00 : f32
    %20 = vector.broadcast %cst : f32 to vector<8x128xf32>
    %c0 = arith.constant 0 : index
    %c0_19 = arith.constant 0 : index
    %21 = vector.load %arg9[%c0, %c0_19] : memref<8x128xf32, #tpu.memory_space<vmem>>, vector<8x128xf32>
    tpu.vector_store %arg9[%c0, %c0_19], %20 {strides = array<i32>} : memref<8x128xf32, #tpu.memory_space<vmem>>, vector<8x128xf32>,
    %c0_20 = arith.constant 0 : index
    %c0_21 = arith.constant 0 : index
    %22 = vector.load %arg9[%c0_20, %c0_21] : memref<8x128xf32, #tpu.memory_space<vmem>>, vector<8x128xf32>
    %c0_22 = arith.constant 0 : index
    %c0_23 = arith.constant 0 : index
    %23 = vector.load %arg1[%c0_22, %c0_23] : memref<8x128xbf16, #tpu.memory_space<vmem>>, vector<8x128xbf16>
    %c0_24 = arith.constant 0 : index
    %c0_25 = arith.constant 0 : index
    %c0_26 = arith.constant 0 : index
    %24 = vector.load %arg7[%c0_24, %c0_25, %c0_26] : memref<2x128x128xbf16, #tpu.memory_space<vmem>>, vector<1x128x128xbf16>
    %25 = vector.shape_cast %24 : vector<1x128x128xbf16> to vector<128x128xbf16>
    %cst_27 = arith.constant dense<0.000000e+00> : vector<8x128xf32>
    %26 = tpu.matmul %23, %25, %cst_27 {dimension_numbers = #tpu.dot_dimension_numbers<[1], [0], [0], [1], [0, 0, 1, 1], [], []>} : vector<8x128xbf16>, vector<128x128xbf16>, vector<8x128xf32> -> vector<8x128xf32>
    %27 = arith.addf %22, %26 : vector<8x128xf32>
    %c0_28 = arith.constant 0 : index
    %c0_29 = arith.constant 0 : index
    %28 = vector.load %arg9[%c0_28, %c0_29] : memref<8x128xf32, #tpu.memory_space<vmem>>, vector<8x128xf32>
    tpu.vector_store %arg9[%c0_28, %c0_29], %27 {strides = array<i32>} : memref<8x128xf32, #tpu.memory_space<vmem>>, vector<8x128xf32>,
    %c0_30 = arith.constant 0 : index
    %c0_31 = arith.constant 0 : index
    %29 = vector.load %arg9[%c0_30, %c0_31] : memref<8x128xf32, #tpu.memory_space<vmem>>, vector<8x128xf32>
    %c0_32 = arith.constant 0 : index
    %c0_33 = arith.constant 0 : index
    %c0_34 = arith.constant 0 : index
    %30 = vector.load %arg3[%c0_32, %c0_33, %c0_34] : memref<1x1x128xf32, #tpu.memory_space<vmem>>, vector<1x1x128xf32>
    %31 = vector.shape_cast %30 : vector<1x1x128xf32> to vector<1x128xf32>
    %32 = vector.broadcast %31 : vector<1x128xf32> to vector<8x128xf32>
    %33 = arith.addf %29, %32 : vector<8x128xf32>
    %cst_35 = arith.constant 0.000000e+00 : f32
    %34 = vector.broadcast %cst_35 : f32 to vector<8x128xf32>
    %35 = arith.maximumf %33, %34 : vector<8x128xf32>
    %36 = arith.truncf %35 : vector<8x128xf32> to vector<8x128xbf16>
    %c0_36 = arith.constant 0 : index
    %c0_37 = arith.constant 0 : index
    %37 = vector.load %arg13[%c0_36, %c0_37] : memref<8x128xbf16, #tpu.memory_space<vmem>>, vector<8x128xbf16>
    tpu.vector_store %arg13[%c0_36, %c0_37], %36 {strides = array<i32>} : memref<8x128xbf16, #tpu.memory_space<vmem>>, vector<8x128xbf16>,
    %c0_i32_38 = arith.constant 0 : i32
    %c0_i32_39 = arith.constant 0 : i32
    %c0_i32_40 = arith.constant 0 : i32
    %c0_i32_41 = arith.constant 0 : i32
    %c0_i32_42 = arith.constant 0 : i32
    %38 = tpu.memref_slice %arg4[%c0_i32_38, %c0_i32_41, %c0_i32_42] : memref<1x128x128xbf16, #tpu.memory_space<any>> -> memref<1x128x128xbf16, #tpu.memory_space<any>>
    %39 = tpu.memref_squeeze %38 : memref<1x128x128xbf16, #tpu.memory_space<any>> -> memref<128x128xbf16, #tpu.memory_space<any>>
    %c0_i32_43 = arith.constant 0 : i32
    %c0_i32_44 = arith.constant 0 : i32
    %40 = tpu.memref_slice %arg10[%c0_i32_39, %c0_i32_43, %c0_i32_44] : memref<2x128x128xbf16, #tpu.memory_space<vmem>> -> memref<1x128x128xbf16, #tpu.memory_space<vmem>>
    %41 = tpu.memref_squeeze %40 : memref<1x128x128xbf16, #tpu.memory_space<vmem>> -> memref<128x128xbf16, #tpu.memory_space<vmem>>
    %42 = tpu.memref_slice %arg11[%c0_i32_40] : memref<2x!tpu.dma_semaphore, #tpu.memory_space<semaphore_mem>> -> memref<1x!tpu.dma_semaphore, #tpu.memory_space<semaphore_mem>>
    %43 = tpu.memref_squeeze %42 : memref<1x!tpu.dma_semaphore, #tpu.memory_space<semaphore_mem>> -> memref<!tpu.dma_semaphore, #tpu.memory_space<semaphore_mem>>
    tpu.wait_dma2 semaphore(%43 : memref<!tpu.dma_semaphore, #tpu.memory_space<semaphore_mem>>) src(%39 : memref<128x128xbf16, #tpu.memory_space<any>>) dst(%41 : memref<128x128xbf16, #tpu.memory_space<vmem>>)
    %cst_45 = arith.constant 0.000000e+00 : f32
    %44 = vector.broadcast %cst_45 : f32 to vector<8x128xf32>
    %c0_46 = arith.constant 0 : index
    %c0_47 = arith.constant 0 : index
    %45 = vector.load %arg12[%c0_46, %c0_47] : memref<8x128xf32, #tpu.memory_space<vmem>>, vector<8x128xf32>
    tpu.vector_store %arg12[%c0_46, %c0_47], %44 {strides = array<i32>} : memref<8x128xf32, #tpu.memory_space<vmem>>, vector<8x128xf32>,
    %c0_48 = arith.constant 0 : index
    %c0_49 = arith.constant 0 : index
    %46 = vector.load %arg12[%c0_48, %c0_49] : memref<8x128xf32, #tpu.memory_space<vmem>>, vector<8x128xf32>
    %c0_50 = arith.constant 0 : index
    %c0_51 = arith.constant 0 : index
    %47 = vector.load %arg13[%c0_50, %c0_51] : memref<8x128xbf16, #tpu.memory_space<vmem>>, vector<8x128xbf16>
    %c0_52 = arith.constant 0 : index
    %c0_53 = arith.constant 0 : index
    %c0_54 = arith.constant 0 : index
    %48 = vector.load %arg10[%c0_52, %c0_53, %c0_54] : memref<2x128x128xbf16, #tpu.memory_space<vmem>>, vector<1x128x128xbf16>
    %49 = vector.shape_cast %48 : vector<1x128x128xbf16> to vector<128x128xbf16>
    %cst_55 = arith.constant dense<0.000000e+00> : vector<8x128xf32>
    %50 = tpu.matmul %47, %49, %cst_55 {dimension_numbers = #tpu.dot_dimension_numbers<[1], [0], [0], [1], [0, 0, 1, 1], [], []>} : vector<8x128xbf16>, vector<128x128xbf16>, vector<8x128xf32> -> vector<8x128xf32>
    %51 = arith.addf %46, %50 : vector<8x128xf32>
    %c0_56 = arith.constant 0 : index
    %c0_57 = arith.constant 0 : index
    %52 = vector.load %arg12[%c0_56, %c0_57] : memref<8x128xf32, #tpu.memory_space<vmem>>, vector<8x128xf32>
    tpu.vector_store %arg12[%c0_56, %c0_57], %51 {strides = array<i32>} : memref<8x128xf32, #tpu.memory_space<vmem>>, vector<8x128xf32>,
    %c0_58 = arith.constant 0 : index
    %c0_59 = arith.constant 0 : index
    %53 = vector.load %arg12[%c0_58, %c0_59] : memref<8x128xf32, #tpu.memory_space<vmem>>, vector<8x128xf32>
    %c0_60 = arith.constant 0 : index
    %c0_61 = arith.constant 0 : index
    %c0_62 = arith.constant 0 : index
    %54 = vector.load %arg5[%c0_60, %c0_61, %c0_62] : memref<1x1x128xf32, #tpu.memory_space<vmem>>, vector<1x1x128xf32>
    %55 = vector.shape_cast %54 : vector<1x1x128xf32> to vector<1x128xf32>
    %56 = vector.broadcast %55 : vector<1x128xf32> to vector<8x128xf32>
    %57 = arith.addf %53, %56 : vector<8x128xf32>
    %cst_63 = arith.constant 0.000000e+00 : f32
    %58 = vector.broadcast %cst_63 : f32 to vector<8x128xf32>
    %59 = arith.maximumf %57, %58 : vector<8x128xf32>
    %60 = arith.truncf %59 : vector<8x128xf32> to vector<8x128xbf16>
    %c0_64 = arith.constant 0 : index
    %c0_65 = arith.constant 0 : index
    %c0_66 = arith.constant 0 : index
    %61 = vector.load %arg6[%c0_64, %c0_65, %c0_66] : memref<1x8x128xbf16, #tpu.memory_space<vmem>>, vector<1x8x128xbf16>
    %62 = vector.shape_cast %61 : vector<1x8x128xbf16> to vector<8x128xbf16>
    %63 = vector.shape_cast %60 : vector<8x128xbf16> to vector<1x8x128xbf16>
    tpu.vector_store %arg6[%c0_64, %c0_65, %c0_66], %63 {strides = array<i32>} : memref<1x8x128xbf16, #tpu.memory_space<vmem>>, vector<1x8x128xbf16>,
    return
  }
  func.func @transform_0(%arg0: i32) -> (i32, i32) {
    %c0_i32 = arith.constant 0 : i32
    %c0_i32_0 = arith.constant 0 : i32
    %c0_i32_1 = arith.constant 0 : i32
    return %c0_i32, %c0_i32_0 : i32, i32
  }
  func.func @transform_2(%arg0: i32) -> (i32, i32, i32) {
    %c0_i32 = arith.constant 0 : i32
    %c0_i32_0 = arith.constant 0 : i32
    %c0_i32_1 = arith.constant 0 : i32
    return %arg0, %c0_i32, %c0_i32_0 : i32, i32, i32
  }
  func.func @transform_4(%arg0: i32) -> (i32, i32, i32) {
    %c0_i32 = arith.constant 0 : i32
    %c0_i32_0 = arith.constant 0 : i32
    %c0_i32_1 = arith.constant 0 : i32
    return %arg0, %c0_i32, %c0_i32_0 : i32, i32, i32
  }
  func.func @transform_5(%arg0: i32) -> (i32, i32, i32) {
    %c0_i32 = arith.constant 0 : i32
    %c0_i32_0 = arith.constant 0 : i32
    %c0_i32_1 = arith.constant 0 : i32
    return %arg0, %c0_i32, %c0_i32_0 : i32, i32, i32
  }
}

module attributes {stable_mosaic.version = 11 : i64} {
  func.func @kernel(%arg0: i32, %arg1: memref<8x128xbf16, #tpu.memory_space<vmem>>, %arg2: memref<4x128x256xbf16, #tpu.memory_space<any>>, %arg3: memref<1x1x512xf32, #tpu.memory_space<vmem>>, %arg4: memref<16x128x256xbf16, #tpu.memory_space<any>>, %arg5: memref<1x1x512xf32, #tpu.memory_space<vmem>>, %arg6: memref<4x256x128xbf16, #tpu.memory_space<any>>, %arg7: memref<1x1x128xf32, #tpu.memory_space<vmem>>, %arg8: memref<1x8x128xf32, #tpu.memory_space<vmem>>, %arg9: memref<2x128x256xbf16, #tpu.memory_space<vmem>>, %arg10: memref<2x!tpu.dma_semaphore, #tpu.memory_space<semaphore_mem>>, %arg11: memref<8x256xf32, #tpu.memory_space<vmem>>, %arg12: memref<2x128x256xbf16, #tpu.memory_space<vmem>>, %arg13: memref<2x!tpu.dma_semaphore, #tpu.memory_space<semaphore_mem>>, %arg14: memref<8x256xf32, #tpu.memory_space<vmem>>, %arg15: memref<2x256x128xbf16, #tpu.memory_space<vmem>>, %arg16: memref<2x!tpu.dma_semaphore, #tpu.memory_space<semaphore_mem>>, %arg17: memref<8x128xf32, #tpu.memory_space<vmem>>, %arg18: memref<8x512xbf16, #tpu.memory_space<vmem>>, %arg19: memref<8x512xbf16, #tpu.memory_space<vmem>>) attributes {dimension_semantics = [#tpu.dimension_semantics<parallel>], iteration_bounds = array<i64: 2>, scalar_prefetch = 0 : i64, scratch_operands = 11 : i64, tpu.core_type = #tpu.core_type<tc>, window_params = [{pipeline_mode = #tpu.pipeline_mode<synchronous>, transform_indices = @transform_0, window_bounds = array<i64: 8, 128>}, {}, {transform_indices = @transform_2, window_bounds = array<i64: 1, 1, 512>}, {}, {transform_indices = @transform_4, window_bounds = array<i64: 1, 1, 512>}, {}, {transform_indices = @transform_6, window_bounds = array<i64: 1, 1, 128>}, {transform_indices = @transform_7, window_bounds = array<i64: 1, 8, 128>}]} {
    %c2_i32 = arith.constant 2 : i32
    %0 = arith.muli %arg0, %c2_i32 : i32
    %c0_i32 = arith.constant 0 : i32
    %c0_i32_0 = arith.constant 0 : i32
    %c0_i32_1 = arith.constant 0 : i32
    %c0_i32_2 = arith.constant 0 : i32
    %1 = tpu.memref_slice %arg2[%0, %c0_i32_1, %c0_i32_2] : memref<4x128x256xbf16, #tpu.memory_space<any>> -> memref<1x128x256xbf16, #tpu.memory_space<any>>
    %2 = tpu.memref_squeeze %1 : memref<1x128x256xbf16, #tpu.memory_space<any>> -> memref<128x256xbf16, #tpu.memory_space<any>>
    %c0_i32_3 = arith.constant 0 : i32
    %c0_i32_4 = arith.constant 0 : i32
    %3 = tpu.memref_slice %arg9[%c0_i32, %c0_i32_3, %c0_i32_4] : memref<2x128x256xbf16, #tpu.memory_space<vmem>> -> memref<1x128x256xbf16, #tpu.memory_space<vmem>>
    %4 = tpu.memref_squeeze %3 : memref<1x128x256xbf16, #tpu.memory_space<vmem>> -> memref<128x256xbf16, #tpu.memory_space<vmem>>
    %5 = tpu.memref_slice %arg10[%c0_i32_0] : memref<2x!tpu.dma_semaphore, #tpu.memory_space<semaphore_mem>> -> memref<1x!tpu.dma_semaphore, #tpu.memory_space<semaphore_mem>>
    %6 = tpu.memref_squeeze %5 : memref<1x!tpu.dma_semaphore, #tpu.memory_space<semaphore_mem>> -> memref<!tpu.dma_semaphore, #tpu.memory_space<semaphore_mem>>
    tpu.enqueue_dma source(%2 : memref<128x256xbf16, #tpu.memory_space<any>>) target(%4 : memref<128x256xbf16, #tpu.memory_space<vmem>>) target_semaphore(%6 : memref<!tpu.dma_semaphore, #tpu.memory_space<semaphore_mem>>)
    %c8_i32 = arith.constant 8 : i32
    %7 = arith.muli %arg0, %c8_i32 : i32
    %c0_i32_5 = arith.constant 0 : i32
    %c0_i32_6 = arith.constant 0 : i32
    %c0_i32_7 = arith.constant 0 : i32
    %c0_i32_8 = arith.constant 0 : i32
    %8 = tpu.memref_slice %arg4[%7, %c0_i32_7, %c0_i32_8] : memref<16x128x256xbf16, #tpu.memory_space<any>> -> memref<1x128x256xbf16, #tpu.memory_space<any>>
    %9 = tpu.memref_squeeze %8 : memref<1x128x256xbf16, #tpu.memory_space<any>> -> memref<128x256xbf16, #tpu.memory_space<any>>
    %c0_i32_9 = arith.constant 0 : i32
    %c0_i32_10 = arith.constant 0 : i32
    %10 = tpu.memref_slice %arg12[%c0_i32_5, %c0_i32_9, %c0_i32_10] : memref<2x128x256xbf16, #tpu.memory_space<vmem>> -> memref<1x128x256xbf16, #tpu.memory_space<vmem>>
    %11 = tpu.memref_squeeze %10 : memref<1x128x256xbf16, #tpu.memory_space<vmem>> -> memref<128x256xbf16, #tpu.memory_space<vmem>>
    %12 = tpu.memref_slice %arg13[%c0_i32_6] : memref<2x!tpu.dma_semaphore, #tpu.memory_space<semaphore_mem>> -> memref<1x!tpu.dma_semaphore, #tpu.memory_space<semaphore_mem>>
    %13 = tpu.memref_squeeze %12 : memref<1x!tpu.dma_semaphore, #tpu.memory_space<semaphore_mem>> -> memref<!tpu.dma_semaphore, #tpu.memory_space<semaphore_mem>>
    tpu.enqueue_dma source(%9 : memref<128x256xbf16, #tpu.memory_space<any>>) target(%11 : memref<128x256xbf16, #tpu.memory_space<vmem>>) target_semaphore(%13 : memref<!tpu.dma_semaphore, #tpu.memory_space<semaphore_mem>>)
    %c2_i32_11 = arith.constant 2 : i32
    %14 = arith.muli %arg0, %c2_i32_11 : i32
    %c0_i32_12 = arith.constant 0 : i32
    %c0_i32_13 = arith.constant 0 : i32
    %c0_i32_14 = arith.constant 0 : i32
    %c0_i32_15 = arith.constant 0 : i32
    %15 = tpu.memref_slice %arg6[%14, %c0_i32_14, %c0_i32_15] : memref<4x256x128xbf16, #tpu.memory_space<any>> -> memref<1x256x128xbf16, #tpu.memory_space<any>>
    %16 = tpu.memref_squeeze %15 : memref<1x256x128xbf16, #tpu.memory_space<any>> -> memref<256x128xbf16, #tpu.memory_space<any>>
    %c0_i32_16 = arith.constant 0 : i32
    %c0_i32_17 = arith.constant 0 : i32
    %17 = tpu.memref_slice %arg15[%c0_i32_12, %c0_i32_16, %c0_i32_17] : memref<2x256x128xbf16, #tpu.memory_space<vmem>> -> memref<1x256x128xbf16, #tpu.memory_space<vmem>>
    %18 = tpu.memref_squeeze %17 : memref<1x256x128xbf16, #tpu.memory_space<vmem>> -> memref<256x128xbf16, #tpu.memory_space<vmem>>
    %19 = tpu.memref_slice %arg16[%c0_i32_13] : memref<2x!tpu.dma_semaphore, #tpu.memory_space<semaphore_mem>> -> memref<1x!tpu.dma_semaphore, #tpu.memory_space<semaphore_mem>>
    %20 = tpu.memref_squeeze %19 : memref<1x!tpu.dma_semaphore, #tpu.memory_space<semaphore_mem>> -> memref<!tpu.dma_semaphore, #tpu.memory_space<semaphore_mem>>
    tpu.enqueue_dma source(%16 : memref<256x128xbf16, #tpu.memory_space<any>>) target(%18 : memref<256x128xbf16, #tpu.memory_space<vmem>>) target_semaphore(%20 : memref<!tpu.dma_semaphore, #tpu.memory_space<semaphore_mem>>)
    %c0_i32_18 = arith.constant 0 : i32
    %c0_i32_19 = arith.constant 0 : i32
    %c0_i32_20 = arith.constant 0 : i32
    %c0_i32_21 = arith.constant 0 : i32
    %c0_i32_22 = arith.constant 0 : i32
    %21 = tpu.memref_slice %arg2[%c0_i32_18, %c0_i32_21, %c0_i32_22] : memref<4x128x256xbf16, #tpu.memory_space<any>> -> memref<1x128x256xbf16, #tpu.memory_space<any>>
    %22 = tpu.memref_squeeze %21 : memref<1x128x256xbf16, #tpu.memory_space<any>> -> memref<128x256xbf16, #tpu.memory_space<any>>
    %c0_i32_23 = arith.constant 0 : i32
    %c0_i32_24 = arith.constant 0 : i32
    %23 = tpu.memref_slice %arg9[%c0_i32_19, %c0_i32_23, %c0_i32_24] : memref<2x128x256xbf16, #tpu.memory_space<vmem>> -> memref<1x128x256xbf16, #tpu.memory_space<vmem>>
    %24 = tpu.memref_squeeze %23 : memref<1x128x256xbf16, #tpu.memory_space<vmem>> -> memref<128x256xbf16, #tpu.memory_space<vmem>>
    %25 = tpu.memref_slice %arg10[%c0_i32_20] : memref<2x!tpu.dma_semaphore, #tpu.memory_space<semaphore_mem>> -> memref<1x!tpu.dma_semaphore, #tpu.memory_space<semaphore_mem>>
    %26 = tpu.memref_squeeze %25 : memref<1x!tpu.dma_semaphore, #tpu.memory_space<semaphore_mem>> -> memref<!tpu.dma_semaphore, #tpu.memory_space<semaphore_mem>>
    tpu.wait_dma2 semaphore(%26 : memref<!tpu.dma_semaphore, #tpu.memory_space<semaphore_mem>>) src(%22 : memref<128x256xbf16, #tpu.memory_space<any>>) dst(%24 : memref<128x256xbf16, #tpu.memory_space<vmem>>)
    %c0_i32_25 = arith.constant 0 : i32
    %27 = arith.addi %0, %c0_i32_25 : i32
    %c1_i32 = arith.constant 1 : i32
    %28 = arith.addi %27, %c1_i32 : i32
    %c1_i32_26 = arith.constant 1 : i32
    %c1_i32_27 = arith.constant 1 : i32
    %c0_i32_28 = arith.constant 0 : i32
    %c0_i32_29 = arith.constant 0 : i32
    %29 = tpu.memref_slice %arg2[%28, %c0_i32_28, %c0_i32_29] : memref<4x128x256xbf16, #tpu.memory_space<any>> -> memref<1x128x256xbf16, #tpu.memory_space<any>>
    %30 = tpu.memref_squeeze %29 : memref<1x128x256xbf16, #tpu.memory_space<any>> -> memref<128x256xbf16, #tpu.memory_space<any>>
    %c0_i32_30 = arith.constant 0 : i32
    %c0_i32_31 = arith.constant 0 : i32
    %31 = tpu.memref_slice %arg9[%c1_i32_26, %c0_i32_30, %c0_i32_31] : memref<2x128x256xbf16, #tpu.memory_space<vmem>> -> memref<1x128x256xbf16, #tpu.memory_space<vmem>>
    %32 = tpu.memref_squeeze %31 : memref<1x128x256xbf16, #tpu.memory_space<vmem>> -> memref<128x256xbf16, #tpu.memory_space<vmem>>
    %33 = tpu.memref_slice %arg10[%c1_i32_27] : memref<2x!tpu.dma_semaphore, #tpu.memory_space<semaphore_mem>> -> memref<1x!tpu.dma_semaphore, #tpu.memory_space<semaphore_mem>>
    %34 = tpu.memref_squeeze %33 : memref<1x!tpu.dma_semaphore, #tpu.memory_space<semaphore_mem>> -> memref<!tpu.dma_semaphore, #tpu.memory_space<semaphore_mem>>
    tpu.enqueue_dma source(%30 : memref<128x256xbf16, #tpu.memory_space<any>>) target(%32 : memref<128x256xbf16, #tpu.memory_space<vmem>>) target_semaphore(%34 : memref<!tpu.dma_semaphore, #tpu.memory_space<semaphore_mem>>)
    %cst = arith.constant 0.000000e+00 : f32
    %35 = vector.broadcast %cst : f32 to vector<8x256xf32>
    %c0 = arith.constant 0 : index
    %c0_32 = arith.constant 0 : index
    %36 = vector.load %arg11[%c0, %c0_32] : memref<8x256xf32, #tpu.memory_space<vmem>>, vector<8x256xf32>
    tpu.vector_store %arg11[%c0, %c0_32], %35 {strides = array<i32>} : memref<8x256xf32, #tpu.memory_space<vmem>>, vector<8x256xf32>,
    %c0_33 = arith.constant 0 : index
    %c0_34 = arith.constant 0 : index
    %37 = vector.load %arg11[%c0_33, %c0_34] : memref<8x256xf32, #tpu.memory_space<vmem>>, vector<8x256xf32>
    %c0_35 = arith.constant 0 : index
    %c0_36 = arith.constant 0 : index
    %38 = vector.load %arg1[%c0_35, %c0_36] : memref<8x128xbf16, #tpu.memory_space<vmem>>, vector<8x128xbf16>
    %c0_37 = arith.constant 0 : index
    %c0_38 = arith.constant 0 : index
    %c0_39 = arith.constant 0 : index
    %39 = vector.load %arg9[%c0_37, %c0_38, %c0_39] : memref<2x128x256xbf16, #tpu.memory_space<vmem>>, vector<1x128x256xbf16>
    %40 = vector.shape_cast %39 : vector<1x128x256xbf16> to vector<128x256xbf16>
    %cst_40 = arith.constant dense<0.000000e+00> : vector<8x256xf32>
    %41 = tpu.matmul %38, %40, %cst_40 {dimension_numbers = #tpu.dot_dimension_numbers<[1], [0], [0], [1], [0, 0, 1, 1], [], []>} : vector<8x128xbf16>, vector<128x256xbf16>, vector<8x256xf32> -> vector<8x256xf32>
    %42 = arith.addf %37, %41 : vector<8x256xf32>
    %c0_41 = arith.constant 0 : index
    %c0_42 = arith.constant 0 : index
    %43 = vector.load %arg11[%c0_41, %c0_42] : memref<8x256xf32, #tpu.memory_space<vmem>>, vector<8x256xf32>
    tpu.vector_store %arg11[%c0_41, %c0_42], %42 {strides = array<i32>} : memref<8x256xf32, #tpu.memory_space<vmem>>, vector<8x256xf32>,
    %c0_43 = arith.constant 0 : index
    %c0_44 = arith.constant 0 : index
    %44 = vector.load %arg11[%c0_43, %c0_44] : memref<8x256xf32, #tpu.memory_space<vmem>>, vector<8x256xf32>
    %c0_45 = arith.constant 0 : index
    %c0_46 = arith.constant 0 : index
    %c0_47 = arith.constant 0 : index
    %45 = vector.load %arg3[%c0_45, %c0_46, %c0_47] : memref<1x1x512xf32, #tpu.memory_space<vmem>>, vector<1x1x256xf32>
    %46 = vector.shape_cast %45 : vector<1x1x256xf32> to vector<1x256xf32>
    %47 = vector.broadcast %46 : vector<1x256xf32> to vector<8x256xf32>
    %48 = arith.addf %44, %47 : vector<8x256xf32>
    %cst_48 = arith.constant 0.000000e+00 : f32
    %49 = vector.broadcast %cst_48 : f32 to vector<8x256xf32>
    %50 = arith.maximumf %48, %49 : vector<8x256xf32>
    %51 = arith.truncf %50 : vector<8x256xf32> to vector<8x256xbf16>
    %c0_49 = arith.constant 0 : index
    %c0_50 = arith.constant 0 : index
    %52 = vector.load %arg18[%c0_49, %c0_50] : memref<8x512xbf16, #tpu.memory_space<vmem>>, vector<8x256xbf16>
    tpu.vector_store %arg18[%c0_49, %c0_50], %51 {strides = array<i32>} : memref<8x512xbf16, #tpu.memory_space<vmem>>, vector<8x256xbf16>,
    %c0_i32_51 = arith.constant 0 : i32
    %c1_i32_52 = arith.constant 1 : i32
    %c1_i32_53 = arith.constant 1 : i32
    %c0_i32_54 = arith.constant 0 : i32
    %c0_i32_55 = arith.constant 0 : i32
    %53 = tpu.memref_slice %arg2[%c0_i32_51, %c0_i32_54, %c0_i32_55] : memref<4x128x256xbf16, #tpu.memory_space<any>> -> memref<1x128x256xbf16, #tpu.memory_space<any>>
    %54 = tpu.memref_squeeze %53 : memref<1x128x256xbf16, #tpu.memory_space<any>> -> memref<128x256xbf16, #tpu.memory_space<any>>
    %c0_i32_56 = arith.constant 0 : i32
    %c0_i32_57 = arith.constant 0 : i32
    %55 = tpu.memref_slice %arg9[%c1_i32_52, %c0_i32_56, %c0_i32_57] : memref<2x128x256xbf16, #tpu.memory_space<vmem>> -> memref<1x128x256xbf16, #tpu.memory_space<vmem>>
    %56 = tpu.memref_squeeze %55 : memref<1x128x256xbf16, #tpu.memory_space<vmem>> -> memref<128x256xbf16, #tpu.memory_space<vmem>>
    %57 = tpu.memref_slice %arg10[%c1_i32_53] : memref<2x!tpu.dma_semaphore, #tpu.memory_space<semaphore_mem>> -> memref<1x!tpu.dma_semaphore, #tpu.memory_space<semaphore_mem>>
    %58 = tpu.memref_squeeze %57 : memref<1x!tpu.dma_semaphore, #tpu.memory_space<semaphore_mem>> -> memref<!tpu.dma_semaphore, #tpu.memory_space<semaphore_mem>>
    tpu.wait_dma2 semaphore(%58 : memref<!tpu.dma_semaphore, #tpu.memory_space<semaphore_mem>>) src(%54 : memref<128x256xbf16, #tpu.memory_space<any>>) dst(%56 : memref<128x256xbf16, #tpu.memory_space<vmem>>)
    %cst_58 = arith.constant 0.000000e+00 : f32
    %59 = vector.broadcast %cst_58 : f32 to vector<8x256xf32>
    %c0_59 = arith.constant 0 : index
    %c0_60 = arith.constant 0 : index
    %60 = vector.load %arg11[%c0_59, %c0_60] : memref<8x256xf32, #tpu.memory_space<vmem>>, vector<8x256xf32>
    tpu.vector_store %arg11[%c0_59, %c0_60], %59 {strides = array<i32>} : memref<8x256xf32, #tpu.memory_space<vmem>>, vector<8x256xf32>,
    %c0_61 = arith.constant 0 : index
    %c0_62 = arith.constant 0 : index
    %61 = vector.load %arg11[%c0_61, %c0_62] : memref<8x256xf32, #tpu.memory_space<vmem>>, vector<8x256xf32>
    %c0_63 = arith.constant 0 : index
    %c0_64 = arith.constant 0 : index
    %62 = vector.load %arg1[%c0_63, %c0_64] : memref<8x128xbf16, #tpu.memory_space<vmem>>, vector<8x128xbf16>
    %c1 = arith.constant 1 : index
    %c0_65 = arith.constant 0 : index
    %c0_66 = arith.constant 0 : index
    %63 = vector.load %arg9[%c1, %c0_65, %c0_66] : memref<2x128x256xbf16, #tpu.memory_space<vmem>>, vector<1x128x256xbf16>
    %64 = vector.shape_cast %63 : vector<1x128x256xbf16> to vector<128x256xbf16>
    %cst_67 = arith.constant dense<0.000000e+00> : vector<8x256xf32>
    %65 = tpu.matmul %62, %64, %cst_67 {dimension_numbers = #tpu.dot_dimension_numbers<[1], [0], [0], [1], [0, 0, 1, 1], [], []>} : vector<8x128xbf16>, vector<128x256xbf16>, vector<8x256xf32> -> vector<8x256xf32>
    %66 = arith.addf %61, %65 : vector<8x256xf32>
    %c0_68 = arith.constant 0 : index
    %c0_69 = arith.constant 0 : index
    %67 = vector.load %arg11[%c0_68, %c0_69] : memref<8x256xf32, #tpu.memory_space<vmem>>, vector<8x256xf32>
    tpu.vector_store %arg11[%c0_68, %c0_69], %66 {strides = array<i32>} : memref<8x256xf32, #tpu.memory_space<vmem>>, vector<8x256xf32>,
    %c0_70 = arith.constant 0 : index
    %c0_71 = arith.constant 0 : index
    %68 = vector.load %arg11[%c0_70, %c0_71] : memref<8x256xf32, #tpu.memory_space<vmem>>, vector<8x256xf32>
    %c0_72 = arith.constant 0 : index
    %c0_73 = arith.constant 0 : index
    %c256 = arith.constant 256 : index
    %69 = vector.load %arg3[%c0_72, %c0_73, %c256] : memref<1x1x512xf32, #tpu.memory_space<vmem>>, vector<1x1x256xf32>
    %70 = vector.shape_cast %69 : vector<1x1x256xf32> to vector<1x256xf32>
    %71 = vector.broadcast %70 : vector<1x256xf32> to vector<8x256xf32>
    %72 = arith.addf %68, %71 : vector<8x256xf32>
    %cst_74 = arith.constant 0.000000e+00 : f32
    %73 = vector.broadcast %cst_74 : f32 to vector<8x256xf32>
    %74 = arith.maximumf %72, %73 : vector<8x256xf32>
    %75 = arith.truncf %74 : vector<8x256xf32> to vector<8x256xbf16>
    %c0_75 = arith.constant 0 : index
    %c256_76 = arith.constant 256 : index
    %76 = vector.load %arg18[%c0_75, %c256_76] : memref<8x512xbf16, #tpu.memory_space<vmem>>, vector<8x256xbf16>
    tpu.vector_store %arg18[%c0_75, %c256_76], %75 {strides = array<i32>} : memref<8x512xbf16, #tpu.memory_space<vmem>>, vector<8x256xbf16>,
    %c0_i32_77 = arith.constant 0 : i32
    %c0_i32_78 = arith.constant 0 : i32
    %c0_i32_79 = arith.constant 0 : i32
    %c0_i32_80 = arith.constant 0 : i32
    %c0_i32_81 = arith.constant 0 : i32
    %77 = tpu.memref_slice %arg4[%c0_i32_77, %c0_i32_80, %c0_i32_81] : memref<16x128x256xbf16, #tpu.memory_space<any>> -> memref<1x128x256xbf16, #tpu.memory_space<any>>
    %78 = tpu.memref_squeeze %77 : memref<1x128x256xbf16, #tpu.memory_space<any>> -> memref<128x256xbf16, #tpu.memory_space<any>>
    %c0_i32_82 = arith.constant 0 : i32
    %c0_i32_83 = arith.constant 0 : i32
    %79 = tpu.memref_slice %arg12[%c0_i32_78, %c0_i32_82, %c0_i32_83] : memref<2x128x256xbf16, #tpu.memory_space<vmem>> -> memref<1x128x256xbf16, #tpu.memory_space<vmem>>
    %80 = tpu.memref_squeeze %79 : memref<1x128x256xbf16, #tpu.memory_space<vmem>> -> memref<128x256xbf16, #tpu.memory_space<vmem>>
    %81 = tpu.memref_slice %arg13[%c0_i32_79] : memref<2x!tpu.dma_semaphore, #tpu.memory_space<semaphore_mem>> -> memref<1x!tpu.dma_semaphore, #tpu.memory_space<semaphore_mem>>
    %82 = tpu.memref_squeeze %81 : memref<1x!tpu.dma_semaphore, #tpu.memory_space<semaphore_mem>> -> memref<!tpu.dma_semaphore, #tpu.memory_space<semaphore_mem>>
    tpu.wait_dma2 semaphore(%82 : memref<!tpu.dma_semaphore, #tpu.memory_space<semaphore_mem>>) src(%78 : memref<128x256xbf16, #tpu.memory_space<any>>) dst(%80 : memref<128x256xbf16, #tpu.memory_space<vmem>>)
    %c0_i32_84 = arith.constant 0 : i32
    %83 = arith.addi %7, %c0_i32_84 : i32
    %c1_i32_85 = arith.constant 1 : i32
    %84 = arith.addi %83, %c1_i32_85 : i32
    %c1_i32_86 = arith.constant 1 : i32
    %c1_i32_87 = arith.constant 1 : i32
    %c0_i32_88 = arith.constant 0 : i32
    %c0_i32_89 = arith.constant 0 : i32
    %85 = tpu.memref_slice %arg4[%84, %c0_i32_88, %c0_i32_89] : memref<16x128x256xbf16, #tpu.memory_space<any>> -> memref<1x128x256xbf16, #tpu.memory_space<any>>
    %86 = tpu.memref_squeeze %85 : memref<1x128x256xbf16, #tpu.memory_space<any>> -> memref<128x256xbf16, #tpu.memory_space<any>>
    %c0_i32_90 = arith.constant 0 : i32
    %c0_i32_91 = arith.constant 0 : i32
    %87 = tpu.memref_slice %arg12[%c1_i32_86, %c0_i32_90, %c0_i32_91] : memref<2x128x256xbf16, #tpu.memory_space<vmem>> -> memref<1x128x256xbf16, #tpu.memory_space<vmem>>
    %88 = tpu.memref_squeeze %87 : memref<1x128x256xbf16, #tpu.memory_space<vmem>> -> memref<128x256xbf16, #tpu.memory_space<vmem>>
    %89 = tpu.memref_slice %arg13[%c1_i32_87] : memref<2x!tpu.dma_semaphore, #tpu.memory_space<semaphore_mem>> -> memref<1x!tpu.dma_semaphore, #tpu.memory_space<semaphore_mem>>
    %90 = tpu.memref_squeeze %89 : memref<1x!tpu.dma_semaphore, #tpu.memory_space<semaphore_mem>> -> memref<!tpu.dma_semaphore, #tpu.memory_space<semaphore_mem>>
    tpu.enqueue_dma source(%86 : memref<128x256xbf16, #tpu.memory_space<any>>) target(%88 : memref<128x256xbf16, #tpu.memory_space<vmem>>) target_semaphore(%90 : memref<!tpu.dma_semaphore, #tpu.memory_space<semaphore_mem>>)
    %cst_92 = arith.constant 0.000000e+00 : f32
    %91 = vector.broadcast %cst_92 : f32 to vector<8x256xf32>
    %c0_93 = arith.constant 0 : index
    %c0_94 = arith.constant 0 : index
    %92 = vector.load %arg14[%c0_93, %c0_94] : memref<8x256xf32, #tpu.memory_space<vmem>>, vector<8x256xf32>
    tpu.vector_store %arg14[%c0_93, %c0_94], %91 {strides = array<i32>} : memref<8x256xf32, #tpu.memory_space<vmem>>, vector<8x256xf32>,
    %c0_95 = arith.constant 0 : index
    %c0_96 = arith.constant 0 : index
    %93 = vector.load %arg14[%c0_95, %c0_96] : memref<8x256xf32, #tpu.memory_space<vmem>>, vector<8x256xf32>
    %c0_97 = arith.constant 0 : index
    %c0_98 = arith.constant 0 : index
    %94 = vector.load %arg18[%c0_97, %c0_98] : memref<8x512xbf16, #tpu.memory_space<vmem>>, vector<8x128xbf16>
    %c0_99 = arith.constant 0 : index
    %c0_100 = arith.constant 0 : index
    %c0_101 = arith.constant 0 : index
    %95 = vector.load %arg12[%c0_99, %c0_100, %c0_101] : memref<2x128x256xbf16, #tpu.memory_space<vmem>>, vector<1x128x256xbf16>
    %96 = vector.shape_cast %95 : vector<1x128x256xbf16> to vector<128x256xbf16>
    %cst_102 = arith.constant dense<0.000000e+00> : vector<8x256xf32>
    %97 = tpu.matmul %94, %96, %cst_102 {dimension_numbers = #tpu.dot_dimension_numbers<[1], [0], [0], [1], [0, 0, 1, 1], [], []>} : vector<8x128xbf16>, vector<128x256xbf16>, vector<8x256xf32> -> vector<8x256xf32>
    %98 = arith.addf %93, %97 : vector<8x256xf32>
    %c0_103 = arith.constant 0 : index
    %c0_104 = arith.constant 0 : index
    %99 = vector.load %arg14[%c0_103, %c0_104] : memref<8x256xf32, #tpu.memory_space<vmem>>, vector<8x256xf32>
    tpu.vector_store %arg14[%c0_103, %c0_104], %98 {strides = array<i32>} : memref<8x256xf32, #tpu.memory_space<vmem>>, vector<8x256xf32>,
    %c0_i32_105 = arith.constant 0 : i32
    %c1_i32_106 = arith.constant 1 : i32
    %c1_i32_107 = arith.constant 1 : i32
    %c0_i32_108 = arith.constant 0 : i32
    %c0_i32_109 = arith.constant 0 : i32
    %100 = tpu.memref_slice %arg4[%c0_i32_105, %c0_i32_108, %c0_i32_109] : memref<16x128x256xbf16, #tpu.memory_space<any>> -> memref<1x128x256xbf16, #tpu.memory_space<any>>
    %101 = tpu.memref_squeeze %100 : memref<1x128x256xbf16, #tpu.memory_space<any>> -> memref<128x256xbf16, #tpu.memory_space<any>>
    %c0_i32_110 = arith.constant 0 : i32
    %c0_i32_111 = arith.constant 0 : i32
    %102 = tpu.memref_slice %arg12[%c1_i32_106, %c0_i32_110, %c0_i32_111] : memref<2x128x256xbf16, #tpu.memory_space<vmem>> -> memref<1x128x256xbf16, #tpu.memory_space<vmem>>
    %103 = tpu.memref_squeeze %102 : memref<1x128x256xbf16, #tpu.memory_space<vmem>> -> memref<128x256xbf16, #tpu.memory_space<vmem>>
    %104 = tpu.memref_slice %arg13[%c1_i32_107] : memref<2x!tpu.dma_semaphore, #tpu.memory_space<semaphore_mem>> -> memref<1x!tpu.dma_semaphore, #tpu.memory_space<semaphore_mem>>
    %105 = tpu.memref_squeeze %104 : memref<1x!tpu.dma_semaphore, #tpu.memory_space<semaphore_mem>> -> memref<!tpu.dma_semaphore, #tpu.memory_space<semaphore_mem>>
    tpu.wait_dma2 semaphore(%105 : memref<!tpu.dma_semaphore, #tpu.memory_space<semaphore_mem>>) src(%101 : memref<128x256xbf16, #tpu.memory_space<any>>) dst(%103 : memref<128x256xbf16, #tpu.memory_space<vmem>>)
    %c1_i32_112 = arith.constant 1 : i32
    %106 = arith.addi %7, %c1_i32_112 : i32
    %c1_i32_113 = arith.constant 1 : i32
    %107 = arith.addi %106, %c1_i32_113 : i32
    %c0_i32_114 = arith.constant 0 : i32
    %c0_i32_115 = arith.constant 0 : i32
    %c0_i32_116 = arith.constant 0 : i32
    %c0_i32_117 = arith.constant 0 : i32
    %108 = tpu.memref_slice %arg4[%107, %c0_i32_116, %c0_i32_117] : memref<16x128x256xbf16, #tpu.memory_space<any>> -> memref<1x128x256xbf16, #tpu.memory_space<any>>
    %109 = tpu.memref_squeeze %108 : memref<1x128x256xbf16, #tpu.memory_space<any>> -> memref<128x256xbf16, #tpu.memory_space<any>>
    %c0_i32_118 = arith.constant 0 : i32
    %c0_i32_119 = arith.constant 0 : i32
    %110 = tpu.memref_slice %arg12[%c0_i32_114, %c0_i32_118, %c0_i32_119] : memref<2x128x256xbf16, #tpu.memory_space<vmem>> -> memref<1x128x256xbf16, #tpu.memory_space<vmem>>
    %111 = tpu.memref_squeeze %110 : memref<1x128x256xbf16, #tpu.memory_space<vmem>> -> memref<128x256xbf16, #tpu.memory_space<vmem>>
    %112 = tpu.memref_slice %arg13[%c0_i32_115] : memref<2x!tpu.dma_semaphore, #tpu.memory_space<semaphore_mem>> -> memref<1x!tpu.dma_semaphore, #tpu.memory_space<semaphore_mem>>
    %113 = tpu.memref_squeeze %112 : memref<1x!tpu.dma_semaphore, #tpu.memory_space<semaphore_mem>> -> memref<!tpu.dma_semaphore, #tpu.memory_space<semaphore_mem>>
    tpu.enqueue_dma source(%109 : memref<128x256xbf16, #tpu.memory_space<any>>) target(%111 : memref<128x256xbf16, #tpu.memory_space<vmem>>) target_semaphore(%113 : memref<!tpu.dma_semaphore, #tpu.memory_space<semaphore_mem>>)
    %c0_120 = arith.constant 0 : index
    %c0_121 = arith.constant 0 : index
    %114 = vector.load %arg14[%c0_120, %c0_121] : memref<8x256xf32, #tpu.memory_space<vmem>>, vector<8x256xf32>
    %c0_122 = arith.constant 0 : index
    %c128 = arith.constant 128 : index
    %115 = vector.load %arg18[%c0_122, %c128] : memref<8x512xbf16, #tpu.memory_space<vmem>>, vector<8x128xbf16>
    %c1_123 = arith.constant 1 : index
    %c0_124 = arith.constant 0 : index
    %c0_125 = arith.constant 0 : index
    %116 = vector.load %arg12[%c1_123, %c0_124, %c0_125] : memref<2x128x256xbf16, #tpu.memory_space<vmem>>, vector<1x128x256xbf16>
    %117 = vector.shape_cast %116 : vector<1x128x256xbf16> to vector<128x256xbf16>
    %cst_126 = arith.constant dense<0.000000e+00> : vector<8x256xf32>
    %118 = tpu.matmul %115, %117, %cst_126 {dimension_numbers = #tpu.dot_dimension_numbers<[1], [0], [0], [1], [0, 0, 1, 1], [], []>} : vector<8x128xbf16>, vector<128x256xbf16>, vector<8x256xf32> -> vector<8x256xf32>
    %119 = arith.addf %114, %118 : vector<8x256xf32>
    %c0_127 = arith.constant 0 : index
    %c0_128 = arith.constant 0 : index
    %120 = vector.load %arg14[%c0_127, %c0_128] : memref<8x256xf32, #tpu.memory_space<vmem>>, vector<8x256xf32>
    tpu.vector_store %arg14[%c0_127, %c0_128], %119 {strides = array<i32>} : memref<8x256xf32, #tpu.memory_space<vmem>>, vector<8x256xf32>,
    %c0_i32_129 = arith.constant 0 : i32
    %c0_i32_130 = arith.constant 0 : i32
    %c0_i32_131 = arith.constant 0 : i32
    %c0_i32_132 = arith.constant 0 : i32
    %c0_i32_133 = arith.constant 0 : i32
    %121 = tpu.memref_slice %arg4[%c0_i32_129, %c0_i32_132, %c0_i32_133] : memref<16x128x256xbf16, #tpu.memory_space<any>> -> memref<1x128x256xbf16, #tpu.memory_space<any>>
    %122 = tpu.memref_squeeze %121 : memref<1x128x256xbf16, #tpu.memory_space<any>> -> memref<128x256xbf16, #tpu.memory_space<any>>
    %c0_i32_134 = arith.constant 0 : i32
    %c0_i32_135 = arith.constant 0 : i32
    %123 = tpu.memref_slice %arg12[%c0_i32_130, %c0_i32_134, %c0_i32_135] : memref<2x128x256xbf16, #tpu.memory_space<vmem>> -> memref<1x128x256xbf16, #tpu.memory_space<vmem>>
    %124 = tpu.memref_squeeze %123 : memref<1x128x256xbf16, #tpu.memory_space<vmem>> -> memref<128x256xbf16, #tpu.memory_space<vmem>>
    %125 = tpu.memref_slice %arg13[%c0_i32_131] : memref<2x!tpu.dma_semaphore, #tpu.memory_space<semaphore_mem>> -> memref<1x!tpu.dma_semaphore, #tpu.memory_space<semaphore_mem>>
    %126 = tpu.memref_squeeze %125 : memref<1x!tpu.dma_semaphore, #tpu.memory_space<semaphore_mem>> -> memref<!tpu.dma_semaphore, #tpu.memory_space<semaphore_mem>>
    tpu.wait_dma2 semaphore(%126 : memref<!tpu.dma_semaphore, #tpu.memory_space<semaphore_mem>>) src(%122 : memref<128x256xbf16, #tpu.memory_space<any>>) dst(%124 : memref<128x256xbf16, #tpu.memory_space<vmem>>)
    %c2_i32_136 = arith.constant 2 : i32
    %127 = arith.addi %7, %c2_i32_136 : i32
    %c1_i32_137 = arith.constant 1 : i32
    %128 = arith.addi %127, %c1_i32_137 : i32
    %c1_i32_138 = arith.constant 1 : i32
    %c1_i32_139 = arith.constant 1 : i32
    %c0_i32_140 = arith.constant 0 : i32
    %c0_i32_141 = arith.constant 0 : i32
    %129 = tpu.memref_slice %arg4[%128, %c0_i32_140, %c0_i32_141] : memref<16x128x256xbf16, #tpu.memory_space<any>> -> memref<1x128x256xbf16, #tpu.memory_space<any>>
    %130 = tpu.memref_squeeze %129 : memref<1x128x256xbf16, #tpu.memory_space<any>> -> memref<128x256xbf16, #tpu.memory_space<any>>
    %c0_i32_142 = arith.constant 0 : i32
    %c0_i32_143 = arith.constant 0 : i32
    %131 = tpu.memref_slice %arg12[%c1_i32_138, %c0_i32_142, %c0_i32_143] : memref<2x128x256xbf16, #tpu.memory_space<vmem>> -> memref<1x128x256xbf16, #tpu.memory_space<vmem>>
    %132 = tpu.memref_squeeze %131 : memref<1x128x256xbf16, #tpu.memory_space<vmem>> -> memref<128x256xbf16, #tpu.memory_space<vmem>>
    %133 = tpu.memref_slice %arg13[%c1_i32_139] : memref<2x!tpu.dma_semaphore, #tpu.memory_space<semaphore_mem>> -> memref<1x!tpu.dma_semaphore, #tpu.memory_space<semaphore_mem>>
    %134 = tpu.memref_squeeze %133 : memref<1x!tpu.dma_semaphore, #tpu.memory_space<semaphore_mem>> -> memref<!tpu.dma_semaphore, #tpu.memory_space<semaphore_mem>>
    tpu.enqueue_dma source(%130 : memref<128x256xbf16, #tpu.memory_space<any>>) target(%132 : memref<128x256xbf16, #tpu.memory_space<vmem>>) target_semaphore(%134 : memref<!tpu.dma_semaphore, #tpu.memory_space<semaphore_mem>>)
    %c0_144 = arith.constant 0 : index
    %c0_145 = arith.constant 0 : index
    %135 = vector.load %arg14[%c0_144, %c0_145] : memref<8x256xf32, #tpu.memory_space<vmem>>, vector<8x256xf32>
    %c0_146 = arith.constant 0 : index
    %c256_147 = arith.constant 256 : index
    %136 = vector.load %arg18[%c0_146, %c256_147] : memref<8x512xbf16, #tpu.memory_space<vmem>>, vector<8x128xbf16>
    %c0_148 = arith.constant 0 : index
    %c0_149 = arith.constant 0 : index
    %c0_150 = arith.constant 0 : index
    %137 = vector.load %arg12[%c0_148, %c0_149, %c0_150] : memref<2x128x256xbf16, #tpu.memory_space<vmem>>, vector<1x128x256xbf16>
    %138 = vector.shape_cast %137 : vector<1x128x256xbf16> to vector<128x256xbf16>
    %cst_151 = arith.constant dense<0.000000e+00> : vector<8x256xf32>
    %139 = tpu.matmul %136, %138, %cst_151 {dimension_numbers = #tpu.dot_dimension_numbers<[1], [0], [0], [1], [0, 0, 1, 1], [], []>} : vector<8x128xbf16>, vector<128x256xbf16>, vector<8x256xf32> -> vector<8x256xf32>
    %140 = arith.addf %135, %139 : vector<8x256xf32>
    %c0_152 = arith.constant 0 : index
    %c0_153 = arith.constant 0 : index
    %141 = vector.load %arg14[%c0_152, %c0_153] : memref<8x256xf32, #tpu.memory_space<vmem>>, vector<8x256xf32>
    tpu.vector_store %arg14[%c0_152, %c0_153], %140 {strides = array<i32>} : memref<8x256xf32, #tpu.memory_space<vmem>>, vector<8x256xf32>,
    %c0_i32_154 = arith.constant 0 : i32
    %c1_i32_155 = arith.constant 1 : i32
    %c1_i32_156 = arith.constant 1 : i32
    %c0_i32_157 = arith.constant 0 : i32
    %c0_i32_158 = arith.constant 0 : i32
    %142 = tpu.memref_slice %arg4[%c0_i32_154, %c0_i32_157, %c0_i32_158] : memref<16x128x256xbf16, #tpu.memory_space<any>> -> memref<1x128x256xbf16, #tpu.memory_space<any>>
    %143 = tpu.memref_squeeze %142 : memref<1x128x256xbf16, #tpu.memory_space<any>> -> memref<128x256xbf16, #tpu.memory_space<any>>
    %c0_i32_159 = arith.constant 0 : i32
    %c0_i32_160 = arith.constant 0 : i32
    %144 = tpu.memref_slice %arg12[%c1_i32_155, %c0_i32_159, %c0_i32_160] : memref<2x128x256xbf16, #tpu.memory_space<vmem>> -> memref<1x128x256xbf16, #tpu.memory_space<vmem>>
    %145 = tpu.memref_squeeze %144 : memref<1x128x256xbf16, #tpu.memory_space<vmem>> -> memref<128x256xbf16, #tpu.memory_space<vmem>>
    %146 = tpu.memref_slice %arg13[%c1_i32_156] : memref<2x!tpu.dma_semaphore, #tpu.memory_space<semaphore_mem>> -> memref<1x!tpu.dma_semaphore, #tpu.memory_space<semaphore_mem>>
    %147 = tpu.memref_squeeze %146 : memref<1x!tpu.dma_semaphore, #tpu.memory_space<semaphore_mem>> -> memref<!tpu.dma_semaphore, #tpu.memory_space<semaphore_mem>>
    tpu.wait_dma2 semaphore(%147 : memref<!tpu.dma_semaphore, #tpu.memory_space<semaphore_mem>>) src(%143 : memref<128x256xbf16, #tpu.memory_space<any>>) dst(%145 : memref<128x256xbf16, #tpu.memory_space<vmem>>)
    %c3_i32 = arith.constant 3 : i32
    %148 = arith.addi %7, %c3_i32 : i32
    %c1_i32_161 = arith.constant 1 : i32
    %149 = arith.addi %148, %c1_i32_161 : i32
    %c0_i32_162 = arith.constant 0 : i32
    %c0_i32_163 = arith.constant 0 : i32
    %c0_i32_164 = arith.constant 0 : i32
    %c0_i32_165 = arith.constant 0 : i32
    %150 = tpu.memref_slice %arg4[%149, %c0_i32_164, %c0_i32_165] : memref<16x128x256xbf16, #tpu.memory_space<any>> -> memref<1x128x256xbf16, #tpu.memory_space<any>>
    %151 = tpu.memref_squeeze %150 : memref<1x128x256xbf16, #tpu.memory_space<any>> -> memref<128x256xbf16, #tpu.memory_space<any>>
    %c0_i32_166 = arith.constant 0 : i32
    %c0_i32_167 = arith.constant 0 : i32
    %152 = tpu.memref_slice %arg12[%c0_i32_162, %c0_i32_166, %c0_i32_167] : memref<2x128x256xbf16, #tpu.memory_space<vmem>> -> memref<1x128x256xbf16, #tpu.memory_space<vmem>>
    %153 = tpu.memref_squeeze %152 : memref<1x128x256xbf16, #tpu.memory_space<vmem>> -> memref<128x256xbf16, #tpu.memory_space<vmem>>
    %154 = tpu.memref_slice %arg13[%c0_i32_163] : memref<2x!tpu.dma_semaphore, #tpu.memory_space<semaphore_mem>> -> memref<1x!tpu.dma_semaphore, #tpu.memory_space<semaphore_mem>>
    %155 = tpu.memref_squeeze %154 : memref<1x!tpu.dma_semaphore, #tpu.memory_space<semaphore_mem>> -> memref<!tpu.dma_semaphore, #tpu.memory_space<semaphore_mem>>
    tpu.enqueue_dma source(%151 : memref<128x256xbf16, #tpu.memory_space<any>>) target(%153 : memref<128x256xbf16, #tpu.memory_space<vmem>>) target_semaphore(%155 : memref<!tpu.dma_semaphore, #tpu.memory_space<semaphore_mem>>)
    %c0_168 = arith.constant 0 : index
    %c0_169 = arith.constant 0 : index
    %156 = vector.load %arg14[%c0_168, %c0_169] : memref<8x256xf32, #tpu.memory_space<vmem>>, vector<8x256xf32>
    %c0_170 = arith.constant 0 : index
    %c384 = arith.constant 384 : index
    %157 = vector.load %arg18[%c0_170, %c384] : memref<8x512xbf16, #tpu.memory_space<vmem>>, vector<8x128xbf16>
    %c1_171 = arith.constant 1 : index
    %c0_172 = arith.constant 0 : index
    %c0_173 = arith.constant 0 : index
    %158 = vector.load %arg12[%c1_171, %c0_172, %c0_173] : memref<2x128x256xbf16, #tpu.memory_space<vmem>>, vector<1x128x256xbf16>
    %159 = vector.shape_cast %158 : vector<1x128x256xbf16> to vector<128x256xbf16>
    %cst_174 = arith.constant dense<0.000000e+00> : vector<8x256xf32>
    %160 = tpu.matmul %157, %159, %cst_174 {dimension_numbers = #tpu.dot_dimension_numbers<[1], [0], [0], [1], [0, 0, 1, 1], [], []>} : vector<8x128xbf16>, vector<128x256xbf16>, vector<8x256xf32> -> vector<8x256xf32>
    %161 = arith.addf %156, %160 : vector<8x256xf32>
    %c0_175 = arith.constant 0 : index
    %c0_176 = arith.constant 0 : index
    %162 = vector.load %arg14[%c0_175, %c0_176] : memref<8x256xf32, #tpu.memory_space<vmem>>, vector<8x256xf32>
    tpu.vector_store %arg14[%c0_175, %c0_176], %161 {strides = array<i32>} : memref<8x256xf32, #tpu.memory_space<vmem>>, vector<8x256xf32>,
    %c0_177 = arith.constant 0 : index
    %c0_178 = arith.constant 0 : index
    %163 = vector.load %arg14[%c0_177, %c0_178] : memref<8x256xf32, #tpu.memory_space<vmem>>, vector<8x256xf32>
    %c0_179 = arith.constant 0 : index
    %c0_180 = arith.constant 0 : index
    %c0_181 = arith.constant 0 : index
    %164 = vector.load %arg5[%c0_179, %c0_180, %c0_181] : memref<1x1x512xf32, #tpu.memory_space<vmem>>, vector<1x1x256xf32>
    %165 = vector.shape_cast %164 : vector<1x1x256xf32> to vector<1x256xf32>
    %166 = vector.broadcast %165 : vector<1x256xf32> to vector<8x256xf32>
    %167 = arith.addf %163, %166 : vector<8x256xf32>
    %cst_182 = arith.constant 0.000000e+00 : f32
    %168 = vector.broadcast %cst_182 : f32 to vector<8x256xf32>
    %169 = arith.maximumf %167, %168 : vector<8x256xf32>
    %170 = arith.truncf %169 : vector<8x256xf32> to vector<8x256xbf16>
    %c0_183 = arith.constant 0 : index
    %c0_184 = arith.constant 0 : index
    %171 = vector.load %arg19[%c0_183, %c0_184] : memref<8x512xbf16, #tpu.memory_space<vmem>>, vector<8x256xbf16>
    tpu.vector_store %arg19[%c0_183, %c0_184], %170 {strides = array<i32>} : memref<8x512xbf16, #tpu.memory_space<vmem>>, vector<8x256xbf16>,
    %c0_i32_185 = arith.constant 0 : i32
    %c0_i32_186 = arith.constant 0 : i32
    %c0_i32_187 = arith.constant 0 : i32
    %c0_i32_188 = arith.constant 0 : i32
    %c0_i32_189 = arith.constant 0 : i32
    %172 = tpu.memref_slice %arg4[%c0_i32_185, %c0_i32_188, %c0_i32_189] : memref<16x128x256xbf16, #tpu.memory_space<any>> -> memref<1x128x256xbf16, #tpu.memory_space<any>>
    %173 = tpu.memref_squeeze %172 : memref<1x128x256xbf16, #tpu.memory_space<any>> -> memref<128x256xbf16, #tpu.memory_space<any>>
    %c0_i32_190 = arith.constant 0 : i32
    %c0_i32_191 = arith.constant 0 : i32
    %174 = tpu.memref_slice %arg12[%c0_i32_186, %c0_i32_190, %c0_i32_191] : memref<2x128x256xbf16, #tpu.memory_space<vmem>> -> memref<1x128x256xbf16, #tpu.memory_space<vmem>>
    %175 = tpu.memref_squeeze %174 : memref<1x128x256xbf16, #tpu.memory_space<vmem>> -> memref<128x256xbf16, #tpu.memory_space<vmem>>
    %176 = tpu.memref_slice %arg13[%c0_i32_187] : memref<2x!tpu.dma_semaphore, #tpu.memory_space<semaphore_mem>> -> memref<1x!tpu.dma_semaphore, #tpu.memory_space<semaphore_mem>>
    %177 = tpu.memref_squeeze %176 : memref<1x!tpu.dma_semaphore, #tpu.memory_space<semaphore_mem>> -> memref<!tpu.dma_semaphore, #tpu.memory_space<semaphore_mem>>
    tpu.wait_dma2 semaphore(%177 : memref<!tpu.dma_semaphore, #tpu.memory_space<semaphore_mem>>) src(%173 : memref<128x256xbf16, #tpu.memory_space<any>>) dst(%175 : memref<128x256xbf16, #tpu.memory_space<vmem>>)
    %c4_i32 = arith.constant 4 : i32
    %178 = arith.addi %7, %c4_i32 : i32
    %c1_i32_192 = arith.constant 1 : i32
    %179 = arith.addi %178, %c1_i32_192 : i32
    %c1_i32_193 = arith.constant 1 : i32
    %c1_i32_194 = arith.constant 1 : i32
    %c0_i32_195 = arith.constant 0 : i32
    %c0_i32_196 = arith.constant 0 : i32
    %180 = tpu.memref_slice %arg4[%179, %c0_i32_195, %c0_i32_196] : memref<16x128x256xbf16, #tpu.memory_space<any>> -> memref<1x128x256xbf16, #tpu.memory_space<any>>
    %181 = tpu.memref_squeeze %180 : memref<1x128x256xbf16, #tpu.memory_space<any>> -> memref<128x256xbf16, #tpu.memory_space<any>>
    %c0_i32_197 = arith.constant 0 : i32
    %c0_i32_198 = arith.constant 0 : i32
    %182 = tpu.memref_slice %arg12[%c1_i32_193, %c0_i32_197, %c0_i32_198] : memref<2x128x256xbf16, #tpu.memory_space<vmem>> -> memref<1x128x256xbf16, #tpu.memory_space<vmem>>
    %183 = tpu.memref_squeeze %182 : memref<1x128x256xbf16, #tpu.memory_space<vmem>> -> memref<128x256xbf16, #tpu.memory_space<vmem>>
    %184 = tpu.memref_slice %arg13[%c1_i32_194] : memref<2x!tpu.dma_semaphore, #tpu.memory_space<semaphore_mem>> -> memref<1x!tpu.dma_semaphore, #tpu.memory_space<semaphore_mem>>
    %185 = tpu.memref_squeeze %184 : memref<1x!tpu.dma_semaphore, #tpu.memory_space<semaphore_mem>> -> memref<!tpu.dma_semaphore, #tpu.memory_space<semaphore_mem>>
    tpu.enqueue_dma source(%181 : memref<128x256xbf16, #tpu.memory_space<any>>) target(%183 : memref<128x256xbf16, #tpu.memory_space<vmem>>) target_semaphore(%185 : memref<!tpu.dma_semaphore, #tpu.memory_space<semaphore_mem>>)
    %cst_199 = arith.constant 0.000000e+00 : f32
    %186 = vector.broadcast %cst_199 : f32 to vector<8x256xf32>
    %c0_200 = arith.constant 0 : index
    %c0_201 = arith.constant 0 : index
    %187 = vector.load %arg14[%c0_200, %c0_201] : memref<8x256xf32, #tpu.memory_space<vmem>>, vector<8x256xf32>
    tpu.vector_store %arg14[%c0_200, %c0_201], %186 {strides = array<i32>} : memref<8x256xf32, #tpu.memory_space<vmem>>, vector<8x256xf32>,
    %c0_202 = arith.constant 0 : index
    %c0_203 = arith.constant 0 : index
    %188 = vector.load %arg14[%c0_202, %c0_203] : memref<8x256xf32, #tpu.memory_space<vmem>>, vector<8x256xf32>
    %c0_204 = arith.constant 0 : index
    %c0_205 = arith.constant 0 : index
    %189 = vector.load %arg18[%c0_204, %c0_205] : memref<8x512xbf16, #tpu.memory_space<vmem>>, vector<8x128xbf16>
    %c0_206 = arith.constant 0 : index
    %c0_207 = arith.constant 0 : index
    %c0_208 = arith.constant 0 : index
    %190 = vector.load %arg12[%c0_206, %c0_207, %c0_208] : memref<2x128x256xbf16, #tpu.memory_space<vmem>>, vector<1x128x256xbf16>
    %191 = vector.shape_cast %190 : vector<1x128x256xbf16> to vector<128x256xbf16>
    %cst_209 = arith.constant dense<0.000000e+00> : vector<8x256xf32>
    %192 = tpu.matmul %189, %191, %cst_209 {dimension_numbers = #tpu.dot_dimension_numbers<[1], [0], [0], [1], [0, 0, 1, 1], [], []>} : vector<8x128xbf16>, vector<128x256xbf16>, vector<8x256xf32> -> vector<8x256xf32>
    %193 = arith.addf %188, %192 : vector<8x256xf32>
    %c0_210 = arith.constant 0 : index
    %c0_211 = arith.constant 0 : index
    %194 = vector.load %arg14[%c0_210, %c0_211] : memref<8x256xf32, #tpu.memory_space<vmem>>, vector<8x256xf32>
    tpu.vector_store %arg14[%c0_210, %c0_211], %193 {strides = array<i32>} : memref<8x256xf32, #tpu.memory_space<vmem>>, vector<8x256xf32>,
    %c0_i32_212 = arith.constant 0 : i32
    %c1_i32_213 = arith.constant 1 : i32
    %c1_i32_214 = arith.constant 1 : i32
    %c0_i32_215 = arith.constant 0 : i32
    %c0_i32_216 = arith.constant 0 : i32
    %195 = tpu.memref_slice %arg4[%c0_i32_212, %c0_i32_215, %c0_i32_216] : memref<16x128x256xbf16, #tpu.memory_space<any>> -> memref<1x128x256xbf16, #tpu.memory_space<any>>
    %196 = tpu.memref_squeeze %195 : memref<1x128x256xbf16, #tpu.memory_space<any>> -> memref<128x256xbf16, #tpu.memory_space<any>>
    %c0_i32_217 = arith.constant 0 : i32
    %c0_i32_218 = arith.constant 0 : i32
    %197 = tpu.memref_slice %arg12[%c1_i32_213, %c0_i32_217, %c0_i32_218] : memref<2x128x256xbf16, #tpu.memory_space<vmem>> -> memref<1x128x256xbf16, #tpu.memory_space<vmem>>
    %198 = tpu.memref_squeeze %197 : memref<1x128x256xbf16, #tpu.memory_space<vmem>> -> memref<128x256xbf16, #tpu.memory_space<vmem>>
    %199 = tpu.memref_slice %arg13[%c1_i32_214] : memref<2x!tpu.dma_semaphore, #tpu.memory_space<semaphore_mem>> -> memref<1x!tpu.dma_semaphore, #tpu.memory_space<semaphore_mem>>
    %200 = tpu.memref_squeeze %199 : memref<1x!tpu.dma_semaphore, #tpu.memory_space<semaphore_mem>> -> memref<!tpu.dma_semaphore, #tpu.memory_space<semaphore_mem>>
    tpu.wait_dma2 semaphore(%200 : memref<!tpu.dma_semaphore, #tpu.memory_space<semaphore_mem>>) src(%196 : memref<128x256xbf16, #tpu.memory_space<any>>) dst(%198 : memref<128x256xbf16, #tpu.memory_space<vmem>>)
    %c5_i32 = arith.constant 5 : i32
    %201 = arith.addi %7, %c5_i32 : i32
    %c1_i32_219 = arith.constant 1 : i32
    %202 = arith.addi %201, %c1_i32_219 : i32
    %c0_i32_220 = arith.constant 0 : i32
    %c0_i32_221 = arith.constant 0 : i32
    %c0_i32_222 = arith.constant 0 : i32
    %c0_i32_223 = arith.constant 0 : i32
    %203 = tpu.memref_slice %arg4[%202, %c0_i32_222, %c0_i32_223] : memref<16x128x256xbf16, #tpu.memory_space<any>> -> memref<1x128x256xbf16, #tpu.memory_space<any>>
    %204 = tpu.memref_squeeze %203 : memref<1x128x256xbf16, #tpu.memory_space<any>> -> memref<128x256xbf16, #tpu.memory_space<any>>
    %c0_i32_224 = arith.constant 0 : i32
    %c0_i32_225 = arith.constant 0 : i32
    %205 = tpu.memref_slice %arg12[%c0_i32_220, %c0_i32_224, %c0_i32_225] : memref<2x128x256xbf16, #tpu.memory_space<vmem>> -> memref<1x128x256xbf16, #tpu.memory_space<vmem>>
    %206 = tpu.memref_squeeze %205 : memref<1x128x256xbf16, #tpu.memory_space<vmem>> -> memref<128x256xbf16, #tpu.memory_space<vmem>>
    %207 = tpu.memref_slice %arg13[%c0_i32_221] : memref<2x!tpu.dma_semaphore, #tpu.memory_space<semaphore_mem>> -> memref<1x!tpu.dma_semaphore, #tpu.memory_space<semaphore_mem>>
    %208 = tpu.memref_squeeze %207 : memref<1x!tpu.dma_semaphore, #tpu.memory_space<semaphore_mem>> -> memref<!tpu.dma_semaphore, #tpu.memory_space<semaphore_mem>>
    tpu.enqueue_dma source(%204 : memref<128x256xbf16, #tpu.memory_space<any>>) target(%206 : memref<128x256xbf16, #tpu.memory_space<vmem>>) target_semaphore(%208 : memref<!tpu.dma_semaphore, #tpu.memory_space<semaphore_mem>>)
    %c0_226 = arith.constant 0 : index
    %c0_227 = arith.constant 0 : index
    %209 = vector.load %arg14[%c0_226, %c0_227] : memref<8x256xf32, #tpu.memory_space<vmem>>, vector<8x256xf32>
    %c0_228 = arith.constant 0 : index
    %c128_229 = arith.constant 128 : index
    %210 = vector.load %arg18[%c0_228, %c128_229] : memref<8x512xbf16, #tpu.memory_space<vmem>>, vector<8x128xbf16>
    %c1_230 = arith.constant 1 : index
    %c0_231 = arith.constant 0 : index
    %c0_232 = arith.constant 0 : index
    %211 = vector.load %arg12[%c1_230, %c0_231, %c0_232] : memref<2x128x256xbf16, #tpu.memory_space<vmem>>, vector<1x128x256xbf16>
    %212 = vector.shape_cast %211 : vector<1x128x256xbf16> to vector<128x256xbf16>
    %cst_233 = arith.constant dense<0.000000e+00> : vector<8x256xf32>
    %213 = tpu.matmul %210, %212, %cst_233 {dimension_numbers = #tpu.dot_dimension_numbers<[1], [0], [0], [1], [0, 0, 1, 1], [], []>} : vector<8x128xbf16>, vector<128x256xbf16>, vector<8x256xf32> -> vector<8x256xf32>
    %214 = arith.addf %209, %213 : vector<8x256xf32>
    %c0_234 = arith.constant 0 : index
    %c0_235 = arith.constant 0 : index
    %215 = vector.load %arg14[%c0_234, %c0_235] : memref<8x256xf32, #tpu.memory_space<vmem>>, vector<8x256xf32>
    tpu.vector_store %arg14[%c0_234, %c0_235], %214 {strides = array<i32>} : memref<8x256xf32, #tpu.memory_space<vmem>>, vector<8x256xf32>,
    %c0_i32_236 = arith.constant 0 : i32
    %c0_i32_237 = arith.constant 0 : i32
    %c0_i32_238 = arith.constant 0 : i32
    %c0_i32_239 = arith.constant 0 : i32
    %c0_i32_240 = arith.constant 0 : i32
    %216 = tpu.memref_slice %arg4[%c0_i32_236, %c0_i32_239, %c0_i32_240] : memref<16x128x256xbf16, #tpu.memory_space<any>> -> memref<1x128x256xbf16, #tpu.memory_space<any>>
    %217 = tpu.memref_squeeze %216 : memref<1x128x256xbf16, #tpu.memory_space<any>> -> memref<128x256xbf16, #tpu.memory_space<any>>
    %c0_i32_241 = arith.constant 0 : i32
    %c0_i32_242 = arith.constant 0 : i32
    %218 = tpu.memref_slice %arg12[%c0_i32_237, %c0_i32_241, %c0_i32_242] : memref<2x128x256xbf16, #tpu.memory_space<vmem>> -> memref<1x128x256xbf16, #tpu.memory_space<vmem>>
    %219 = tpu.memref_squeeze %218 : memref<1x128x256xbf16, #tpu.memory_space<vmem>> -> memref<128x256xbf16, #tpu.memory_space<vmem>>
    %220 = tpu.memref_slice %arg13[%c0_i32_238] : memref<2x!tpu.dma_semaphore, #tpu.memory_space<semaphore_mem>> -> memref<1x!tpu.dma_semaphore, #tpu.memory_space<semaphore_mem>>
    %221 = tpu.memref_squeeze %220 : memref<1x!tpu.dma_semaphore, #tpu.memory_space<semaphore_mem>> -> memref<!tpu.dma_semaphore, #tpu.memory_space<semaphore_mem>>
    tpu.wait_dma2 semaphore(%221 : memref<!tpu.dma_semaphore, #tpu.memory_space<semaphore_mem>>) src(%217 : memref<128x256xbf16, #tpu.memory_space<any>>) dst(%219 : memref<128x256xbf16, #tpu.memory_space<vmem>>)
    %c6_i32 = arith.constant 6 : i32
    %222 = arith.addi %7, %c6_i32 : i32
    %c1_i32_243 = arith.constant 1 : i32
    %223 = arith.addi %222, %c1_i32_243 : i32
    %c1_i32_244 = arith.constant 1 : i32
    %c1_i32_245 = arith.constant 1 : i32
    %c0_i32_246 = arith.constant 0 : i32
    %c0_i32_247 = arith.constant 0 : i32
    %224 = tpu.memref_slice %arg4[%223, %c0_i32_246, %c0_i32_247] : memref<16x128x256xbf16, #tpu.memory_space<any>> -> memref<1x128x256xbf16, #tpu.memory_space<any>>
    %225 = tpu.memref_squeeze %224 : memref<1x128x256xbf16, #tpu.memory_space<any>> -> memref<128x256xbf16, #tpu.memory_space<any>>
    %c0_i32_248 = arith.constant 0 : i32
    %c0_i32_249 = arith.constant 0 : i32
    %226 = tpu.memref_slice %arg12[%c1_i32_244, %c0_i32_248, %c0_i32_249] : memref<2x128x256xbf16, #tpu.memory_space<vmem>> -> memref<1x128x256xbf16, #tpu.memory_space<vmem>>
    %227 = tpu.memref_squeeze %226 : memref<1x128x256xbf16, #tpu.memory_space<vmem>> -> memref<128x256xbf16, #tpu.memory_space<vmem>>
    %228 = tpu.memref_slice %arg13[%c1_i32_245] : memref<2x!tpu.dma_semaphore, #tpu.memory_space<semaphore_mem>> -> memref<1x!tpu.dma_semaphore, #tpu.memory_space<semaphore_mem>>
    %229 = tpu.memref_squeeze %228 : memref<1x!tpu.dma_semaphore, #tpu.memory_space<semaphore_mem>> -> memref<!tpu.dma_semaphore, #tpu.memory_space<semaphore_mem>>
    tpu.enqueue_dma source(%225 : memref<128x256xbf16, #tpu.memory_space<any>>) target(%227 : memref<128x256xbf16, #tpu.memory_space<vmem>>) target_semaphore(%229 : memref<!tpu.dma_semaphore, #tpu.memory_space<semaphore_mem>>)
    %c0_250 = arith.constant 0 : index
    %c0_251 = arith.constant 0 : index
    %230 = vector.load %arg14[%c0_250, %c0_251] : memref<8x256xf32, #tpu.memory_space<vmem>>, vector<8x256xf32>
    %c0_252 = arith.constant 0 : index
    %c256_253 = arith.constant 256 : index
    %231 = vector.load %arg18[%c0_252, %c256_253] : memref<8x512xbf16, #tpu.memory_space<vmem>>, vector<8x128xbf16>
    %c0_254 = arith.constant 0 : index
    %c0_255 = arith.constant 0 : index
    %c0_256 = arith.constant 0 : index
    %232 = vector.load %arg12[%c0_254, %c0_255, %c0_256] : memref<2x128x256xbf16, #tpu.memory_space<vmem>>, vector<1x128x256xbf16>
    %233 = vector.shape_cast %232 : vector<1x128x256xbf16> to vector<128x256xbf16>
    %cst_257 = arith.constant dense<0.000000e+00> : vector<8x256xf32>
    %234 = tpu.matmul %231, %233, %cst_257 {dimension_numbers = #tpu.dot_dimension_numbers<[1], [0], [0], [1], [0, 0, 1, 1], [], []>} : vector<8x128xbf16>, vector<128x256xbf16>, vector<8x256xf32> -> vector<8x256xf32>
    %235 = arith.addf %230, %234 : vector<8x256xf32>
    %c0_258 = arith.constant 0 : index
    %c0_259 = arith.constant 0 : index
    %236 = vector.load %arg14[%c0_258, %c0_259] : memref<8x256xf32, #tpu.memory_space<vmem>>, vector<8x256xf32>
    tpu.vector_store %arg14[%c0_258, %c0_259], %235 {strides = array<i32>} : memref<8x256xf32, #tpu.memory_space<vmem>>, vector<8x256xf32>,
    %c0_i32_260 = arith.constant 0 : i32
    %c1_i32_261 = arith.constant 1 : i32
    %c1_i32_262 = arith.constant 1 : i32
    %c0_i32_263 = arith.constant 0 : i32
    %c0_i32_264 = arith.constant 0 : i32
    %237 = tpu.memref_slice %arg4[%c0_i32_260, %c0_i32_263, %c0_i32_264] : memref<16x128x256xbf16, #tpu.memory_space<any>> -> memref<1x128x256xbf16, #tpu.memory_space<any>>
    %238 = tpu.memref_squeeze %237 : memref<1x128x256xbf16, #tpu.memory_space<any>> -> memref<128x256xbf16, #tpu.memory_space<any>>
    %c0_i32_265 = arith.constant 0 : i32
    %c0_i32_266 = arith.constant 0 : i32
    %239 = tpu.memref_slice %arg12[%c1_i32_261, %c0_i32_265, %c0_i32_266] : memref<2x128x256xbf16, #tpu.memory_space<vmem>> -> memref<1x128x256xbf16, #tpu.memory_space<vmem>>
    %240 = tpu.memref_squeeze %239 : memref<1x128x256xbf16, #tpu.memory_space<vmem>> -> memref<128x256xbf16, #tpu.memory_space<vmem>>
    %241 = tpu.memref_slice %arg13[%c1_i32_262] : memref<2x!tpu.dma_semaphore, #tpu.memory_space<semaphore_mem>> -> memref<1x!tpu.dma_semaphore, #tpu.memory_space<semaphore_mem>>
    %242 = tpu.memref_squeeze %241 : memref<1x!tpu.dma_semaphore, #tpu.memory_space<semaphore_mem>> -> memref<!tpu.dma_semaphore, #tpu.memory_space<semaphore_mem>>
    tpu.wait_dma2 semaphore(%242 : memref<!tpu.dma_semaphore, #tpu.memory_space<semaphore_mem>>) src(%238 : memref<128x256xbf16, #tpu.memory_space<any>>) dst(%240 : memref<128x256xbf16, #tpu.memory_space<vmem>>)
    %c0_267 = arith.constant 0 : index
    %c0_268 = arith.constant 0 : index
    %243 = vector.load %arg14[%c0_267, %c0_268] : memref<8x256xf32, #tpu.memory_space<vmem>>, vector<8x256xf32>
    %c0_269 = arith.constant 0 : index
    %c384_270 = arith.constant 384 : index
    %244 = vector.load %arg18[%c0_269, %c384_270] : memref<8x512xbf16, #tpu.memory_space<vmem>>, vector<8x128xbf16>
    %c1_271 = arith.constant 1 : index
    %c0_272 = arith.constant 0 : index
    %c0_273 = arith.constant 0 : index
    %245 = vector.load %arg12[%c1_271, %c0_272, %c0_273] : memref<2x128x256xbf16, #tpu.memory_space<vmem>>, vector<1x128x256xbf16>
    %246 = vector.shape_cast %245 : vector<1x128x256xbf16> to vector<128x256xbf16>
    %cst_274 = arith.constant dense<0.000000e+00> : vector<8x256xf32>
    %247 = tpu.matmul %244, %246, %cst_274 {dimension_numbers = #tpu.dot_dimension_numbers<[1], [0], [0], [1], [0, 0, 1, 1], [], []>} : vector<8x128xbf16>, vector<128x256xbf16>, vector<8x256xf32> -> vector<8x256xf32>
    %248 = arith.addf %243, %247 : vector<8x256xf32>
    %c0_275 = arith.constant 0 : index
    %c0_276 = arith.constant 0 : index
    %249 = vector.load %arg14[%c0_275, %c0_276] : memref<8x256xf32, #tpu.memory_space<vmem>>, vector<8x256xf32>
    tpu.vector_store %arg14[%c0_275, %c0_276], %248 {strides = array<i32>} : memref<8x256xf32, #tpu.memory_space<vmem>>, vector<8x256xf32>,
    %c0_277 = arith.constant 0 : index
    %c0_278 = arith.constant 0 : index
    %250 = vector.load %arg14[%c0_277, %c0_278] : memref<8x256xf32, #tpu.memory_space<vmem>>, vector<8x256xf32>
    %c0_279 = arith.constant 0 : index
    %c0_280 = arith.constant 0 : index
    %c256_281 = arith.constant 256 : index
    %251 = vector.load %arg5[%c0_279, %c0_280, %c256_281] : memref<1x1x512xf32, #tpu.memory_space<vmem>>, vector<1x1x256xf32>
    %252 = vector.shape_cast %251 : vector<1x1x256xf32> to vector<1x256xf32>
    %253 = vector.broadcast %252 : vector<1x256xf32> to vector<8x256xf32>
    %254 = arith.addf %250, %253 : vector<8x256xf32>
    %cst_282 = arith.constant 0.000000e+00 : f32
    %255 = vector.broadcast %cst_282 : f32 to vector<8x256xf32>
    %256 = arith.maximumf %254, %255 : vector<8x256xf32>
    %257 = arith.truncf %256 : vector<8x256xf32> to vector<8x256xbf16>
    %c0_283 = arith.constant 0 : index
    %c256_284 = arith.constant 256 : index
    %258 = vector.load %arg19[%c0_283, %c256_284] : memref<8x512xbf16, #tpu.memory_space<vmem>>, vector<8x256xbf16>
    tpu.vector_store %arg19[%c0_283, %c256_284], %257 {strides = array<i32>} : memref<8x512xbf16, #tpu.memory_space<vmem>>, vector<8x256xbf16>,
    %c0_i32_285 = arith.constant 0 : i32
    %c0_i32_286 = arith.constant 0 : i32
    %c0_i32_287 = arith.constant 0 : i32
    %c0_i32_288 = arith.constant 0 : i32
    %c0_i32_289 = arith.constant 0 : i32
    %259 = tpu.memref_slice %arg6[%c0_i32_285, %c0_i32_288, %c0_i32_289] : memref<4x256x128xbf16, #tpu.memory_space<any>> -> memref<1x256x128xbf16, #tpu.memory_space<any>>
    %260 = tpu.memref_squeeze %259 : memref<1x256x128xbf16, #tpu.memory_space<any>> -> memref<256x128xbf16, #tpu.memory_space<any>>
    %c0_i32_290 = arith.constant 0 : i32
    %c0_i32_291 = arith.constant 0 : i32
    %261 = tpu.memref_slice %arg15[%c0_i32_286, %c0_i32_290, %c0_i32_291] : memref<2x256x128xbf16, #tpu.memory_space<vmem>> -> memref<1x256x128xbf16, #tpu.memory_space<vmem>>
    %262 = tpu.memref_squeeze %261 : memref<1x256x128xbf16, #tpu.memory_space<vmem>> -> memref<256x128xbf16, #tpu.memory_space<vmem>>
    %263 = tpu.memref_slice %arg16[%c0_i32_287] : memref<2x!tpu.dma_semaphore, #tpu.memory_space<semaphore_mem>> -> memref<1x!tpu.dma_semaphore, #tpu.memory_space<semaphore_mem>>
    %264 = tpu.memref_squeeze %263 : memref<1x!tpu.dma_semaphore, #tpu.memory_space<semaphore_mem>> -> memref<!tpu.dma_semaphore, #tpu.memory_space<semaphore_mem>>
    tpu.wait_dma2 semaphore(%264 : memref<!tpu.dma_semaphore, #tpu.memory_space<semaphore_mem>>) src(%260 : memref<256x128xbf16, #tpu.memory_space<any>>) dst(%262 : memref<256x128xbf16, #tpu.memory_space<vmem>>)
    %c0_i32_292 = arith.constant 0 : i32
    %265 = arith.addi %14, %c0_i32_292 : i32
    %c1_i32_293 = arith.constant 1 : i32
    %266 = arith.addi %265, %c1_i32_293 : i32
    %c1_i32_294 = arith.constant 1 : i32
    %c1_i32_295 = arith.constant 1 : i32
    %c0_i32_296 = arith.constant 0 : i32
    %c0_i32_297 = arith.constant 0 : i32
    %267 = tpu.memref_slice %arg6[%266, %c0_i32_296, %c0_i32_297] : memref<4x256x128xbf16, #tpu.memory_space<any>> -> memref<1x256x128xbf16, #tpu.memory_space<any>>
    %268 = tpu.memref_squeeze %267 : memref<1x256x128xbf16, #tpu.memory_space<any>> -> memref<256x128xbf16, #tpu.memory_space<any>>
    %c0_i32_298 = arith.constant 0 : i32
    %c0_i32_299 = arith.constant 0 : i32
    %269 = tpu.memref_slice %arg15[%c1_i32_294, %c0_i32_298, %c0_i32_299] : memref<2x256x128xbf16, #tpu.memory_space<vmem>> -> memref<1x256x128xbf16, #tpu.memory_space<vmem>>
    %270 = tpu.memref_squeeze %269 : memref<1x256x128xbf16, #tpu.memory_space<vmem>> -> memref<256x128xbf16, #tpu.memory_space<vmem>>
    %271 = tpu.memref_slice %arg16[%c1_i32_295] : memref<2x!tpu.dma_semaphore, #tpu.memory_space<semaphore_mem>> -> memref<1x!tpu.dma_semaphore, #tpu.memory_space<semaphore_mem>>
    %272 = tpu.memref_squeeze %271 : memref<1x!tpu.dma_semaphore, #tpu.memory_space<semaphore_mem>> -> memref<!tpu.dma_semaphore, #tpu.memory_space<semaphore_mem>>
    tpu.enqueue_dma source(%268 : memref<256x128xbf16, #tpu.memory_space<any>>) target(%270 : memref<256x128xbf16, #tpu.memory_space<vmem>>) target_semaphore(%272 : memref<!tpu.dma_semaphore, #tpu.memory_space<semaphore_mem>>)
    %cst_300 = arith.constant 0.000000e+00 : f32
    %273 = vector.broadcast %cst_300 : f32 to vector<8x128xf32>
    %c0_301 = arith.constant 0 : index
    %c0_302 = arith.constant 0 : index
    %274 = vector.load %arg17[%c0_301, %c0_302] : memref<8x128xf32, #tpu.memory_space<vmem>>, vector<8x128xf32>
    tpu.vector_store %arg17[%c0_301, %c0_302], %273 {strides = array<i32>} : memref<8x128xf32, #tpu.memory_space<vmem>>, vector<8x128xf32>,
    %c0_303 = arith.constant 0 : index
    %c0_304 = arith.constant 0 : index
    %275 = vector.load %arg17[%c0_303, %c0_304] : memref<8x128xf32, #tpu.memory_space<vmem>>, vector<8x128xf32>
    %c0_305 = arith.constant 0 : index
    %c0_306 = arith.constant 0 : index
    %276 = vector.load %arg19[%c0_305, %c0_306] : memref<8x512xbf16, #tpu.memory_space<vmem>>, vector<8x256xbf16>
    %c0_307 = arith.constant 0 : index
    %c0_308 = arith.constant 0 : index
    %c0_309 = arith.constant 0 : index
    %277 = vector.load %arg15[%c0_307, %c0_308, %c0_309] : memref<2x256x128xbf16, #tpu.memory_space<vmem>>, vector<1x256x128xbf16>
    %278 = vector.shape_cast %277 : vector<1x256x128xbf16> to vector<256x128xbf16>
    %cst_310 = arith.constant dense<0.000000e+00> : vector<8x128xf32>
    %279 = tpu.matmul %276, %278, %cst_310 {dimension_numbers = #tpu.dot_dimension_numbers<[1], [0], [0], [1], [0, 0, 1, 1], [], []>} : vector<8x256xbf16>, vector<256x128xbf16>, vector<8x128xf32> -> vector<8x128xf32>
    %280 = arith.addf %275, %279 : vector<8x128xf32>
    %c0_311 = arith.constant 0 : index
    %c0_312 = arith.constant 0 : index
    %281 = vector.load %arg17[%c0_311, %c0_312] : memref<8x128xf32, #tpu.memory_space<vmem>>, vector<8x128xf32>
    tpu.vector_store %arg17[%c0_311, %c0_312], %280 {strides = array<i32>} : memref<8x128xf32, #tpu.memory_space<vmem>>, vector<8x128xf32>,
    %c0_i32_313 = arith.constant 0 : i32
    %c1_i32_314 = arith.constant 1 : i32
    %c1_i32_315 = arith.constant 1 : i32
    %c0_i32_316 = arith.constant 0 : i32
    %c0_i32_317 = arith.constant 0 : i32
    %282 = tpu.memref_slice %arg6[%c0_i32_313, %c0_i32_316, %c0_i32_317] : memref<4x256x128xbf16, #tpu.memory_space<any>> -> memref<1x256x128xbf16, #tpu.memory_space<any>>
    %283 = tpu.memref_squeeze %282 : memref<1x256x128xbf16, #tpu.memory_space<any>> -> memref<256x128xbf16, #tpu.memory_space<any>>
    %c0_i32_318 = arith.constant 0 : i32
    %c0_i32_319 = arith.constant 0 : i32
    %284 = tpu.memref_slice %arg15[%c1_i32_314, %c0_i32_318, %c0_i32_319] : memref<2x256x128xbf16, #tpu.memory_space<vmem>> -> memref<1x256x128xbf16, #tpu.memory_space<vmem>>
    %285 = tpu.memref_squeeze %284 : memref<1x256x128xbf16, #tpu.memory_space<vmem>> -> memref<256x128xbf16, #tpu.memory_space<vmem>>
    %286 = tpu.memref_slice %arg16[%c1_i32_315] : memref<2x!tpu.dma_semaphore, #tpu.memory_space<semaphore_mem>> -> memref<1x!tpu.dma_semaphore, #tpu.memory_space<semaphore_mem>>
    %287 = tpu.memref_squeeze %286 : memref<1x!tpu.dma_semaphore, #tpu.memory_space<semaphore_mem>> -> memref<!tpu.dma_semaphore, #tpu.memory_space<semaphore_mem>>
    tpu.wait_dma2 semaphore(%287 : memref<!tpu.dma_semaphore, #tpu.memory_space<semaphore_mem>>) src(%283 : memref<256x128xbf16, #tpu.memory_space<any>>) dst(%285 : memref<256x128xbf16, #tpu.memory_space<vmem>>)
    %c0_320 = arith.constant 0 : index
    %c0_321 = arith.constant 0 : index
    %288 = vector.load %arg17[%c0_320, %c0_321] : memref<8x128xf32, #tpu.memory_space<vmem>>, vector<8x128xf32>
    %c0_322 = arith.constant 0 : index
    %c256_323 = arith.constant 256 : index
    %289 = vector.load %arg19[%c0_322, %c256_323] : memref<8x512xbf16, #tpu.memory_space<vmem>>, vector<8x256xbf16>
    %c1_324 = arith.constant 1 : index
    %c0_325 = arith.constant 0 : index
    %c0_326 = arith.constant 0 : index
    %290 = vector.load %arg15[%c1_324, %c0_325, %c0_326] : memref<2x256x128xbf16, #tpu.memory_space<vmem>>, vector<1x256x128xbf16>
    %291 = vector.shape_cast %290 : vector<1x256x128xbf16> to vector<256x128xbf16>
    %cst_327 = arith.constant dense<0.000000e+00> : vector<8x128xf32>
    %292 = tpu.matmul %289, %291, %cst_327 {dimension_numbers = #tpu.dot_dimension_numbers<[1], [0], [0], [1], [0, 0, 1, 1], [], []>} : vector<8x256xbf16>, vector<256x128xbf16>, vector<8x128xf32> -> vector<8x128xf32>
    %293 = arith.addf %288, %292 : vector<8x128xf32>
    %c0_328 = arith.constant 0 : index
    %c0_329 = arith.constant 0 : index
    %294 = vector.load %arg17[%c0_328, %c0_329] : memref<8x128xf32, #tpu.memory_space<vmem>>, vector<8x128xf32>
    tpu.vector_store %arg17[%c0_328, %c0_329], %293 {strides = array<i32>} : memref<8x128xf32, #tpu.memory_space<vmem>>, vector<8x128xf32>,
    %c0_330 = arith.constant 0 : index
    %c0_331 = arith.constant 0 : index
    %295 = vector.load %arg17[%c0_330, %c0_331] : memref<8x128xf32, #tpu.memory_space<vmem>>, vector<8x128xf32>
    %c0_332 = arith.constant 0 : index
    %c0_333 = arith.constant 0 : index
    %c0_334 = arith.constant 0 : index
    %296 = vector.load %arg7[%c0_332, %c0_333, %c0_334] : memref<1x1x128xf32, #tpu.memory_space<vmem>>, vector<1x1x128xf32>
    %297 = vector.shape_cast %296 : vector<1x1x128xf32> to vector<1x128xf32>
    %298 = vector.broadcast %297 : vector<1x128xf32> to vector<8x128xf32>
    %299 = arith.addf %295, %298 : vector<8x128xf32>
    %cst_335 = arith.constant 0.000000e+00 : f32
    %300 = vector.broadcast %cst_335 : f32 to vector<8x128xf32>
    %301 = arith.cmpf oge, %299, %300 : vector<8x128xf32>
    %cst_336 = arith.constant 1.000000e-01 : f32
    %302 = vector.broadcast %cst_336 : f32 to vector<8x128xf32>
    %303 = arith.mulf %302, %299 : vector<8x128xf32>
    %304 = arith.select %301, %299, %303 : vector<8x128xi1>, vector<8x128xf32>
    %c0_337 = arith.constant 0 : index
    %c0_338 = arith.constant 0 : index
    %c0_339 = arith.constant 0 : index
    %305 = vector.load %arg8[%c0_337, %c0_338, %c0_339] : memref<1x8x128xf32, #tpu.memory_space<vmem>>, vector<1x8x128xf32>
    %306 = vector.shape_cast %305 : vector<1x8x128xf32> to vector<8x128xf32>
    %307 = vector.shape_cast %304 : vector<8x128xf32> to vector<1x8x128xf32>
    tpu.vector_store %arg8[%c0_337, %c0_338, %c0_339], %307 {strides = array<i32>} : memref<1x8x128xf32, #tpu.memory_space<vmem>>, vector<1x8x128xf32>,
    return
  }
  func.func @transform_0(%arg0: i32) -> (i32, i32) {
    %c0_i32 = arith.constant 0 : i32
    %c0_i32_0 = arith.constant 0 : i32
    %c0_i32_1 = arith.constant 0 : i32
    return %c0_i32, %c0_i32_0 : i32, i32
  }
  func.func @transform_2(%arg0: i32) -> (i32, i32, i32) {
    %c0_i32 = arith.constant 0 : i32
    %c0_i32_0 = arith.constant 0 : i32
    %c0_i32_1 = arith.constant 0 : i32
    return %arg0, %c0_i32, %c0_i32_0 : i32, i32, i32
  }
  func.func @transform_4(%arg0: i32) -> (i32, i32, i32) {
    %c0_i32 = arith.constant 0 : i32
    %c0_i32_0 = arith.constant 0 : i32
    %c0_i32_1 = arith.constant 0 : i32
    return %arg0, %c0_i32, %c0_i32_0 : i32, i32, i32
  }
  func.func @transform_6(%arg0: i32) -> (i32, i32, i32) {
    %c0_i32 = arith.constant 0 : i32
    %c0_i32_0 = arith.constant 0 : i32
    %c0_i32_1 = arith.constant 0 : i32
    return %arg0, %c0_i32, %c0_i32_0 : i32, i32, i32
  }
  func.func @transform_7(%arg0: i32) -> (i32, i32, i32) {
    %c0_i32 = arith.constant 0 : i32
    %c0_i32_0 = arith.constant 0 : i32
    %c0_i32_1 = arith.constant 0 : i32
    return %arg0, %c0_i32, %c0_i32_0 : i32, i32, i32
  }
}

</mosaic_0001>

<llo_original>
// kernel: squeeze.4
$region0: #{squeeze.4}
  %s0 = inlined_call_operand.vmem [shape: f32[1,2,32], index: 0, kind: input, shape index: {}]
  %s1 = inlined_call_operand.hbm [shape: f32[2,4,8], index: 1, kind: output, shape index: {}]
  $region1: #{squeeze.4} parent=0
    #allocation0 [shape = 'u8[4096]{0}', space=vmem, size = 0x1000, scoped, tag = 'operand span for operand 1']
    #allocation1 [shape = 's32[1]{0}', space=sflag, size = 0x4, scoped, tag = 'scoped memory for squeeze.4']
    #allocation2 [shape = 'u8[8192]{0}', space=vmem, size = 0x2000, scoped, tag = 'scoped mem for output reshape']
    #allocation3 [shape = 'u8[4096]{0}', space=vmem, size = 0x1000, scoped, tag = 'scoped mem for input reshape']
    %2 = vsyncpa [#allocation1], 0
    %s4 = ssub.s32 4, 1
    %v5 = vld [vmem:[%s0] sm:%s4]
    %6 = vst [vmem:[#allocation3] sm:%s4] %v5
    %v7 = vld [vmem:[#allocation3] sm:$0x3]
    %vm8 = vcmask 64512
    %9 = vst.msk [vmem:[#allocation2] ss:$8 sm:$0x3] %vm8, %v7
    %v10 = vld [vmem:[#allocation3] sm:$0x3]
    %11 = vrot.lane.b32.xlu0 %v10, 120
    %v12 = vpop.permute.xlu0 %11
    %vm13 = vcmask 64512
    %s14 = scalar_lea.vmem [#allocation2], 1
    %15 = vst.msk [vmem:[%s14] ss:$8 sm:$0x3] %vm13, %v12
    %v16 = vld [vmem:[#allocation3] sm:$0x3]
    %17 = vrot.lane.b32.xlu0 %v16, 112
    %v18 = vpop.permute.xlu0 %17
    %vm19 = vcmask 64512
    %s20 = scalar_lea.vmem [#allocation2], 2
    %21 = vst.msk [vmem:[%s20] ss:$8 sm:$0x3] %vm19, %v18
    %v22 = vld [vmem:[#allocation3] sm:$0x3]
    %23 = vrot.lane.b32.xlu0 %v22, 104
    %v24 = vpop.permute.xlu0 %23
    %vm25 = vcmask 64512
    %s26 = scalar_lea.vmem [#allocation2], 3
    %27 = vst.msk [vmem:[%s26] ss:$8 sm:$0x3] %vm25, %v24
    %s29 = ssub.s32 16, 1
    %v30 = vld [vmem:[#allocation2] sm:%s29]
    %s32 = ssub.s32 16, 1
    %33 = vst [vmem:[#allocation0] sm:%s32] %v30
    %s34 = scalar_lea.vmem [#allocation2], 8
    %v35 = vld [vmem:[%s34] sm:%s29]
    %s37 = ssub.s32 16, 1
    %s38 = scalar_lea.vmem [#allocation0], 4
    %39 = vst [vmem:[%s38] sm:%s37] %v35
    %41 = vsyncadd [#allocation1], 0
    %s43 = sshll.u32 [#allocation0], 4
    %s44 = int_to_ptr.vmem [resolvable:$true] %s43
    %s45 = sshll.u32 %s1, 4
    %s46 = int_to_ptr.hbm [resolvable:$true] %s45
    %48 = dma.vmem_to_hbm [thread:$0]  %s44, 128, %s46, [#allocation1]
    %50 = dma.done [#allocation1], 128
    %51 = vsyncpa [#allocation1], 1

// kernel: squeeze.5
$region0: #{squeeze.5}
  %s0 = inlined_call_operand.vmem [shape: f32[1,2,15], index: 0, kind: input, shape index: {}]
  %s1 = inlined_call_operand.vmem [shape: f32[2,3,5], index: 1, kind: output, shape index: {}]
  $region1: #{squeeze.5} parent=0
    #allocation0 [shape = 'u8[8192]{0}', space=vmem, size = 0x2000, scoped, tag = 'scoped mem for output reshape']
    #allocation1 [shape = 'u8[4096]{0}', space=vmem, size = 0x1000, scoped, tag = 'scoped mem for input reshape']
    %s3 = ssub.s32 4, 1
    %v4 = vld [vmem:[%s0] sm:%s3]
    %5 = vst [vmem:[#allocation1] sm:%s3] %v4
    %v6 = vld [vmem:[#allocation1] sm:$0x3]
    %vm7 = vcmask 39936
    %8 = vst.msk [vmem:[#allocation0] ss:$8 sm:$0x3] %vm7, %v6
    %v9 = vld [vmem:[#allocation1] sm:$0x3]
    %10 = vrot.lane.b32.xlu0 %v9, 123
    %v11 = vpop.permute.xlu0 %10
    %vm12 = vcmask 39936
    %s13 = scalar_lea.vmem [#allocation0], 1
    %14 = vst.msk [vmem:[%s13] ss:$8 sm:$0x3] %vm12, %v11
    %v15 = vld [vmem:[#allocation1] sm:$0x3]
    %16 = vrot.lane.b32.xlu0 %v15, 118
    %v17 = vpop.permute.xlu0 %16
    %vm18 = vcmask 39936
    %s19 = scalar_lea.vmem [#allocation0], 2
    %20 = vst.msk [vmem:[%s19] ss:$8 sm:$0x3] %vm18, %v17
    %s22 = ssub.s32 16, 1
    %v23 = vld [vmem:[#allocation0] sm:%s22]
    %s25 = ssub.s32 16, 1
    %26 = vst [vmem:[%s1] sm:%s25] %v23
    %s27 = scalar_lea.vmem [#allocation0], 8
    %v28 = vld [vmem:[%s27] sm:%s22]
    %s30 = ssub.s32 16, 1
    %s31 = scalar_lea.vmem %s1, 4
    %32 = vst [vmem:[%s31] sm:%s30] %v28

// kernel: hyper_network_forward.2
$region0: #{hyper_network_forward.2}
  #allocation0 [shape = 'u32[]', space=smem, size = 0x4, offset = 0x4, fixed_abs, tag = 'smem constant byte address 0x4 - core index']
  #allocation1 [shape = 'u32[72,128]{1,0:T(1,128)}', space=vmem, size = 0x9000, scoped, tag = 'internal scratch']
  #allocation2 [shape = 'bf16[2,128,128]{2,1,0:T(8,128)(2,1)}', space=vmem, size = 0x10000, scoped, tag = 'scratch operand']
  #allocation3 [shape = 's32[2]{0}', space=sflag, size = 0x8, scoped, tag = 'scratch operand']
  #allocation4 [shape = 'f32[8,128]{1,0:T(8,128)}', space=vmem, size = 0x1000, scoped, tag = 'scratch operand']
  #allocation5 [shape = 'bf16[2,128,128]{2,1,0:T(8,128)(2,1)}', space=vmem, size = 0x10000, scoped, tag = 'scratch operand']
  #allocation6 [shape = 's32[2]{0}', space=sflag, size = 0x8, scoped, tag = 'scratch operand']
  #allocation7 [shape = 'f32[8,128]{1,0:T(8,128)}', space=vmem, size = 0x1000, scoped, tag = 'scratch operand']
  #allocation8 [shape = 'bf16[8,128]{1,0:T(8,128)(2,1)}', space=vmem, size = 0x800, scoped, tag = 'scratch operand']
  #allocation9 [shape = 's32[]', space=sflag, size = 0x4, offset = 0, fixed_abs, tag = 'sflag constant byte address 0x0 - dummy sync flag']
  #allocation10 [shape = 's32[]', space=sflag, size = 0x4, offset = 0, fixed_abs, tag = 'sflag constant byte address 0x0 - dummy sync flag']
  #allocation11 [shape = 'u32[]', space=smem, size = 0x4, offset = 0x44, fixed_abs, tag = 'smem constant byte address 0x44 - assertion arg 0']
  #allocation12 [shape = 'u32[]', space=smem, size = 0x4, offset = 0x48, fixed_abs, tag = 'smem constant byte address 0x48 - assertion arg 1']
  #allocation13 [shape = 's32[]', space=sflag, size = 0x4, offset = 0, fixed_abs, tag = 'sflag constant byte address 0x0 - dummy sync flag']
  #allocation14 [shape = 's32[]', space=sflag, size = 0x4, offset = 0, fixed_abs, tag = 'sflag constant byte address 0x0 - dummy sync flag']
  %s0 = inlined_call_operand.vmem [shape: bf16[8,128], index: 0, kind: input, shape index: {}]
  %s1 = inlined_call_operand.hbm [shape: bf16[1,128,128], index: 1, kind: input, shape index: {}]
  %s2 = inlined_call_operand.vmem [shape: f32[1,1,128], index: 2, kind: input, shape index: {}]
  %s3 = inlined_call_operand.hbm [shape: bf16[1,128,128], index: 3, kind: input, shape index: {}]
  %s4 = inlined_call_operand.vmem [shape: f32[1,1,128], index: 4, kind: input, shape index: {}]
  %s5 = inlined_call_operand.vmem [shape: bf16[1,8,128], index: 5, kind: output, shape index: {}]
  %s6 = sld [smem:[#allocation0]]
  $region30: #{hyper_network_forward.2} parent=0
    _
  %s8 = ssub.s32 1, %s6
  %s9 = scalar_select 0, %s8, %s6
  // Predicated region
  $region2: #{hyper_network_forward.2} parent=0 // pred_check
    _
  $region3: #{hyper_network_forward.2} parent=0 // pred_check_branch
    %11 = sbr.rel (0) target = $region5
  $region4: #{hyper_network_forward.2} parent=0 // pred_region
    _
  $region5: #{hyper_network_forward.2} parent=0 // pred_fallthru
    _
  // Predicated region
  $region6: #{hyper_network_forward.2} parent=0 // pred_check
    _
  $region7: #{hyper_network_forward.2} parent=0 // pred_check_branch
    %13 = sbr.rel (0) target = $region9
  $region8: #{hyper_network_forward.2} parent=0 // pred_region
    _
  $region9: #{hyper_network_forward.2} parent=0 // pred_fallthru
    _
  // Predicated region
  $region10: #{hyper_network_forward.2} parent=0 // pred_check
    _
  $region11: #{hyper_network_forward.2} parent=0 // pred_check_branch
    %15 = sbr.rel (0) target = $region13
  $region12: #{hyper_network_forward.2} parent=0 // pred_region
    _
  $region13: #{hyper_network_forward.2} parent=0 // pred_fallthru
    _
  %s16 = smul.u32 0, 16
  %s17 = smul.addr %s16, 4
  %s18 = scalar_lea.hbm %s1, %s17
  // Predicated region
  $region14: #{hyper_network_forward.2} parent=0 // pred_check
    _
  $region15: #{hyper_network_forward.2} parent=0 // pred_check_branch
    %20 = sbr.rel target = $region17
  $region16: #{hyper_network_forward.2} parent=0 // pred_region
    %21 = sst [smem:[#allocation11]] [#allocation10]
    %22 = sst [smem:[#allocation12]] [#allocation9]
  $region17: #{hyper_network_forward.2} parent=0 // pred_fallthru
    _
  %24 = shalt.err (0)
  %s26 = sshll.u32 %s18, 4
  %s27 = int_to_ptr.hbm [resolvable:$true] %s26
  %s28 = sshll.u32 [#allocation2], 4
  %s29 = int_to_ptr.vmem [resolvable:$true] %s28
  %31 = dma.hbm_to_vmem [thread:$0]  %s27, 1024, %s29, [#allocation3]
  %s32 = smul.addr %s16, 4
  %s33 = scalar_lea.hbm %s3, %s32
  // Predicated region
  $region18: #{hyper_network_forward.2} parent=0 // pred_check
    _
  $region19: #{hyper_network_forward.2} parent=0 // pred_check_branch
    %35 = sbr.rel target = $region21
  $region20: #{hyper_network_forward.2} parent=0 // pred_region
    %36 = sst [smem:[#allocation11]] [#allocation14]
    %37 = sst [smem:[#allocation12]] [#allocation13]
  $region21: #{hyper_network_forward.2} parent=0 // pred_fallthru
    _
  %39 = shalt.err (0)
  %s41 = sshll.u32 %s33, 4
  %s42 = int_to_ptr.hbm [resolvable:$true] %s41
  %s43 = sshll.u32 [#allocation5], 4
  %s44 = int_to_ptr.vmem [resolvable:$true] %s43
  %46 = dma.hbm_to_vmem [thread:$0]  %s42, 1024, %s44, [#allocation6]
  %s47 = smul.u32 4, 16
  %s48 = smul.u32 %s47, 1
  %s49 = sshll.u32 %s48, 4
  %50 = dma.done [#allocation3], %s49
  %51 = vst [vmem:[#allocation4] sm:$0xff] 0.0
  %v52 = vld [vmem:[#allocation4] sm:$0xff]
  %v53 = vld [vmem:[%s0] sm:$0xf]
  %v54 = vld [vmem:[#allocation2] sm:$0xf]
  %v55 = vld [vmem:[#allocation2 + $0x4] sm:$0xf]
  %v56 = vld [vmem:[#allocation2 + $0x8] sm:$0xf]
  %v57 = vld [vmem:[#allocation2 + $0xc] sm:$0xf]
  %v58 = vld [vmem:[#allocation2 + $0x10] sm:$0xf]
  %v59 = vld [vmem:[#allocation2 + $0x14] sm:$0xf]
  %v60 = vld [vmem:[#allocation2 + $0x18] sm:$0xf]
  %v61 = vld [vmem:[#allocation2 + $0x1c] sm:$0xf]
  %v62 = vld [vmem:[#allocation2 + $0x20] sm:$0xf]
  %v63 = vld [vmem:[#allocation2 + $0x24] sm:$0xf]
  %v64 = vld [vmem:[#allocation2 + $0x28] sm:$0xf]
  %v65 = vld [vmem:[#allocation2 + $0x2c] sm:$0xf]
  %v66 = vld [vmem:[#allocation2 + $0x30] sm:$0xf]
  %v67 = vld [vmem:[#allocation2 + $0x34] sm:$0xf]
  %v68 = vld [vmem:[#allocation2 + $0x38] sm:$0xf]
  %v69 = vld [vmem:[#allocation2 + $0x3c] sm:$0xf]
  %v86 = vunpack.c.l.b16 %v54
  %v87 = vunpack.c.l.b16 %v55
  %v88 = vunpack.c.l.b16 %v56
  %v89 = vunpack.c.l.b16 %v57
  %v90 = vunpack.c.l.b16 %v58
  %v91 = vunpack.c.l.b16 %v59
  %v92 = vunpack.c.l.b16 %v60
  %v93 = vunpack.c.l.b16 %v61
  %v94 = vunpack.c.l.b16 %v62
  %v95 = vunpack.c.l.b16 %v63
  %v96 = vunpack.c.l.b16 %v64
  %v97 = vunpack.c.l.b16 %v65
  %v98 = vunpack.c.l.b16 %v66
  %v99 = vunpack.c.l.b16 %v67
  %v100 = vunpack.c.l.b16 %v68
  %v101 = vunpack.c.l.b16 %v69
  %v102 = vpack.c.b16 %v87, %v86
  %v103 = vpack.c.b16 %v89, %v88
  %v104 = vpack.c.b16 %v91, %v90
  %v105 = vpack.c.b16 %v93, %v92
  %v106 = vpack.c.b16 %v95, %v94
  %v107 = vpack.c.b16 %v97, %v96
  %v108 = vpack.c.b16 %v99, %v98
  %v109 = vpack.c.b16 %v101, %v100
  %118 = vmatpush.bf16.msra.mxu0 %v109
  %119 = vmatpush.bf16.msra.mxu0 %v108
  %120 = vmatpush.bf16.msra.mxu0 %v107
  %121 = vmatpush.bf16.msra.mxu0 %v106
  %122 = vmatpush.bf16.msra.mxu0 %v105
  %123 = vmatpush.bf16.msra.mxu0 %v104
  %124 = vmatpush.bf16.msra.mxu0 %v103
  %125 = vmatpush.bf16.msra.mxu0 %v102
  %126 = vmatmul.bf16.gmra.mxu0 %v53
  %v127 = vpop.f32.mrf.mxu0
  %v128 = vadd.f32 0.0, %v127
  %v129 = vpop.f32.mrf.mxu0
  %130 = vdwg.mxu0
  %v131 = vadd.f32 %v52, %v128
  %132 = vst [vmem:[#allocation4] sm:$0xff] %v131
  %v133 = vld [vmem:[#allocation4] sm:$0xff]
  %v134 = vld [vmem:[%s2] sm:$0x1]
  %v136 = vperm.slane %v134, 0
  %v138 = vadd.f32 %v133, %v136
  %v139 = vmax.f32 %v138, 0.0
  %v140 = vpack.c.bf16 %v139, %v139
  %141 = vst [vmem:[#allocation8] sm:$0xf] %v140
  %s142 = sshll.u32 %s48, 4
  %143 = dma.done [#allocation6], %s142
  %144 = vst [vmem:[#allocation7] sm:$0xff] 0.0
  %v145 = vld [vmem:[#allocation7] sm:$0xff]
  %v146 = vld [vmem:[#allocation8] sm:$0xf]
  %v147 = vld [vmem:[#allocation5] sm:$0xf]
  %v148 = vld [vmem:[#allocation5 + $0x4] sm:$0xf]
  %v149 = vld [vmem:[#allocation5 + $0x8] sm:$0xf]
  %v150 = vld [vmem:[#allocation5 + $0xc] sm:$0xf]
  %v151 = vld [vmem:[#allocation5 + $0x10] sm:$0xf]
  %v152 = vld [vmem:[#allocation5 + $0x14] sm:$0xf]
  %v153 = vld [vmem:[#allocation5 + $0x18] sm:$0xf]
  %v154 = vld [vmem:[#allocation5 + $0x1c] sm:$0xf]
  %v155 = vld [vmem:[#allocation5 + $0x20] sm:$0xf]
  %v156 = vld [vmem:[#allocation5 + $0x24] sm:$0xf]
  %v157 = vld [vmem:[#allocation5 + $0x28] sm:$0xf]
  %v158 = vld [vmem:[#allocation5 + $0x2c] sm:$0xf]
  %v159 = vld [vmem:[#allocation5 + $0x30] sm:$0xf]
  %v160 = vld [vmem:[#allocation5 + $0x34] sm:$0xf]
  %v161 = vld [vmem:[#allocation5 + $0x38] sm:$0xf]
  %v162 = vld [vmem:[#allocation5 + $0x3c] sm:$0xf]
  %v179 = vunpack.c.l.b16 %v147
  %v180 = vunpack.c.l.b16 %v148
  %v181 = vunpack.c.l.b16 %v149
  %v182 = vunpack.c.l.b16 %v150
  %v183 = vunpack.c.l.b16 %v151
  %v184 = vunpack.c.l.b16 %v152
  %v185 = vunpack.c.l.b16 %v153
  %v186 = vunpack.c.l.b16 %v154
  %v187 = vunpack.c.l.b16 %v155
  %v188 = vunpack.c.l.b16 %v156
  %v189 = vunpack.c.l.b16 %v157
  %v190 = vunpack.c.l.b16 %v158
  %v191 = vunpack.c.l.b16 %v159
  %v192 = vunpack.c.l.b16 %v160
  %v193 = vunpack.c.l.b16 %v161
  %v194 = vunpack.c.l.b16 %v162
  %v195 = vpack.c.b16 %v180, %v179
  %v196 = vpack.c.b16 %v182, %v181
  %v197 = vpack.c.b16 %v184, %v183
  %v198 = vpack.c.b16 %v186, %v185
  %v199 = vpack.c.b16 %v188, %v187
  %v200 = vpack.c.b16 %v190, %v189
  %v201 = vpack.c.b16 %v192, %v191
  %v202 = vpack.c.b16 %v194, %v193
  %211 = vmatpush.bf16.msra.mxu0 %v202
  %212 = vmatpush.bf16.msra.mxu0 %v201
  %213 = vmatpush.bf16.msra.mxu0 %v200
  %214 = vmatpush.bf16.msra.mxu0 %v199
  %215 = vmatpush.bf16.msra.mxu0 %v198
  %216 = vmatpush.bf16.msra.mxu0 %v197
  %217 = vmatpush.bf16.msra.mxu0 %v196
  %218 = vmatpush.bf16.msra.mxu0 %v195
  %219 = vmatmul.bf16.gmra.mxu0 %v146
  %v220 = vpop.f32.mrf.mxu0
  %v221 = vadd.f32 0.0, %v220
  %v222 = vpop.f32.mrf.mxu0
  %223 = vdwg.mxu0
  %v224 = vadd.f32 %v145, %v221
  %225 = vst [vmem:[#allocation7] sm:$0xff] %v224
  %v226 = vld [vmem:[#allocation7] sm:$0xff]
  %v227 = vld [vmem:[%s4] sm:$0x1]
  %v229 = vperm.slane %v227, 0
  %v231 = vadd.f32 %v226, %v229
  %v232 = vmax.f32 %v231, 0.0
  %v233 = vpack.c.bf16 %v232, %v232
  %234 = vst [vmem:[%s5] sm:$0xf] %v233
  // Predicated region
  $region22: #{hyper_network_forward.2} parent=0 // pred_check
    _
  $region23: #{hyper_network_forward.2} parent=0 // pred_check_branch
    %236 = sbr.rel (0) target = $region25
  $region24: #{hyper_network_forward.2} parent=0 // pred_region
    _
  $region25: #{hyper_network_forward.2} parent=0 // pred_fallthru
    _
  // Predicated region
  $region26: #{hyper_network_forward.2} parent=0 // pred_check
    _
  $region27: #{hyper_network_forward.2} parent=0 // pred_check_branch
    %238 = sbr.rel (0) target = $region29
  $region28: #{hyper_network_forward.2} parent=0 // pred_region
    _
  $region29: #{hyper_network_forward.2} parent=0 // pred_fallthru
    _
  %239 = vsyncmov [#allocation3]
  %s240 = vpop.sfrf %239
  %p241 = scmp.eq.s32.totalorder %s240, 0
  %p242 = pneg %p241
  %244 = shalt.err (%p242)
  %s245 = scalar_lea.sflag [#allocation3], 1
  %246 = vsyncmov %s245
  %s247 = vpop.sfrf %246
  %p248 = scmp.eq.s32.totalorder %s247, 0
  %p249 = pneg %p248
  %251 = shalt.err (%p249)
  %252 = vsyncmov [#allocation6]
  %s253 = vpop.sfrf %252
  %p254 = scmp.eq.s32.totalorder %s253, 0
  %p255 = pneg %p254
  %257 = shalt.err (%p255)
  %s258 = scalar_lea.sflag [#allocation6], 1
  %259 = vsyncmov %s258
  %s260 = vpop.sfrf %259
  %p261 = scmp.eq.s32.totalorder %s260, 0
  %p262 = pneg %p261
  %264 = shalt.err (%p262)

// kernel: hyper_network_forward.3
$region0: #{hyper_network_forward.3}
  #allocation0 [shape = 'u32[]', space=smem, size = 0x4, offset = 0x4, fixed_abs, tag = 'smem constant byte address 0x4 - core index']
  #allocation1 [shape = 'u32[72,128]{1,0:T(1,128)}', space=vmem, size = 0x9000, scoped, tag = 'internal scratch']
  #allocation2 [shape = 'bf16[2,128,256]{2,1,0:T(8,128)(2,1)}', space=vmem, size = 0x20000, scoped, tag = 'scratch operand']
  #allocation3 [shape = 's32[2]{0}', space=sflag, size = 0x8, scoped, tag = 'scratch operand']
  #allocation4 [shape = 'f32[8,256]{1,0:T(8,128)}', space=vmem, size = 0x2000, scoped, tag = 'scratch operand']
  #allocation5 [shape = 'bf16[2,128,256]{2,1,0:T(8,128)(2,1)}', space=vmem, size = 0x20000, scoped, tag = 'scratch operand']
  #allocation6 [shape = 's32[2]{0}', space=sflag, size = 0x8, scoped, tag = 'scratch operand']
  #allocation7 [shape = 'f32[8,256]{1,0:T(8,128)}', space=vmem, size = 0x2000, scoped, tag = 'scratch operand']
  #allocation8 [shape = 'bf16[2,256,128]{2,1,0:T(8,128)(2,1)}', space=vmem, size = 0x20000, scoped, tag = 'scratch operand']
  #allocation9 [shape = 's32[2]{0}', space=sflag, size = 0x8, scoped, tag = 'scratch operand']
  #allocation10 [shape = 'f32[8,128]{1,0:T(8,128)}', space=vmem, size = 0x1000, scoped, tag = 'scratch operand']
  #allocation11 [shape = 'bf16[8,512]{1,0:T(8,128)(2,1)}', space=vmem, size = 0x2000, scoped, tag = 'scratch operand']
  #allocation12 [shape = 'bf16[8,512]{1,0:T(8,128)(2,1)}', space=vmem, size = 0x2000, scoped, tag = 'scratch operand']
  #allocation15 [shape = 's32[]', space=sflag, size = 0x4, offset = 0, fixed_abs, tag = 'sflag constant byte address 0x0 - dummy sync flag']
  #allocation16 [shape = 's32[]', space=sflag, size = 0x4, offset = 0, fixed_abs, tag = 'sflag constant byte address 0x0 - dummy sync flag']
  #allocation17 [shape = 'u32[]', space=smem, size = 0x4, offset = 0x44, fixed_abs, tag = 'smem constant byte address 0x44 - assertion arg 0']
  #allocation18 [shape = 'u32[]', space=smem, size = 0x4, offset = 0x48, fixed_abs, tag = 'smem constant byte address 0x48 - assertion arg 1']
  #allocation19 [shape = 's32[]', space=sflag, size = 0x4, offset = 0, fixed_abs, tag = 'sflag constant byte address 0x0 - dummy sync flag']
  #allocation20 [shape = 's32[]', space=sflag, size = 0x4, offset = 0, fixed_abs, tag = 'sflag constant byte address 0x0 - dummy sync flag']
  #allocation21 [shape = 's32[]', space=sflag, size = 0x4, offset = 0, fixed_abs, tag = 'sflag constant byte address 0x0 - dummy sync flag']
  #allocation22 [shape = 's32[]', space=sflag, size = 0x4, offset = 0, fixed_abs, tag = 'sflag constant byte address 0x0 - dummy sync flag']
  #allocation23 [shape = 's32[]', space=sflag, size = 0x4, offset = 0, fixed_abs, tag = 'sflag constant byte address 0x0 - dummy sync flag']
  #allocation24 [shape = 's32[]', space=sflag, size = 0x4, offset = 0, fixed_abs, tag = 'sflag constant byte address 0x0 - dummy sync flag']
  #allocation25 [shape = 's32[]', space=sflag, size = 0x4, offset = 0, fixed_abs, tag = 'sflag constant byte address 0x0 - dummy sync flag']
  #allocation26 [shape = 's32[]', space=sflag, size = 0x4, offset = 0, fixed_abs, tag = 'sflag constant byte address 0x0 - dummy sync flag']
  #allocation27 [shape = 's32[]', space=sflag, size = 0x4, offset = 0, fixed_abs, tag = 'sflag constant byte address 0x0 - dummy sync flag']
  #allocation28 [shape = 's32[]', space=sflag, size = 0x4, offset = 0, fixed_abs, tag = 'sflag constant byte address 0x0 - dummy sync flag']
  #allocation29 [shape = 's32[]', space=sflag, size = 0x4, offset = 0, fixed_abs, tag = 'sflag constant byte address 0x0 - dummy sync flag']
  #allocation30 [shape = 's32[]', space=sflag, size = 0x4, offset = 0, fixed_abs, tag = 'sflag constant byte address 0x0 - dummy sync flag']
  #allocation31 [shape = 's32[]', space=sflag, size = 0x4, offset = 0, fixed_abs, tag = 'sflag constant byte address 0x0 - dummy sync flag']
  #allocation32 [shape = 's32[]', space=sflag, size = 0x4, offset = 0, fixed_abs, tag = 'sflag constant byte address 0x0 - dummy sync flag']
  #allocation33 [shape = 's32[]', space=sflag, size = 0x4, offset = 0, fixed_abs, tag = 'sflag constant byte address 0x0 - dummy sync flag']
  #allocation34 [shape = 's32[]', space=sflag, size = 0x4, offset = 0, fixed_abs, tag = 'sflag constant byte address 0x0 - dummy sync flag']
  #allocation35 [shape = 's32[]', space=sflag, size = 0x4, offset = 0, fixed_abs, tag = 'sflag constant byte address 0x0 - dummy sync flag']
  #allocation36 [shape = 's32[]', space=sflag, size = 0x4, offset = 0, fixed_abs, tag = 'sflag constant byte address 0x0 - dummy sync flag']
  #allocation37 [shape = 's32[]', space=sflag, size = 0x4, offset = 0, fixed_abs, tag = 'sflag constant byte address 0x0 - dummy sync flag']
  #allocation38 [shape = 's32[]', space=sflag, size = 0x4, offset = 0, fixed_abs, tag = 'sflag constant byte address 0x0 - dummy sync flag']
  #allocation39 [shape = 's32[]', space=sflag, size = 0x4, offset = 0, fixed_abs, tag = 'sflag constant byte address 0x0 - dummy sync flag']
  #allocation40 [shape = 's32[]', space=sflag, size = 0x4, offset = 0, fixed_abs, tag = 'sflag constant byte address 0x0 - dummy sync flag']
  %s0 = inlined_call_operand.vmem [shape: bf16[8,128], index: 0, kind: input, shape index: {}]
  %s1 = inlined_call_operand.hbm [shape: bf16[4,128,256], index: 1, kind: input, shape index: {}]
  %s2 = inlined_call_operand.vmem [shape: f32[2,1,512], index: 2, kind: input, shape index: {}]
  %s3 = inlined_call_operand.hbm [shape: bf16[16,128,256], index: 3, kind: input, shape index: {}]
  %s4 = inlined_call_operand.hbm [shape: f32[2,1,512], index: 4, kind: input, shape index: {}]
  %s5 = inlined_call_operand.hbm [shape: bf16[4,256,128], index: 5, kind: input, shape index: {}]
  %s6 = inlined_call_operand.vmem [shape: f32[2,1,128], index: 6, kind: input, shape index: {}]
  %s7 = inlined_call_operand.vmem [shape: f32[2,8,128], index: 7, kind: output, shape index: {}]
  %s8 = sld [smem:[#allocation0]]
  $region101: #{hyper_network_forward.3} parent=0
    _
  %s10 = ssub.s32 1, %s8
  %s11 = scalar_select 0, %s10, %s8
  $region1: #{hyper_network_forward.3} parent=0
    #allocation13 [shape = 'u8[4096]{0}', space=vmem, size = 0x1000, scoped, tag = 'input window, operand 4']
    #allocation14 [shape = 's32[2]{0}', space=sflag, size = 0x8, scoped, tag = 'scoped memory for hyper_network_forward.3']
    %12 = vsyncpa [#allocation14], 0
    %s13 = scalar_lea.sflag [#allocation14], 1
    %14 = vsyncpa %s13, 0
    loop: start=0, step=1, limit=4
    $region2: #{hyper_network_forward.3} parent=1 // loop_pre_header
      _
    $region3: #{hyper_network_forward.3} parent=1 // loop_header
      %s16 = sphi 0, %s20
      %p17 = scmp.ge.s32.totalorder %s16, 4
      %s24 = sphi 0, %s24
      %s26 = sphi 0, %s24
      %s27 = sphi 0, %s26
      %s41 = sphi 0, %s27
      %s47 = sphi 0, %s49
      %s50 = sphi 0, %s47
      %s51 = sphi 0, %s50
      %s67 = sphi 0, %s51
      %s73 = sphi 0, %s75
      %s76 = sphi 0, %s73
      %s77 = sphi 0, %s76
      %s93 = sphi 0, %s77
      %s99 = sphi 0, %s101
      %s102 = sphi 0, %s99
      %s103 = sphi 0, %s102
      %s119 = sphi 0, %s103
      %s125 = sphi 0, %s127
      %s128 = sphi 0, %s125
      %s129 = sphi 0, %s128
      %s145 = sphi 0, %s129
    $region4: #{hyper_network_forward.3} parent=1 // loop_header_branch
      %19 = sbr.rel (%p17) target = $region8
    $region5: #{hyper_network_forward.3} parent=1 // loop_body
      %s21 = ssub.s32 %s16, 1
      %s22 = ssub.s32 %s16, 2
      %s23 = sadd.s32 %s16, 1
      %s25 = sadd.s32 %s24, 1
      %p28 = scmp.eq.s32.totalorder %s16, 1
      %p29 = scmp.ne.s32.totalorder %s24, %s26
      %p30 = scmp.eq.s32.totalorder %s16, 0
      %p31 = por %p29, %p30
      %p32 = scmp.ne.s32.totalorder %s24, %s26
      %p33 = scmp.eq.s32.totalorder %s21, 1
      %p34 = por %p32, %p33
      %p35 = scmp.ne.s32.totalorder %s26, %s27
      %p36 = scmp.eq.s32.totalorder %s21, 0
      %p37 = por %p35, %p36
      %p38 = scmp.ne.s32.totalorder %s26, %s27
      %p39 = scmp.eq.s32.totalorder %s22, 1
      %p40 = por %p38, %p39
      %p42 = scmp.ne.s32.totalorder %s27, %s41
      %p43 = scmp.eq.s32.totalorder %s22, 0
      %p44 = por %p42, %p43
      %s45 = ssub.s32 %s16, %s23
      %p46 = scmp.eq.s32.totalorder %s45, 0
      %s48 = sadd.s32 %s47, 1
      %s49 = scalar_select %p46, %s47, %s48
      %p52 = pneg %p46
      %p53 = scmp.eq.s32.totalorder %s16, 1
      %p54 = por %p52, %p53
      %p55 = scmp.ne.s32.totalorder %s47, %s50
      %p56 = scmp.eq.s32.totalorder %s16, 0
      %p57 = por %p55, %p56
      %p58 = scmp.ne.s32.totalorder %s47, %s50
      %p59 = scmp.eq.s32.totalorder %s21, 1
      %p60 = por %p58, %p59
      %p61 = scmp.ne.s32.totalorder %s50, %s51
      %p62 = scmp.eq.s32.totalorder %s21, 0
      %p63 = por %p61, %p62
      %p64 = scmp.ne.s32.totalorder %s50, %s51
      %p65 = scmp.eq.s32.totalorder %s22, 1
      %p66 = por %p64, %p65
      %p68 = scmp.ne.s32.totalorder %s51, %s67
      %p69 = scmp.eq.s32.totalorder %s22, 0
      %p70 = por %p68, %p69
      %s71 = ssub.s32 %s16, %s23
      %p72 = scmp.eq.s32.totalorder %s71, 0
      %s74 = sadd.s32 %s73, 1
      %s75 = scalar_select %p72, %s73, %s74
      %p78 = pneg %p72
      %p79 = scmp.eq.s32.totalorder %s16, 1
      %p80 = por %p78, %p79
      %p81 = scmp.ne.s32.totalorder %s73, %s76
      %p82 = scmp.eq.s32.totalorder %s16, 0
      %p83 = por %p81, %p82
      %p84 = scmp.ne.s32.totalorder %s73, %s76
      %p85 = scmp.eq.s32.totalorder %s21, 1
      %p86 = por %p84, %p85
      %p87 = scmp.ne.s32.totalorder %s76, %s77
      %p88 = scmp.eq.s32.totalorder %s21, 0
      %p89 = por %p87, %p88
      %p90 = scmp.ne.s32.totalorder %s76, %s77
      %p91 = scmp.eq.s32.totalorder %s22, 1
      %p92 = por %p90, %p91
      %p94 = scmp.ne.s32.totalorder %s77, %s93
      %p95 = scmp.eq.s32.totalorder %s22, 0
      %p96 = por %p94, %p95
      %s97 = ssub.s32 %s16, %s23
      %p98 = scmp.eq.s32.totalorder %s97, 0
      %s100 = sadd.s32 %s99, 1
      %s101 = scalar_select %p98, %s99, %s100
      %p104 = pneg %p98
      %p105 = scmp.eq.s32.totalorder %s16, 1
      %p106 = por %p104, %p105
      %p107 = scmp.ne.s32.totalorder %s99, %s102
      %p108 = scmp.eq.s32.totalorder %s16, 0
      %p109 = por %p107, %p108
      %p110 = scmp.ne.s32.totalorder %s99, %s102
      %p111 = scmp.eq.s32.totalorder %s21, 1
      %p112 = por %p110, %p111
      %p113 = scmp.ne.s32.totalorder %s102, %s103
      %p114 = scmp.eq.s32.totalorder %s21, 0
      %p115 = por %p113, %p114
      %p116 = scmp.ne.s32.totalorder %s102, %s103
      %p117 = scmp.eq.s32.totalorder %s22, 1
      %p118 = por %p116, %p117
      %p120 = scmp.ne.s32.totalorder %s103, %s119
      %p121 = scmp.eq.s32.totalorder %s22, 0
      %p122 = por %p120, %p121
      %s123 = ssub.s32 %s16, %s23
      %p124 = scmp.eq.s32.totalorder %s123, 0
      %s126 = sadd.s32 %s125, 1
      %s127 = scalar_select %p124, %s125, %s126
      %p130 = pneg %p124
      %p131 = scmp.eq.s32.totalorder %s16, 1
      %p132 = por %p130, %p131
      %p133 = scmp.ne.s32.totalorder %s125, %s128
      %p134 = scmp.eq.s32.totalorder %s16, 0
      %p135 = por %p133, %p134
      %p136 = scmp.ne.s32.totalorder %s125, %s128
      %p137 = scmp.eq.s32.totalorder %s21, 1
      %p138 = por %p136, %p137
      %p139 = scmp.ne.s32.totalorder %s128, %s129
      %p140 = scmp.eq.s32.totalorder %s21, 0
      %p141 = por %p139, %p140
      %p142 = scmp.ne.s32.totalorder %s128, %s129
      %p143 = scmp.eq.s32.totalorder %s22, 1
      %p144 = por %p142, %p143
      %p146 = scmp.ne.s32.totalorder %s129, %s145
      %p147 = scmp.eq.s32.totalorder %s22, 0
      %p148 = por %p146, %p147
      %p149 = scmp.le.s32.totalorder 1, %s16
      %p150 = scmp.lt.s32.totalorder %s16, 3
      %p151 = pnand %p149, %p150
      %p152 = pneg %p151
      // Predicated region
      $region9: #{hyper_network_forward.3} parent=5 // pred_check
        _
      $region10: #{hyper_network_forward.3} parent=5 // pred_check_branch
        %154 = sbr.rel (%p151) target = $region12
      $region11: #{hyper_network_forward.3} parent=5 // pred_region
        %s155 = ssub.s32 %s16, 1
        // Predicated region
        $region13: #{hyper_network_forward.3} parent=11 // pred_check
          %p156 = pneg %p37
        $region14: #{hyper_network_forward.3} parent=11 // pred_check_branch
          %158 = sbr.rel (%p156) target = $region16
        $region15: #{hyper_network_forward.3} parent=11 // pred_region
          _
        $region16: #{hyper_network_forward.3} parent=11 // pred_fallthru
          _
      $region12: #{hyper_network_forward.3} parent=5 // pred_fallthru
        _
      %p159 = scmp.lt.s32.totalorder %s16, 2
      // Predicated region
      $region17: #{hyper_network_forward.3} parent=5 // pred_check
        %p160 = pneg %p159
      $region18: #{hyper_network_forward.3} parent=5 // pred_check_branch
        %162 = sbr.rel (%p160) target = $region20
      $region19: #{hyper_network_forward.3} parent=5 // pred_region
        // Predicated region
        $region21: #{hyper_network_forward.3} parent=19 // pred_check
          %p163 = pneg %p57
        $region22: #{hyper_network_forward.3} parent=19 // pred_check_branch
          %165 = sbr.rel (%p163) target = $region24
        $region23: #{hyper_network_forward.3} parent=19 // pred_region
          %p166 = scmp.lt.s32.totalorder %s16, 1
          %s167 = scalar_select %p166, %s16, 1
          %s168 = smul.addr %s167, 4
          %s169 = scalar_lea.vmem %s2, %s168
        $region24: #{hyper_network_forward.3} parent=19 // pred_fallthru
          _
        // Predicated region
        $region25: #{hyper_network_forward.3} parent=19 // pred_check
          %p170 = pneg %p83
        $region26: #{hyper_network_forward.3} parent=19 // pred_check_branch
          %172 = sbr.rel (%p170) target = $region28
        $region27: #{hyper_network_forward.3} parent=19 // pred_region
          %s173 = sand.u32 %s73, 1
          %s174 = scalar_lea.sflag [#allocation14], %s173
          %s175 = sand.u32 %s73, 1
          %s176 = smul.addr %s175, 4
          %s177 = scalar_lea.vmem [#allocation13], %s176
          %179 = vsyncadd %s174, 0
          %s180 = smul.addr %s16, 4
          %s181 = scalar_lea.hbm %s4, %s180
          %s183 = sshll.u32 %s181, 4
          %s184 = int_to_ptr.hbm [resolvable:$true] %s183
          %s185 = sshll.u32 %s177, 4
          %s186 = int_to_ptr.vmem [resolvable:$true] %s185
          %188 = dma.hbm_to_vmem [thread:$0]  %s184, 64, %s186, %s174
        $region28: #{hyper_network_forward.3} parent=19 // pred_fallthru
          _
        // Predicated region
        $region29: #{hyper_network_forward.3} parent=19 // pred_check
          %p189 = pneg %p109
        $region30: #{hyper_network_forward.3} parent=19 // pred_check_branch
          %191 = sbr.rel (%p189) target = $region32
        $region31: #{hyper_network_forward.3} parent=19 // pred_region
          %p192 = scmp.lt.s32.totalorder %s16, 1
          %s193 = scalar_select %p192, %s16, 1
          %s194 = scalar_lea.vmem %s6, %s193
        $region32: #{hyper_network_forward.3} parent=19 // pred_fallthru
          _
      $region20: #{hyper_network_forward.3} parent=5 // pred_fallthru
        _
      %p195 = scmp.le.s32.totalorder 1, %s16
      %p196 = scmp.lt.s32.totalorder %s16, 3
      %p197 = pnand %p195, %p196
      %p198 = pneg %p197
      // Predicated region
      $region33: #{hyper_network_forward.3} parent=5 // pred_check
        _
      $region34: #{hyper_network_forward.3} parent=5 // pred_check_branch
        %200 = sbr.rel (%p197) target = $region36
      $region35: #{hyper_network_forward.3} parent=5 // pred_region
        %s201 = ssub.s32 %s16, 1
        %s202 = sand.u32 %s76, 1
        %s203 = scalar_lea.sflag [#allocation14], %s202
        %s204 = sand.u32 %s76, 1
        %s205 = smul.addr %s204, 4
        %s206 = scalar_lea.vmem [#allocation13], %s205
        // Predicated region
        $region37: #{hyper_network_forward.3} parent=35 // pred_check
          %p207 = pneg %p89
        $region38: #{hyper_network_forward.3} parent=35 // pred_check_branch
          %209 = sbr.rel (%p207) target = $region40
        $region39: #{hyper_network_forward.3} parent=35 // pred_region
          %211 = dma.done %s203, 64
        $region40: #{hyper_network_forward.3} parent=35 // pred_fallthru
          _
        %p212 = pneg %p37
        %p213 = pneg %p34
        %p214 = scmp.lt.s32.totalorder %s21, 1
        %s215 = scalar_select %p214, %s21, 1
        %s216 = smul.addr %s215, 4
        %s217 = scalar_lea.vmem %s2, %s216
        %p218 = pneg %p63
        %p219 = pneg %p60
        %s220 = sand.u32 %s76, 1
        %s221 = scalar_lea.sflag [#allocation14], %s220
        %s222 = sand.u32 %s76, 1
        %s223 = smul.addr %s222, 4
        %s224 = scalar_lea.vmem [#allocation13], %s223
        %p225 = pneg %p89
        %p226 = pneg %p86
        %p227 = scmp.lt.s32.totalorder %s21, 1
        %s228 = scalar_select %p227, %s21, 1
        %s229 = scalar_lea.vmem %s6, %s228
        %p230 = pneg %p115
        %p231 = pneg %p112
        %p232 = pneg %p141
        %p233 = pneg %p138
        %p234 = scmp.lt.s32.totalorder %s21, 1
        %s235 = scalar_select %p234, %s21, 1
        %s236 = smul.addr %s235, 8
        %s237 = scalar_lea.vmem %s7, %s236
        %p238 = scmp.lt.s32.totalorder %s21, 1
        %s239 = scalar_select %p238, %s21, 1
        %s240 = smul.addr %s239, 4
        %s241 = scalar_lea.vmem %s2, %s240
        %p242 = scmp.lt.s32.totalorder %s21, 1
        %s243 = scalar_select %p242, %s21, 1
        %s244 = scalar_lea.vmem %s6, %s243
        %p245 = scmp.lt.s32.totalorder %s21, 1
        %s246 = scalar_select %p245, %s21, 1
        %s247 = smul.addr %s246, 8
        %s248 = scalar_lea.vmem %s7, %s247
        %s249 = smul.u32 %s21, 2
        %s250 = smul.u32 %s249, 32
        %s251 = smul.addr %s250, 4
        %s252 = scalar_lea.hbm %s1, %s251
        // Predicated region
        $region41: #{hyper_network_forward.3} parent=35 // pred_check
          _
        $region42: #{hyper_network_forward.3} parent=35 // pred_check_branch
          %254 = sbr.rel target = $region44
        $region43: #{hyper_network_forward.3} parent=35 // pred_region
          %255 = sst [smem:[#allocation17]] [#allocation16]
          %256 = sst [smem:[#allocation18]] [#allocation15]
        $region44: #{hyper_network_forward.3} parent=35 // pred_fallthru
          _
        %258 = shalt.err (0)
        %s260 = sshll.u32 %s252, 4
        %s261 = int_to_ptr.hbm [resolvable:$true] %s260
        %s262 = sshll.u32 [#allocation2], 4
        %s263 = int_to_ptr.vmem [resolvable:$true] %s262
        %265 = dma.hbm_to_vmem [thread:$0]  %s261, 2048, %s263, [#allocation3]
        %s266 = smul.u32 %s21, 8
        %s267 = smul.u32 %s266, 32
        %s268 = smul.addr %s267, 4
        %s269 = scalar_lea.hbm %s3, %s268
        // Predicated region
        $region45: #{hyper_network_forward.3} parent=35 // pred_check
          _
        $region46: #{hyper_network_forward.3} parent=35 // pred_check_branch
          %271 = sbr.rel target = $region48
        $region47: #{hyper_network_forward.3} parent=35 // pred_region
          %272 = sst [smem:[#allocation17]] [#allocation20]
          %273 = sst [smem:[#allocation18]] [#allocation19]
        $region48: #{hyper_network_forward.3} parent=35 // pred_fallthru
          _
        %275 = shalt.err (0)
        %s277 = sshll.u32 %s269, 4
        %s278 = int_to_ptr.hbm [resolvable:$true] %s277
        %s279 = sshll.u32 [#allocation5], 4
        %s280 = int_to_ptr.vmem [resolvable:$true] %s279
        %282 = dma.hbm_to_vmem [thread:$0]  %s278, 2048, %s280, [#allocation6]
        %s283 = smul.addr %s250, 4
        %s284 = scalar_lea.hbm %s5, %s283
        // Predicated region
        $region49: #{hyper_network_forward.3} parent=35 // pred_check
          _
        $region50: #{hyper_network_forward.3} parent=35 // pred_check_branch
          %286 = sbr.rel target = $region52
        $region51: #{hyper_network_forward.3} parent=35 // pred_region
          %287 = sst [smem:[#allocation17]] [#allocation22]
          %288 = sst [smem:[#allocation18]] [#allocation21]
        $region52: #{hyper_network_forward.3} parent=35 // pred_fallthru
          _
        %290 = shalt.err (0)
        %s292 = sshll.u32 %s284, 4
        %s293 = int_to_ptr.hbm [resolvable:$true] %s292
        %s294 = sshll.u32 [#allocation8], 4
        %s295 = int_to_ptr.vmem [resolvable:$true] %s294
        %297 = dma.hbm_to_vmem [thread:$0]  %s293, 2048, %s295, [#allocation9]
        %s298 = smul.u32 4, 16
        %s299 = smul.u32 %s298, 2
        %s300 = sshll.u32 %s299, 4
        %301 = dma.done [#allocation3], %s300
        %s302 = sadd.s32 %s249, 1
        %s303 = smul.u32 %s302, 32
        %s304 = smul.addr %s303, 4
        %s305 = scalar_lea.hbm %s1, %s304
        %s306 = scalar_lea.vmem [#allocation2], 128
        %s307 = scalar_lea.sflag [#allocation3], 1
        // Predicated region
        $region53: #{hyper_network_forward.3} parent=35 // pred_check
          _
        $region54: #{hyper_network_forward.3} parent=35 // pred_check_branch
          %309 = sbr.rel target = $region56
        $region55: #{hyper_network_forward.3} parent=35 // pred_region
          %310 = sst [smem:[#allocation17]] [#allocation24]
          %311 = sst [smem:[#allocation18]] [#allocation23]
        $region56: #{hyper_network_forward.3} parent=35 // pred_fallthru
          _
        %313 = shalt.err (0)
        %s315 = sshll.u32 %s305, 4
        %s316 = int_to_ptr.hbm [resolvable:$true] %s315
        %s317 = sshll.u32 %s306, 4
        %s318 = int_to_ptr.vmem [resolvable:$true] %s317
        %320 = dma.hbm_to_vmem [thread:$0]  %s316, 2048, %s318, %s307
        %321 = vst [vmem:[#allocation4] sm:$0xff] 0.0
        %322 = vst [vmem:[#allocation4 + $0x8] sm:$0xff] 0.0
        %v323 = vld [vmem:[#allocation4] sm:$0xff]
        %v324 = vld [vmem:[#allocation4 + $0x8] sm:$0xff]
        %v325 = vld [vmem:[%s0] sm:$0xf]
        %v326 = vld [vmem:[#allocation2] sm:$0xff]
        %v327 = vld [vmem:[#allocation2 + $0x8] sm:$0xff]
        %v328 = vld [vmem:[#allocation2 + $0x10] sm:$0xff]
        %v329 = vld [vmem:[#allocation2 + $0x18] sm:$0xff]
        %v330 = vld [vmem:[#allocation2 + $0x20] sm:$0xff]
        %v331 = vld [vmem:[#allocation2 + $0x28] sm:$0xff]
        %v332 = vld [vmem:[#allocation2 + $0x30] sm:$0xff]
        %v333 = vld [vmem:[#allocation2 + $0x38] sm:$0xff]
        %v334 = vld [vmem:[#allocation2 + $0x40] sm:$0xff]
        %v335 = vld [vmem:[#allocation2 + $0x48] sm:$0xff]
        %v336 = vld [vmem:[#allocation2 + $0x50] sm:$0xff]
        %v337 = vld [vmem:[#allocation2 + $0x58] sm:$0xff]
        %v338 = vld [vmem:[#allocation2 + $0x60] sm:$0xff]
        %v339 = vld [vmem:[#allocation2 + $0x68] sm:$0xff]
        %v340 = vld [vmem:[#allocation2 + $0x70] sm:$0xff]
        %v341 = vld [vmem:[#allocation2 + $0x78] sm:$0xff]
        %v358 = vunpack.c.l.b16 %v326
        %v359 = vunpack.c.h.b16 %v326
        %v360 = vunpack.c.l.b16 %v327
        %v361 = vunpack.c.h.b16 %v327
        %v362 = vunpack.c.l.b16 %v328
        %v363 = vunpack.c.h.b16 %v328
        %v364 = vunpack.c.l.b16 %v329
        %v365 = vunpack.c.h.b16 %v329
        %v366 = vunpack.c.l.b16 %v330
        %v367 = vunpack.c.h.b16 %v330
        %v368 = vunpack.c.l.b16 %v331
        %v369 = vunpack.c.h.b16 %v331
        %v370 = vunpack.c.l.b16 %v332
        %v371 = vunpack.c.h.b16 %v332
        %v372 = vunpack.c.l.b16 %v333
        %v373 = vunpack.c.h.b16 %v333
        %v374 = vunpack.c.l.b16 %v334
        %v375 = vunpack.c.h.b16 %v334
        %v376 = vunpack.c.l.b16 %v335
        %v377 = vunpack.c.h.b16 %v335
        %v378 = vunpack.c.l.b16 %v336
        %v379 = vunpack.c.h.b16 %v336
        %v380 = vunpack.c.l.b16 %v337
        %v381 = vunpack.c.h.b16 %v337
        %v382 = vunpack.c.l.b16 %v338
        %v383 = vunpack.c.h.b16 %v338
        %v384 = vunpack.c.l.b16 %v339
        %v385 = vunpack.c.h.b16 %v339
        %v386 = vunpack.c.l.b16 %v340
        %v387 = vunpack.c.h.b16 %v340
        %v388 = vunpack.c.l.b16 %v341
        %v389 = vunpack.c.h.b16 %v341
        %v390 = vpack.c.b16 %v360, %v358
        %v391 = vpack.c.b16 %v361, %v359
        %v392 = vpack.c.b16 %v364, %v362
        %v393 = vpack.c.b16 %v365, %v363
        %v394 = vpack.c.b16 %v368, %v366
        %v395 = vpack.c.b16 %v369, %v367
        %v396 = vpack.c.b16 %v372, %v370
        %v397 = vpack.c.b16 %v373, %v371
        %v398 = vpack.c.b16 %v376, %v374
        %v399 = vpack.c.b16 %v377, %v375
        %v400 = vpack.c.b16 %v380, %v378
        %v401 = vpack.c.b16 %v381, %v379
        %v402 = vpack.c.b16 %v384, %v382
        %v403 = vpack.c.b16 %v385, %v383
        %v404 = vpack.c.b16 %v388, %v386
        %v405 = vpack.c.b16 %v389, %v387
        %422 = vmatpush.bf16.msra.mxu0 %v404
        %423 = vmatpush.bf16.msra.mxu0 %v402
        %424 = vmatpush.bf16.msra.mxu0 %v400
        %425 = vmatpush.bf16.msra.mxu0 %v398
        %426 = vmatpush.bf16.msra.mxu0 %v396
        %427 = vmatpush.bf16.msra.mxu0 %v394
        %428 = vmatpush.bf16.msra.mxu0 %v392
        %429 = vmatpush.bf16.msra.mxu0 %v390
        %430 = vmatmul.bf16.gmra.mxu0 %v325
        %v431 = vpop.f32.mrf.mxu0
        %v432 = vadd.f32 0.0, %v431
        %v433 = vpop.f32.mrf.mxu0
        %434 = vdwg.mxu0
        %435 = vmatpush.bf16.msra.mxu0 %v405
        %436 = vmatpush.bf16.msra.mxu0 %v403
        %437 = vmatpush.bf16.msra.mxu0 %v401
        %438 = vmatpush.bf16.msra.mxu0 %v399
        %439 = vmatpush.bf16.msra.mxu0 %v397
        %440 = vmatpush.bf16.msra.mxu0 %v395
        %441 = vmatpush.bf16.msra.mxu0 %v393
        %442 = vmatpush.bf16.msra.mxu0 %v391
        %443 = vmatmul.bf16.gmra.mxu0 %v325
        %v444 = vpop.f32.mrf.mxu0
        %v445 = vadd.f32 0.0, %v444
        %v446 = vpop.f32.mrf.mxu0
        %447 = vdwg.mxu0
        %v448 = vadd.f32 %v323, %v432
        %v449 = vadd.f32 %v324, %v445
        %450 = vst [vmem:[#allocation4] sm:$0xff] %v448
        %451 = vst [vmem:[#allocation4 + $0x8] sm:$0xff] %v449
        %v452 = vld [vmem:[#allocation4] sm:$0xff]
        %v453 = vld [vmem:[#allocation4 + $0x8] sm:$0xff]
        %v454 = vld [vmem:[%s241] sm:$0x3]
        %v456 = vperm.slane %v454, 0
        %v457 = vperm.slane %v454, 1
        %v460 = vadd.f32 %v452, %v456
        %v461 = vadd.f32 %v453, %v457
        %v462 = vmax.f32 %v460, 0.0
        %v463 = vmax.f32 %v461, 0.0
        %v464 = vpack.c.bf16 %v463, %v462
        %465 = vst [vmem:[#allocation11] sm:$0xff] %v464
        %s466 = sshll.u32 %s299, 4
        %467 = dma.done %s307, %s466
        %468 = vst [vmem:[#allocation4] sm:$0xff] 0.0
        %469 = vst [vmem:[#allocation4 + $0x8] sm:$0xff] 0.0
        %v470 = vld [vmem:[#allocation4] sm:$0xff]
        %v471 = vld [vmem:[#allocation4 + $0x8] sm:$0xff]
        %v472 = vld [vmem:[%s0] sm:$0xf]
        %v473 = vld [vmem:[%s306] sm:$0xff]
        %v474 = vld [vmem:[%s306 + $0x8] sm:$0xff]
        %v475 = vld [vmem:[%s306 + $0x10] sm:$0xff]
        %v476 = vld [vmem:[%s306 + $0x18] sm:$0xff]
        %v477 = vld [vmem:[%s306 + $0x20] sm:$0xff]
        %v478 = vld [vmem:[%s306 + $0x28] sm:$0xff]
        %v479 = vld [vmem:[%s306 + $0x30] sm:$0xff]
        %v480 = vld [vmem:[%s306 + $0x38] sm:$0xff]
        %v481 = vld [vmem:[%s306 + $0x40] sm:$0xff]
        %v482 = vld [vmem:[%s306 + $0x48] sm:$0xff]
        %v483 = vld [vmem:[%s306 + $0x50] sm:$0xff]
        %v484 = vld [vmem:[%s306 + $0x58] sm:$0xff]
        %v485 = vld [vmem:[%s306 + $0x60] sm:$0xff]
        %v486 = vld [vmem:[%s306 + $0x68] sm:$0xff]
        %v487 = vld [vmem:[%s306 + $0x70] sm:$0xff]
        %v488 = vld [vmem:[%s306 + $0x78] sm:$0xff]
        %v505 = vunpack.c.l.b16 %v473
        %v506 = vunpack.c.h.b16 %v473
        %v507 = vunpack.c.l.b16 %v474
        %v508 = vunpack.c.h.b16 %v474
        %v509 = vunpack.c.l.b16 %v475
        %v510 = vunpack.c.h.b16 %v475
        %v511 = vunpack.c.l.b16 %v476
        %v512 = vunpack.c.h.b16 %v476
        %v513 = vunpack.c.l.b16 %v477
        %v514 = vunpack.c.h.b16 %v477
        %v515 = vunpack.c.l.b16 %v478
        %v516 = vunpack.c.h.b16 %v478
        %v517 = vunpack.c.l.b16 %v479
        %v518 = vunpack.c.h.b16 %v479
        %v519 = vunpack.c.l.b16 %v480
        %v520 = vunpack.c.h.b16 %v480
        %v521 = vunpack.c.l.b16 %v481
        %v522 = vunpack.c.h.b16 %v481
        %v523 = vunpack.c.l.b16 %v482
        %v524 = vunpack.c.h.b16 %v482
        %v525 = vunpack.c.l.b16 %v483
        %v526 = vunpack.c.h.b16 %v483
        %v527 = vunpack.c.l.b16 %v484
        %v528 = vunpack.c.h.b16 %v484
        %v529 = vunpack.c.l.b16 %v485
        %v530 = vunpack.c.h.b16 %v485
        %v531 = vunpack.c.l.b16 %v486
        %v532 = vunpack.c.h.b16 %v486
        %v533 = vunpack.c.l.b16 %v487
        %v534 = vunpack.c.h.b16 %v487
        %v535 = vunpack.c.l.b16 %v488
        %v536 = vunpack.c.h.b16 %v488
        %v537 = vpack.c.b16 %v507, %v505
        %v538 = vpack.c.b16 %v508, %v506
        %v539 = vpack.c.b16 %v511, %v509
        %v540 = vpack.c.b16 %v512, %v510
        %v541 = vpack.c.b16 %v515, %v513
        %v542 = vpack.c.b16 %v516, %v514
        %v543 = vpack.c.b16 %v519, %v517
        %v544 = vpack.c.b16 %v520, %v518
        %v545 = vpack.c.b16 %v523, %v521
        %v546 = vpack.c.b16 %v524, %v522
        %v547 = vpack.c.b16 %v527, %v525
        %v548 = vpack.c.b16 %v528, %v526
        %v549 = vpack.c.b16 %v531, %v529
        %v550 = vpack.c.b16 %v532, %v530
        %v551 = vpack.c.b16 %v535, %v533
        %v552 = vpack.c.b16 %v536, %v534
        %569 = vmatpush.bf16.msra.mxu0 %v551
        %570 = vmatpush.bf16.msra.mxu0 %v549
        %571 = vmatpush.bf16.msra.mxu0 %v547
        %572 = vmatpush.bf16.msra.mxu0 %v545
        %573 = vmatpush.bf16.msra.mxu0 %v543
        %574 = vmatpush.bf16.msra.mxu0 %v541
        %575 = vmatpush.bf16.msra.mxu0 %v539
        %576 = vmatpush.bf16.msra.mxu0 %v537
        %577 = vmatmul.bf16.gmra.mxu0 %v472
        %v578 = vpop.f32.mrf.mxu0
        %v579 = vadd.f32 0.0, %v578
        %v580 = vpop.f32.mrf.mxu0
        %581 = vdwg.mxu0
        %582 = vmatpush.bf16.msra.mxu0 %v552
        %583 = vmatpush.bf16.msra.mxu0 %v550
        %584 = vmatpush.bf16.msra.mxu0 %v548
        %585 = vmatpush.bf16.msra.mxu0 %v546
        %586 = vmatpush.bf16.msra.mxu0 %v544
        %587 = vmatpush.bf16.msra.mxu0 %v542
        %588 = vmatpush.bf16.msra.mxu0 %v540
        %589 = vmatpush.bf16.msra.mxu0 %v538
        %590 = vmatmul.bf16.gmra.mxu0 %v472
        %v591 = vpop.f32.mrf.mxu0
        %v592 = vadd.f32 0.0, %v591
        %v593 = vpop.f32.mrf.mxu0
        %594 = vdwg.mxu0
        %v595 = vadd.f32 %v470, %v579
        %v596 = vadd.f32 %v471, %v592
        %597 = vst [vmem:[#allocation4] sm:$0xff] %v595
        %598 = vst [vmem:[#allocation4 + $0x8] sm:$0xff] %v596
        %v599 = vld [vmem:[#allocation4] sm:$0xff]
        %v600 = vld [vmem:[#allocation4 + $0x8] sm:$0xff]
        %v601 = vld [vmem:[%s241 + $0x2] sm:$0x3]
        %v603 = vperm.slane %v601, 0
        %v604 = vperm.slane %v601, 1
        %v607 = vadd.f32 %v599, %v603
        %v608 = vadd.f32 %v600, %v604
        %v609 = vmax.f32 %v607, 0.0
        %v610 = vmax.f32 %v608, 0.0
        %v611 = vpack.c.bf16 %v610, %v609
        %612 = vst [vmem:[#allocation11 + $0x8] sm:$0xff] %v611
        %s613 = sshll.u32 %s299, 4
        %614 = dma.done [#allocation6], %s613
        %s615 = sadd.s32 %s266, 1
        %s616 = smul.u32 %s615, 32
        %s617 = smul.addr %s616, 4
        %s618 = scalar_lea.hbm %s3, %s617
        %s619 = scalar_lea.vmem [#allocation5], 128
        %s620 = scalar_lea.sflag [#allocation6], 1
        // Predicated region
        $region57: #{hyper_network_forward.3} parent=35 // pred_check
          _
        $region58: #{hyper_network_forward.3} parent=35 // pred_check_branch
          %622 = sbr.rel target = $region60
        $region59: #{hyper_network_forward.3} parent=35 // pred_region
          %623 = sst [smem:[#allocation17]] [#allocation26]
          %624 = sst [smem:[#allocation18]] [#allocation25]
        $region60: #{hyper_network_forward.3} parent=35 // pred_fallthru
          _
        %626 = shalt.err (0)
        %s628 = sshll.u32 %s618, 4
        %s629 = int_to_ptr.hbm [resolvable:$true] %s628
        %s630 = sshll.u32 %s619, 4
        %s631 = int_to_ptr.vmem [resolvable:$true] %s630
        %633 = dma.hbm_to_vmem [thread:$0]  %s629, 2048, %s631, %s620
        %634 = vst [vmem:[#allocation7] sm:$0xff] 0.0
        %635 = vst [vmem:[#allocation7 + $0x8] sm:$0xff] 0.0
        %v636 = vld [vmem:[#allocation7] sm:$0xff]
        %v637 = vld [vmem:[#allocation7 + $0x8] sm:$0xff]
        %v638 = vld [vmem:[#allocation11] sm:$0xf]
        %v639 = vld [vmem:[#allocation5] sm:$0xff]
        %v640 = vld [vmem:[#allocation5 + $0x8] sm:$0xff]
        %v641 = vld [vmem:[#allocation5 + $0x10] sm:$0xff]
        %v642 = vld [vmem:[#allocation5 + $0x18] sm:$0xff]
        %v643 = vld [vmem:[#allocation5 + $0x20] sm:$0xff]
        %v644 = vld [vmem:[#allocation5 + $0x28] sm:$0xff]
        %v645 = vld [vmem:[#allocation5 + $0x30] sm:$0xff]
        %v646 = vld [vmem:[#allocation5 + $0x38] sm:$0xff]
        %v647 = vld [vmem:[#allocation5 + $0x40] sm:$0xff]
        %v648 = vld [vmem:[#allocation5 + $0x48] sm:$0xff]
        %v649 = vld [vmem:[#allocation5 + $0x50] sm:$0xff]
        %v650 = vld [vmem:[#allocation5 + $0x58] sm:$0xff]
        %v651 = vld [vmem:[#allocation5 + $0x60] sm:$0xff]
        %v652 = vld [vmem:[#allocation5 + $0x68] sm:$0xff]
        %v653 = vld [vmem:[#allocation5 + $0x70] sm:$0xff]
        %v654 = vld [vmem:[#allocation5 + $0x78] sm:$0xff]
        %v671 = vunpack.c.l.b16 %v639
        %v672 = vunpack.c.h.b16 %v639
        %v673 = vunpack.c.l.b16 %v640
        %v674 = vunpack.c.h.b16 %v640
        %v675 = vunpack.c.l.b16 %v641
        %v676 = vunpack.c.h.b16 %v641
        %v677 = vunpack.c.l.b16 %v642
        %v678 = vunpack.c.h.b16 %v642
        %v679 = vunpack.c.l.b16 %v643
        %v680 = vunpack.c.h.b16 %v643
        %v681 = vunpack.c.l.b16 %v644
        %v682 = vunpack.c.h.b16 %v644
        %v683 = vunpack.c.l.b16 %v645
        %v684 = vunpack.c.h.b16 %v645
        %v685 = vunpack.c.l.b16 %v646
        %v686 = vunpack.c.h.b16 %v646
        %v687 = vunpack.c.l.b16 %v647
        %v688 = vunpack.c.h.b16 %v647
        %v689 = vunpack.c.l.b16 %v648
        %v690 = vunpack.c.h.b16 %v648
        %v691 = vunpack.c.l.b16 %v649
        %v692 = vunpack.c.h.b16 %v649
        %v693 = vunpack.c.l.b16 %v650
        %v694 = vunpack.c.h.b16 %v650
        %v695 = vunpack.c.l.b16 %v651
        %v696 = vunpack.c.h.b16 %v651
        %v697 = vunpack.c.l.b16 %v652
        %v698 = vunpack.c.h.b16 %v652
        %v699 = vunpack.c.l.b16 %v653
        %v700 = vunpack.c.h.b16 %v653
        %v701 = vunpack.c.l.b16 %v654
        %v702 = vunpack.c.h.b16 %v654
        %v703 = vpack.c.b16 %v673, %v671
        %v704 = vpack.c.b16 %v674, %v672
        %v705 = vpack.c.b16 %v677, %v675
        %v706 = vpack.c.b16 %v678, %v676
        %v707 = vpack.c.b16 %v681, %v679
        %v708 = vpack.c.b16 %v682, %v680
        %v709 = vpack.c.b16 %v685, %v683
        %v710 = vpack.c.b16 %v686, %v684
        %v711 = vpack.c.b16 %v689, %v687
        %v712 = vpack.c.b16 %v690, %v688
        %v713 = vpack.c.b16 %v693, %v691
        %v714 = vpack.c.b16 %v694, %v692
        %v715 = vpack.c.b16 %v697, %v695
        %v716 = vpack.c.b16 %v698, %v696
        %v717 = vpack.c.b16 %v701, %v699
        %v718 = vpack.c.b16 %v702, %v700
        %735 = vmatpush.bf16.msra.mxu0 %v717
        %736 = vmatpush.bf16.msra.mxu0 %v715
        %737 = vmatpush.bf16.msra.mxu0 %v713
        %738 = vmatpush.bf16.msra.mxu0 %v711
        %739 = vmatpush.bf16.msra.mxu0 %v709
        %740 = vmatpush.bf16.msra.mxu0 %v707
        %741 = vmatpush.bf16.msra.mxu0 %v705
        %742 = vmatpush.bf16.msra.mxu0 %v703
        %743 = vmatmul.bf16.gmra.mxu0 %v638
        %v744 = vpop.f32.mrf.mxu0
        %v745 = vadd.f32 0.0, %v744
        %v746 = vpop.f32.mrf.mxu0
        %747 = vdwg.mxu0
        %748 = vmatpush.bf16.msra.mxu0 %v718
        %749 = vmatpush.bf16.msra.mxu0 %v716
        %750 = vmatpush.bf16.msra.mxu0 %v714
        %751 = vmatpush.bf16.msra.mxu0 %v712
        %752 = vmatpush.bf16.msra.mxu0 %v710
        %753 = vmatpush.bf16.msra.mxu0 %v708
        %754 = vmatpush.bf16.msra.mxu0 %v706
        %755 = vmatpush.bf16.msra.mxu0 %v704
        %756 = vmatmul.bf16.gmra.mxu0 %v638
        %v757 = vpop.f32.mrf.mxu0
        %v758 = vadd.f32 0.0, %v757
        %v759 = vpop.f32.mrf.mxu0
        %760 = vdwg.mxu0
        %v761 = vadd.f32 %v636, %v745
        %v762 = vadd.f32 %v637, %v758
        %763 = vst [vmem:[#allocation7] sm:$0xff] %v761
        %764 = vst [vmem:[#allocation7 + $0x8] sm:$0xff] %v762
        %s765 = sshll.u32 %s299, 4
        %766 = dma.done %s620, %s765
        %s767 = sadd.s32 %s266, 2
        %s768 = smul.u32 %s767, 32
        %s769 = smul.addr %s768, 4
        %s770 = scalar_lea.hbm %s3, %s769
        // Predicated region
        $region61: #{hyper_network_forward.3} parent=35 // pred_check
          _
        $region62: #{hyper_network_forward.3} parent=35 // pred_check_branch
          %772 = sbr.rel target = $region64
        $region63: #{hyper_network_forward.3} parent=35 // pred_region
          %773 = sst [smem:[#allocation17]] [#allocation28]
          %774 = sst [smem:[#allocation18]] [#allocation27]
        $region64: #{hyper_network_forward.3} parent=35 // pred_fallthru
          _
        %776 = shalt.err (0)
        %s778 = sshll.u32 %s770, 4
        %s779 = int_to_ptr.hbm [resolvable:$true] %s778
        %s780 = sshll.u32 [#allocation5], 4
        %s781 = int_to_ptr.vmem [resolvable:$true] %s780
        %783 = dma.hbm_to_vmem [thread:$0]  %s779, 2048, %s781, [#allocation6]
        %v784 = vld [vmem:[#allocation7] sm:$0xff]
        %v785 = vld [vmem:[#allocation7 + $0x8] sm:$0xff]
        %v786 = vld [vmem:[#allocation11 + $0x4] sm:$0xf]
        %v787 = vld [vmem:[%s619] sm:$0xff]
        %v788 = vld [vmem:[%s619 + $0x8] sm:$0xff]
        %v789 = vld [vmem:[%s619 + $0x10] sm:$0xff]
        %v790 = vld [vmem:[%s619 + $0x18] sm:$0xff]
        %v791 = vld [vmem:[%s619 + $0x20] sm:$0xff]
        %v792 = vld [vmem:[%s619 + $0x28] sm:$0xff]
        %v793 = vld [vmem:[%s619 + $0x30] sm:$0xff]
        %v794 = vld [vmem:[%s619 + $0x38] sm:$0xff]
        %v795 = vld [vmem:[%s619 + $0x40] sm:$0xff]
        %v796 = vld [vmem:[%s619 + $0x48] sm:$0xff]
        %v797 = vld [vmem:[%s619 + $0x50] sm:$0xff]
        %v798 = vld [vmem:[%s619 + $0x58] sm:$0xff]
        %v799 = vld [vmem:[%s619 + $0x60] sm:$0xff]
        %v800 = vld [vmem:[%s619 + $0x68] sm:$0xff]
        %v801 = vld [vmem:[%s619 + $0x70] sm:$0xff]
        %v802 = vld [vmem:[%s619 + $0x78] sm:$0xff]
        %v819 = vunpack.c.l.b16 %v787
        %v820 = vunpack.c.h.b16 %v787
        %v821 = vunpack.c.l.b16 %v788
        %v822 = vunpack.c.h.b16 %v788
        %v823 = vunpack.c.l.b16 %v789
        %v824 = vunpack.c.h.b16 %v789
        %v825 = vunpack.c.l.b16 %v790
        %v826 = vunpack.c.h.b16 %v790
        %v827 = vunpack.c.l.b16 %v791
        %v828 = vunpack.c.h.b16 %v791
        %v829 = vunpack.c.l.b16 %v792
        %v830 = vunpack.c.h.b16 %v792
        %v831 = vunpack.c.l.b16 %v793
        %v832 = vunpack.c.h.b16 %v793
        %v833 = vunpack.c.l.b16 %v794
        %v834 = vunpack.c.h.b16 %v794
        %v835 = vunpack.c.l.b16 %v795
        %v836 = vunpack.c.h.b16 %v795
        %v837 = vunpack.c.l.b16 %v796
        %v838 = vunpack.c.h.b16 %v796
        %v839 = vunpack.c.l.b16 %v797
        %v840 = vunpack.c.h.b16 %v797
        %v841 = vunpack.c.l.b16 %v798
        %v842 = vunpack.c.h.b16 %v798
        %v843 = vunpack.c.l.b16 %v799
        %v844 = vunpack.c.h.b16 %v799
        %v845 = vunpack.c.l.b16 %v800
        %v846 = vunpack.c.h.b16 %v800
        %v847 = vunpack.c.l.b16 %v801
        %v848 = vunpack.c.h.b16 %v801
        %v849 = vunpack.c.l.b16 %v802
        %v850 = vunpack.c.h.b16 %v802
        %v851 = vpack.c.b16 %v821, %v819
        %v852 = vpack.c.b16 %v822, %v820
        %v853 = vpack.c.b16 %v825, %v823
        %v854 = vpack.c.b16 %v826, %v824
        %v855 = vpack.c.b16 %v829, %v827
        %v856 = vpack.c.b16 %v830, %v828
        %v857 = vpack.c.b16 %v833, %v831
        %v858 = vpack.c.b16 %v834, %v832
        %v859 = vpack.c.b16 %v837, %v835
        %v860 = vpack.c.b16 %v838, %v836
        %v861 = vpack.c.b16 %v841, %v839
        %v862 = vpack.c.b16 %v842, %v840
        %v863 = vpack.c.b16 %v845, %v843
        %v864 = vpack.c.b16 %v846, %v844
        %v865 = vpack.c.b16 %v849, %v847
        %v866 = vpack.c.b16 %v850, %v848
        %883 = vmatpush.bf16.msra.mxu0 %v865
        %884 = vmatpush.bf16.msra.mxu0 %v863
        %885 = vmatpush.bf16.msra.mxu0 %v861
        %886 = vmatpush.bf16.msra.mxu0 %v859
        %887 = vmatpush.bf16.msra.mxu0 %v857
        %888 = vmatpush.bf16.msra.mxu0 %v855
        %889 = vmatpush.bf16.msra.mxu0 %v853
        %890 = vmatpush.bf16.msra.mxu0 %v851
        %891 = vmatmul.bf16.gmra.mxu0 %v786
        %v892 = vpop.f32.mrf.mxu0
        %v893 = vadd.f32 0.0, %v892
        %v894 = vpop.f32.mrf.mxu0
        %895 = vdwg.mxu0
        %896 = vmatpush.bf16.msra.mxu0 %v866
        %897 = vmatpush.bf16.msra.mxu0 %v864
        %898 = vmatpush.bf16.msra.mxu0 %v862
        %899 = vmatpush.bf16.msra.mxu0 %v860
        %900 = vmatpush.bf16.msra.mxu0 %v858
        %901 = vmatpush.bf16.msra.mxu0 %v856
        %902 = vmatpush.bf16.msra.mxu0 %v854
        %903 = vmatpush.bf16.msra.mxu0 %v852
        %904 = vmatmul.bf16.gmra.mxu0 %v786
        %v905 = vpop.f32.mrf.mxu0
        %v906 = vadd.f32 0.0, %v905
        %v907 = vpop.f32.mrf.mxu0
        %908 = vdwg.mxu0
        %v909 = vadd.f32 %v784, %v893
        %v910 = vadd.f32 %v785, %v906
        %911 = vst [vmem:[#allocation7] sm:$0xff] %v909
        %912 = vst [vmem:[#allocation7 + $0x8] sm:$0xff] %v910
        %s913 = sshll.u32 %s299, 4
        %914 = dma.done [#allocation6], %s913
        %s915 = sadd.s32 %s266, 3
        %s916 = smul.u32 %s915, 32
        %s917 = smul.addr %s916, 4
        %s918 = scalar_lea.hbm %s3, %s917
        // Predicated region
        $region65: #{hyper_network_forward.3} parent=35 // pred_check
          _
        $region66: #{hyper_network_forward.3} parent=35 // pred_check_branch
          %920 = sbr.rel target = $region68
        $region67: #{hyper_network_forward.3} parent=35 // pred_region
          %921 = sst [smem:[#allocation17]] [#allocation30]
          %922 = sst [smem:[#allocation18]] [#allocation29]
        $region68: #{hyper_network_forward.3} parent=35 // pred_fallthru
          _
        %924 = shalt.err (0)
        %s926 = sshll.u32 %s918, 4
        %s927 = int_to_ptr.hbm [resolvable:$true] %s926
        %s928 = sshll.u32 %s619, 4
        %s929 = int_to_ptr.vmem [resolvable:$true] %s928
        %931 = dma.hbm_to_vmem [thread:$0]  %s927, 2048, %s929, %s620
        %v932 = vld [vmem:[#allocation7] sm:$0xff]
        %v933 = vld [vmem:[#allocation7 + $0x8] sm:$0xff]
        %v934 = vld [vmem:[#allocation11 + $0x8] sm:$0xf]
        %v935 = vld [vmem:[#allocation5] sm:$0xff]
        %v936 = vld [vmem:[#allocation5 + $0x8] sm:$0xff]
        %v937 = vld [vmem:[#allocation5 + $0x10] sm:$0xff]
        %v938 = vld [vmem:[#allocation5 + $0x18] sm:$0xff]
        %v939 = vld [vmem:[#allocation5 + $0x20] sm:$0xff]
        %v940 = vld [vmem:[#allocation5 + $0x28] sm:$0xff]
        %v941 = vld [vmem:[#allocation5 + $0x30] sm:$0xff]
        %v942 = vld [vmem:[#allocation5 + $0x38] sm:$0xff]
        %v943 = vld [vmem:[#allocation5 + $0x40] sm:$0xff]
        %v944 = vld [vmem:[#allocation5 + $0x48] sm:$0xff]
        %v945 = vld [vmem:[#allocation5 + $0x50] sm:$0xff]
        %v946 = vld [vmem:[#allocation5 + $0x58] sm:$0xff]
        %v947 = vld [vmem:[#allocation5 + $0x60] sm:$0xff]
        %v948 = vld [vmem:[#allocation5 + $0x68] sm:$0xff]
        %v949 = vld [vmem:[#allocation5 + $0x70] sm:$0xff]
        %v950 = vld [vmem:[#allocation5 + $0x78] sm:$0xff]
        %v967 = vunpack.c.l.b16 %v935
        %v968 = vunpack.c.h.b16 %v935
        %v969 = vunpack.c.l.b16 %v936
        %v970 = vunpack.c.h.b16 %v936
        %v971 = vunpack.c.l.b16 %v937
        %v972 = vunpack.c.h.b16 %v937
        %v973 = vunpack.c.l.b16 %v938
        %v974 = vunpack.c.h.b16 %v938
        %v975 = vunpack.c.l.b16 %v939
        %v976 = vunpack.c.h.b16 %v939
        %v977 = vunpack.c.l.b16 %v940
        %v978 = vunpack.c.h.b16 %v940
        %v979 = vunpack.c.l.b16 %v941
        %v980 = vunpack.c.h.b16 %v941
        %v981 = vunpack.c.l.b16 %v942
        %v982 = vunpack.c.h.b16 %v942
        %v983 = vunpack.c.l.b16 %v943
        %v984 = vunpack.c.h.b16 %v943
        %v985 = vunpack.c.l.b16 %v944
        %v986 = vunpack.c.h.b16 %v944
        %v987 = vunpack.c.l.b16 %v945
        %v988 = vunpack.c.h.b16 %v945
        %v989 = vunpack.c.l.b16 %v946
        %v990 = vunpack.c.h.b16 %v946
        %v991 = vunpack.c.l.b16 %v947
        %v992 = vunpack.c.h.b16 %v947
        %v993 = vunpack.c.l.b16 %v948
        %v994 = vunpack.c.h.b16 %v948
        %v995 = vunpack.c.l.b16 %v949
        %v996 = vunpack.c.h.b16 %v949
        %v997 = vunpack.c.l.b16 %v950
        %v998 = vunpack.c.h.b16 %v950
        %v999 = vpack.c.b16 %v969, %v967
        %v1000 = vpack.c.b16 %v970, %v968
        %v1001 = vpack.c.b16 %v973, %v971
        %v1002 = vpack.c.b16 %v974, %v972
        %v1003 = vpack.c.b16 %v977, %v975
        %v1004 = vpack.c.b16 %v978, %v976
        %v1005 = vpack.c.b16 %v981, %v979
        %v1006 = vpack.c.b16 %v982, %v980
        %v1007 = vpack.c.b16 %v985, %v983
        %v1008 = vpack.c.b16 %v986, %v984
        %v1009 = vpack.c.b16 %v989, %v987
        %v1010 = vpack.c.b16 %v990, %v988
        %v1011 = vpack.c.b16 %v993, %v991
        %v1012 = vpack.c.b16 %v994, %v992
        %v1013 = vpack.c.b16 %v997, %v995
        %v1014 = vpack.c.b16 %v998, %v996
        %1031 = vmatpush.bf16.msra.mxu0 %v1013
        %1032 = vmatpush.bf16.msra.mxu0 %v1011
        %1033 = vmatpush.bf16.msra.mxu0 %v1009
        %1034 = vmatpush.bf16.msra.mxu0 %v1007
        %1035 = vmatpush.bf16.msra.mxu0 %v1005
        %1036 = vmatpush.bf16.msra.mxu0 %v1003
        %1037 = vmatpush.bf16.msra.mxu0 %v1001
        %1038 = vmatpush.bf16.msra.mxu0 %v999
        %1039 = vmatmul.bf16.gmra.mxu0 %v934
        %v1040 = vpop.f32.mrf.mxu0
        %v1041 = vadd.f32 0.0, %v1040
        %v1042 = vpop.f32.mrf.mxu0
        %1043 = vdwg.mxu0
        %1044 = vmatpush.bf16.msra.mxu0 %v1014
        %1045 = vmatpush.bf16.msra.mxu0 %v1012
        %1046 = vmatpush.bf16.msra.mxu0 %v1010
        %1047 = vmatpush.bf16.msra.mxu0 %v1008
        %1048 = vmatpush.bf16.msra.mxu0 %v1006
        %1049 = vmatpush.bf16.msra.mxu0 %v1004
        %1050 = vmatpush.bf16.msra.mxu0 %v1002
        %1051 = vmatpush.bf16.msra.mxu0 %v1000
        %1052 = vmatmul.bf16.gmra.mxu0 %v934
        %v1053 = vpop.f32.mrf.mxu0
        %v1054 = vadd.f32 0.0, %v1053
        %v1055 = vpop.f32.mrf.mxu0
        %1056 = vdwg.mxu0
        %v1057 = vadd.f32 %v932, %v1041
        %v1058 = vadd.f32 %v933, %v1054
        %1059 = vst [vmem:[#allocation7] sm:$0xff] %v1057
        %1060 = vst [vmem:[#allocation7 + $0x8] sm:$0xff] %v1058
        %s1061 = sshll.u32 %s299, 4
        %1062 = dma.done %s620, %s1061
        %s1063 = sadd.s32 %s266, 4
        %s1064 = smul.u32 %s1063, 32
        %s1065 = smul.addr %s1064, 4
        %s1066 = scalar_lea.hbm %s3, %s1065
        // Predicated region
        $region69: #{hyper_network_forward.3} parent=35 // pred_check
          _
        $region70: #{hyper_network_forward.3} parent=35 // pred_check_branch
          %1068 = sbr.rel target = $region72
        $region71: #{hyper_network_forward.3} parent=35 // pred_region
          %1069 = sst [smem:[#allocation17]] [#allocation32]
          %1070 = sst [smem:[#allocation18]] [#allocation31]
        $region72: #{hyper_network_forward.3} parent=35 // pred_fallthru
          _
        %1072 = shalt.err (0)
        %s1074 = sshll.u32 %s1066, 4
        %s1075 = int_to_ptr.hbm [resolvable:$true] %s1074
        %s1076 = sshll.u32 [#allocation5], 4
        %s1077 = int_to_ptr.vmem [resolvable:$true] %s1076
        %1079 = dma.hbm_to_vmem [thread:$0]  %s1075, 2048, %s1077, [#allocation6]
        %v1080 = vld [vmem:[#allocation7] sm:$0xff]
        %v1081 = vld [vmem:[#allocation7 + $0x8] sm:$0xff]
        %v1082 = vld [vmem:[#allocation11 + $0xc] sm:$0xf]
        %v1083 = vld [vmem:[%s619] sm:$0xff]
        %v1084 = vld [vmem:[%s619 + $0x8] sm:$0xff]
        %v1085 = vld [vmem:[%s619 + $0x10] sm:$0xff]
        %v1086 = vld [vmem:[%s619 + $0x18] sm:$0xff]
        %v1087 = vld [vmem:[%s619 + $0x20] sm:$0xff]
        %v1088 = vld [vmem:[%s619 + $0x28] sm:$0xff]
        %v1089 = vld [vmem:[%s619 + $0x30] sm:$0xff]
        %v1090 = vld [vmem:[%s619 + $0x38] sm:$0xff]
        %v1091 = vld [vmem:[%s619 + $0x40] sm:$0xff]
        %v1092 = vld [vmem:[%s619 + $0x48] sm:$0xff]
        %v1093 = vld [vmem:[%s619 + $0x50] sm:$0xff]
        %v1094 = vld [vmem:[%s619 + $0x58] sm:$0xff]
        %v1095 = vld [vmem:[%s619 + $0x60] sm:$0xff]
        %v1096 = vld [vmem:[%s619 + $0x68] sm:$0xff]
        %v1097 = vld [vmem:[%s619 + $0x70] sm:$0xff]
        %v1098 = vld [vmem:[%s619 + $0x78] sm:$0xff]
        %v1115 = vunpack.c.l.b16 %v1083
        %v1116 = vunpack.c.h.b16 %v1083
        %v1117 = vunpack.c.l.b16 %v1084
        %v1118 = vunpack.c.h.b16 %v1084
        %v1119 = vunpack.c.l.b16 %v1085
        %v1120 = vunpack.c.h.b16 %v1085
        %v1121 = vunpack.c.l.b16 %v1086
        %v1122 = vunpack.c.h.b16 %v1086
        %v1123 = vunpack.c.l.b16 %v1087
        %v1124 = vunpack.c.h.b16 %v1087
        %v1125 = vunpack.c.l.b16 %v1088
        %v1126 = vunpack.c.h.b16 %v1088
        %v1127 = vunpack.c.l.b16 %v1089
        %v1128 = vunpack.c.h.b16 %v1089
        %v1129 = vunpack.c.l.b16 %v1090
        %v1130 = vunpack.c.h.b16 %v1090
        %v1131 = vunpack.c.l.b16 %v1091
        %v1132 = vunpack.c.h.b16 %v1091
        %v1133 = vunpack.c.l.b16 %v1092
        %v1134 = vunpack.c.h.b16 %v1092
        %v1135 = vunpack.c.l.b16 %v1093
        %v1136 = vunpack.c.h.b16 %v1093
        %v1137 = vunpack.c.l.b16 %v1094
        %v1138 = vunpack.c.h.b16 %v1094
        %v1139 = vunpack.c.l.b16 %v1095
        %v1140 = vunpack.c.h.b16 %v1095
        %v1141 = vunpack.c.l.b16 %v1096
        %v1142 = vunpack.c.h.b16 %v1096
        %v1143 = vunpack.c.l.b16 %v1097
        %v1144 = vunpack.c.h.b16 %v1097
        %v1145 = vunpack.c.l.b16 %v1098
        %v1146 = vunpack.c.h.b16 %v1098
        %v1147 = vpack.c.b16 %v1117, %v1115
        %v1148 = vpack.c.b16 %v1118, %v1116
        %v1149 = vpack.c.b16 %v1121, %v1119
        %v1150 = vpack.c.b16 %v1122, %v1120
        %v1151 = vpack.c.b16 %v1125, %v1123
        %v1152 = vpack.c.b16 %v1126, %v1124
        %v1153 = vpack.c.b16 %v1129, %v1127
        %v1154 = vpack.c.b16 %v1130, %v1128
        %v1155 = vpack.c.b16 %v1133, %v1131
        %v1156 = vpack.c.b16 %v1134, %v1132
        %v1157 = vpack.c.b16 %v1137, %v1135
        %v1158 = vpack.c.b16 %v1138, %v1136
        %v1159 = vpack.c.b16 %v1141, %v1139
        %v1160 = vpack.c.b16 %v1142, %v1140
        %v1161 = vpack.c.b16 %v1145, %v1143
        %v1162 = vpack.c.b16 %v1146, %v1144
        %1179 = vmatpush.bf16.msra.mxu0 %v1161
        %1180 = vmatpush.bf16.msra.mxu0 %v1159
        %1181 = vmatpush.bf16.msra.mxu0 %v1157
        %1182 = vmatpush.bf16.msra.mxu0 %v1155
        %1183 = vmatpush.bf16.msra.mxu0 %v1153
        %1184 = vmatpush.bf16.msra.mxu0 %v1151
        %1185 = vmatpush.bf16.msra.mxu0 %v1149
        %1186 = vmatpush.bf16.msra.mxu0 %v1147
        %1187 = vmatmul.bf16.gmra.mxu0 %v1082
        %v1188 = vpop.f32.mrf.mxu0
        %v1189 = vadd.f32 0.0, %v1188
        %v1190 = vpop.f32.mrf.mxu0
        %1191 = vdwg.mxu0
        %1192 = vmatpush.bf16.msra.mxu0 %v1162
        %1193 = vmatpush.bf16.msra.mxu0 %v1160
        %1194 = vmatpush.bf16.msra.mxu0 %v1158
        %1195 = vmatpush.bf16.msra.mxu0 %v1156
        %1196 = vmatpush.bf16.msra.mxu0 %v1154
        %1197 = vmatpush.bf16.msra.mxu0 %v1152
        %1198 = vmatpush.bf16.msra.mxu0 %v1150
        %1199 = vmatpush.bf16.msra.mxu0 %v1148
        %1200 = vmatmul.bf16.gmra.mxu0 %v1082
        %v1201 = vpop.f32.mrf.mxu0
        %v1202 = vadd.f32 0.0, %v1201
        %v1203 = vpop.f32.mrf.mxu0
        %1204 = vdwg.mxu0
        %v1205 = vadd.f32 %v1080, %v1189
        %v1206 = vadd.f32 %v1081, %v1202
        %1207 = vst [vmem:[#allocation7] sm:$0xff] %v1205
        %1208 = vst [vmem:[#allocation7 + $0x8] sm:$0xff] %v1206
        %v1209 = vld [vmem:[#allocation7] sm:$0xff]
        %v1210 = vld [vmem:[#allocation7 + $0x8] sm:$0xff]
        %v1211 = vld [vmem:[%s206] sm:$0x3]
        %v1213 = vperm.slane %v1211, 0
        %v1214 = vperm.slane %v1211, 1
        %v1217 = vadd.f32 %v1209, %v1213
        %v1218 = vadd.f32 %v1210, %v1214
        %v1219 = vmax.f32 %v1217, 0.0
        %v1220 = vmax.f32 %v1218, 0.0
        %v1221 = vpack.c.bf16 %v1220, %v1219
        %1222 = vst [vmem:[#allocation12] sm:$0xff] %v1221
        %s1223 = sshll.u32 %s299, 4
        %1224 = dma.done [#allocation6], %s1223
        %s1225 = sadd.s32 %s266, 5
        %s1226 = smul.u32 %s1225, 32
        %s1227 = smul.addr %s1226, 4
        %s1228 = scalar_lea.hbm %s3, %s1227
        // Predicated region
        $region73: #{hyper_network_forward.3} parent=35 // pred_check
          _
        $region74: #{hyper_network_forward.3} parent=35 // pred_check_branch
          %1230 = sbr.rel target = $region76
        $region75: #{hyper_network_forward.3} parent=35 // pred_region
          %1231 = sst [smem:[#allocation17]] [#allocation34]
          %1232 = sst [smem:[#allocation18]] [#allocation33]
        $region76: #{hyper_network_forward.3} parent=35 // pred_fallthru
          _
        %1234 = shalt.err (0)
        %s1236 = sshll.u32 %s1228, 4
        %s1237 = int_to_ptr.hbm [resolvable:$true] %s1236
        %s1238 = sshll.u32 %s619, 4
        %s1239 = int_to_ptr.vmem [resolvable:$true] %s1238
        %1241 = dma.hbm_to_vmem [thread:$0]  %s1237, 2048, %s1239, %s620
        %1242 = vst [vmem:[#allocation7] sm:$0xff] 0.0
        %1243 = vst [vmem:[#allocation7 + $0x8] sm:$0xff] 0.0
        %v1244 = vld [vmem:[#allocation7] sm:$0xff]
        %v1245 = vld [vmem:[#allocation7 + $0x8] sm:$0xff]
        %v1246 = vld [vmem:[#allocation11] sm:$0xf]
        %v1247 = vld [vmem:[#allocation5] sm:$0xff]
        %v1248 = vld [vmem:[#allocation5 + $0x8] sm:$0xff]
        %v1249 = vld [vmem:[#allocation5 + $0x10] sm:$0xff]
        %v1250 = vld [vmem:[#allocation5 + $0x18] sm:$0xff]
        %v1251 = vld [vmem:[#allocation5 + $0x20] sm:$0xff]
        %v1252 = vld [vmem:[#allocation5 + $0x28] sm:$0xff]
        %v1253 = vld [vmem:[#allocation5 + $0x30] sm:$0xff]
        %v1254 = vld [vmem:[#allocation5 + $0x38] sm:$0xff]
        %v1255 = vld [vmem:[#allocation5 + $0x40] sm:$0xff]
        %v1256 = vld [vmem:[#allocation5 + $0x48] sm:$0xff]
        %v1257 = vld [vmem:[#allocation5 + $0x50] sm:$0xff]
        %v1258 = vld [vmem:[#allocation5 + $0x58] sm:$0xff]
        %v1259 = vld [vmem:[#allocation5 + $0x60] sm:$0xff]
        %v1260 = vld [vmem:[#allocation5 + $0x68] sm:$0xff]
        %v1261 = vld [vmem:[#allocation5 + $0x70] sm:$0xff]
        %v1262 = vld [vmem:[#allocation5 + $0x78] sm:$0xff]
        %v1279 = vunpack.c.l.b16 %v1247
        %v1280 = vunpack.c.h.b16 %v1247
        %v1281 = vunpack.c.l.b16 %v1248
        %v1282 = vunpack.c.h.b16 %v1248
        %v1283 = vunpack.c.l.b16 %v1249
        %v1284 = vunpack.c.h.b16 %v1249
        %v1285 = vunpack.c.l.b16 %v1250
        %v1286 = vunpack.c.h.b16 %v1250
        %v1287 = vunpack.c.l.b16 %v1251
        %v1288 = vunpack.c.h.b16 %v1251
        %v1289 = vunpack.c.l.b16 %v1252
        %v1290 = vunpack.c.h.b16 %v1252
        %v1291 = vunpack.c.l.b16 %v1253
        %v1292 = vunpack.c.h.b16 %v1253
        %v1293 = vunpack.c.l.b16 %v1254
        %v1294 = vunpack.c.h.b16 %v1254
        %v1295 = vunpack.c.l.b16 %v1255
        %v1296 = vunpack.c.h.b16 %v1255
        %v1297 = vunpack.c.l.b16 %v1256
        %v1298 = vunpack.c.h.b16 %v1256
        %v1299 = vunpack.c.l.b16 %v1257
        %v1300 = vunpack.c.h.b16 %v1257
        %v1301 = vunpack.c.l.b16 %v1258
        %v1302 = vunpack.c.h.b16 %v1258
        %v1303 = vunpack.c.l.b16 %v1259
        %v1304 = vunpack.c.h.b16 %v1259
        %v1305 = vunpack.c.l.b16 %v1260
        %v1306 = vunpack.c.h.b16 %v1260
        %v1307 = vunpack.c.l.b16 %v1261
        %v1308 = vunpack.c.h.b16 %v1261
        %v1309 = vunpack.c.l.b16 %v1262
        %v1310 = vunpack.c.h.b16 %v1262
        %v1311 = vpack.c.b16 %v1281, %v1279
        %v1312 = vpack.c.b16 %v1282, %v1280
        %v1313 = vpack.c.b16 %v1285, %v1283
        %v1314 = vpack.c.b16 %v1286, %v1284
        %v1315 = vpack.c.b16 %v1289, %v1287
        %v1316 = vpack.c.b16 %v1290, %v1288
        %v1317 = vpack.c.b16 %v1293, %v1291
        %v1318 = vpack.c.b16 %v1294, %v1292
        %v1319 = vpack.c.b16 %v1297, %v1295
        %v1320 = vpack.c.b16 %v1298, %v1296
        %v1321 = vpack.c.b16 %v1301, %v1299
        %v1322 = vpack.c.b16 %v1302, %v1300
        %v1323 = vpack.c.b16 %v1305, %v1303
        %v1324 = vpack.c.b16 %v1306, %v1304
        %v1325 = vpack.c.b16 %v1309, %v1307
        %v1326 = vpack.c.b16 %v1310, %v1308
        %1343 = vmatpush.bf16.msra.mxu0 %v1325
        %1344 = vmatpush.bf16.msra.mxu0 %v1323
        %1345 = vmatpush.bf16.msra.mxu0 %v1321
        %1346 = vmatpush.bf16.msra.mxu0 %v1319
        %1347 = vmatpush.bf16.msra.mxu0 %v1317
        %1348 = vmatpush.bf16.msra.mxu0 %v1315
        %1349 = vmatpush.bf16.msra.mxu0 %v1313
        %1350 = vmatpush.bf16.msra.mxu0 %v1311
        %1351 = vmatmul.bf16.gmra.mxu0 %v1246
        %v1352 = vpop.f32.mrf.mxu0
        %v1353 = vadd.f32 0.0, %v1352
        %v1354 = vpop.f32.mrf.mxu0
        %1355 = vdwg.mxu0
        %1356 = vmatpush.bf16.msra.mxu0 %v1326
        %1357 = vmatpush.bf16.msra.mxu0 %v1324
        %1358 = vmatpush.bf16.msra.mxu0 %v1322
        %1359 = vmatpush.bf16.msra.mxu0 %v1320
        %1360 = vmatpush.bf16.msra.mxu0 %v1318
        %1361 = vmatpush.bf16.msra.mxu0 %v1316
        %1362 = vmatpush.bf16.msra.mxu0 %v1314
        %1363 = vmatpush.bf16.msra.mxu0 %v1312
        %1364 = vmatmul.bf16.gmra.mxu0 %v1246
        %v1365 = vpop.f32.mrf.mxu0
        %v1366 = vadd.f32 0.0, %v1365
        %v1367 = vpop.f32.mrf.mxu0
        %1368 = vdwg.mxu0
        %v1369 = vadd.f32 %v1244, %v1353
        %v1370 = vadd.f32 %v1245, %v1366
        %1371 = vst [vmem:[#allocation7] sm:$0xff] %v1369
        %1372 = vst [vmem:[#allocation7 + $0x8] sm:$0xff] %v1370
        %s1373 = sshll.u32 %s299, 4
        %1374 = dma.done %s620, %s1373
        %s1375 = sadd.s32 %s266, 6
        %s1376 = smul.u32 %s1375, 32
        %s1377 = smul.addr %s1376, 4
        %s1378 = scalar_lea.hbm %s3, %s1377
        // Predicated region
        $region77: #{hyper_network_forward.3} parent=35 // pred_check
          _
        $region78: #{hyper_network_forward.3} parent=35 // pred_check_branch
          %1380 = sbr.rel target = $region80
        $region79: #{hyper_network_forward.3} parent=35 // pred_region
          %1381 = sst [smem:[#allocation17]] [#allocation36]
          %1382 = sst [smem:[#allocation18]] [#allocation35]
        $region80: #{hyper_network_forward.3} parent=35 // pred_fallthru
          _
        %1384 = shalt.err (0)
        %s1386 = sshll.u32 %s1378, 4
        %s1387 = int_to_ptr.hbm [resolvable:$true] %s1386
        %s1388 = sshll.u32 [#allocation5], 4
        %s1389 = int_to_ptr.vmem [resolvable:$true] %s1388
        %1391 = dma.hbm_to_vmem [thread:$0]  %s1387, 2048, %s1389, [#allocation6]
        %v1392 = vld [vmem:[#allocation7] sm:$0xff]
        %v1393 = vld [vmem:[#allocation7 + $0x8] sm:$0xff]
        %v1394 = vld [vmem:[#allocation11 + $0x4] sm:$0xf]
        %v1395 = vld [vmem:[%s619] sm:$0xff]
        %v1396 = vld [vmem:[%s619 + $0x8] sm:$0xff]
        %v1397 = vld [vmem:[%s619 + $0x10] sm:$0xff]
        %v1398 = vld [vmem:[%s619 + $0x18] sm:$0xff]
        %v1399 = vld [vmem:[%s619 + $0x20] sm:$0xff]
        %v1400 = vld [vmem:[%s619 + $0x28] sm:$0xff]
        %v1401 = vld [vmem:[%s619 + $0x30] sm:$0xff]
        %v1402 = vld [vmem:[%s619 + $0x38] sm:$0xff]
        %v1403 = vld [vmem:[%s619 + $0x40] sm:$0xff]
        %v1404 = vld [vmem:[%s619 + $0x48] sm:$0xff]
        %v1405 = vld [vmem:[%s619 + $0x50] sm:$0xff]
        %v1406 = vld [vmem:[%s619 + $0x58] sm:$0xff]
        %v1407 = vld [vmem:[%s619 + $0x60] sm:$0xff]
        %v1408 = vld [vmem:[%s619 + $0x68] sm:$0xff]
        %v1409 = vld [vmem:[%s619 + $0x70] sm:$0xff]
        %v1410 = vld [vmem:[%s619 + $0x78] sm:$0xff]
        %v1427 = vunpack.c.l.b16 %v1395
        %v1428 = vunpack.c.h.b16 %v1395
        %v1429 = vunpack.c.l.b16 %v1396
        %v1430 = vunpack.c.h.b16 %v1396
        %v1431 = vunpack.c.l.b16 %v1397
        %v1432 = vunpack.c.h.b16 %v1397
        %v1433 = vunpack.c.l.b16 %v1398
        %v1434 = vunpack.c.h.b16 %v1398
        %v1435 = vunpack.c.l.b16 %v1399
        %v1436 = vunpack.c.h.b16 %v1399
        %v1437 = vunpack.c.l.b16 %v1400
        %v1438 = vunpack.c.h.b16 %v1400
        %v1439 = vunpack.c.l.b16 %v1401
        %v1440 = vunpack.c.h.b16 %v1401
        %v1441 = vunpack.c.l.b16 %v1402
        %v1442 = vunpack.c.h.b16 %v1402
        %v1443 = vunpack.c.l.b16 %v1403
        %v1444 = vunpack.c.h.b16 %v1403
        %v1445 = vunpack.c.l.b16 %v1404
        %v1446 = vunpack.c.h.b16 %v1404
        %v1447 = vunpack.c.l.b16 %v1405
        %v1448 = vunpack.c.h.b16 %v1405
        %v1449 = vunpack.c.l.b16 %v1406
        %v1450 = vunpack.c.h.b16 %v1406
        %v1451 = vunpack.c.l.b16 %v1407
        %v1452 = vunpack.c.h.b16 %v1407
        %v1453 = vunpack.c.l.b16 %v1408
        %v1454 = vunpack.c.h.b16 %v1408
        %v1455 = vunpack.c.l.b16 %v1409
        %v1456 = vunpack.c.h.b16 %v1409
        %v1457 = vunpack.c.l.b16 %v1410
        %v1458 = vunpack.c.h.b16 %v1410
        %v1459 = vpack.c.b16 %v1429, %v1427
        %v1460 = vpack.c.b16 %v1430, %v1428
        %v1461 = vpack.c.b16 %v1433, %v1431
        %v1462 = vpack.c.b16 %v1434, %v1432
        %v1463 = vpack.c.b16 %v1437, %v1435
        %v1464 = vpack.c.b16 %v1438, %v1436
        %v1465 = vpack.c.b16 %v1441, %v1439
        %v1466 = vpack.c.b16 %v1442, %v1440
        %v1467 = vpack.c.b16 %v1445, %v1443
        %v1468 = vpack.c.b16 %v1446, %v1444
        %v1469 = vpack.c.b16 %v1449, %v1447
        %v1470 = vpack.c.b16 %v1450, %v1448
        %v1471 = vpack.c.b16 %v1453, %v1451
        %v1472 = vpack.c.b16 %v1454, %v1452
        %v1473 = vpack.c.b16 %v1457, %v1455
        %v1474 = vpack.c.b16 %v1458, %v1456
        %1491 = vmatpush.bf16.msra.mxu0 %v1473
        %1492 = vmatpush.bf16.msra.mxu0 %v1471
        %1493 = vmatpush.bf16.msra.mxu0 %v1469
        %1494 = vmatpush.bf16.msra.mxu0 %v1467
        %1495 = vmatpush.bf16.msra.mxu0 %v1465
        %1496 = vmatpush.bf16.msra.mxu0 %v1463
        %1497 = vmatpush.bf16.msra.mxu0 %v1461
        %1498 = vmatpush.bf16.msra.mxu0 %v1459
        %1499 = vmatmul.bf16.gmra.mxu0 %v1394
        %v1500 = vpop.f32.mrf.mxu0
        %v1501 = vadd.f32 0.0, %v1500
        %v1502 = vpop.f32.mrf.mxu0
        %1503 = vdwg.mxu0
        %1504 = vmatpush.bf16.msra.mxu0 %v1474
        %1505 = vmatpush.bf16.msra.mxu0 %v1472
        %1506 = vmatpush.bf16.msra.mxu0 %v1470
        %1507 = vmatpush.bf16.msra.mxu0 %v1468
        %1508 = vmatpush.bf16.msra.mxu0 %v1466
        %1509 = vmatpush.bf16.msra.mxu0 %v1464
        %1510 = vmatpush.bf16.msra.mxu0 %v1462
        %1511 = vmatpush.bf16.msra.mxu0 %v1460
        %1512 = vmatmul.bf16.gmra.mxu0 %v1394
        %v1513 = vpop.f32.mrf.mxu0
        %v1514 = vadd.f32 0.0, %v1513
        %v1515 = vpop.f32.mrf.mxu0
        %1516 = vdwg.mxu0
        %v1517 = vadd.f32 %v1392, %v1501
        %v1518 = vadd.f32 %v1393, %v1514
        %1519 = vst [vmem:[#allocation7] sm:$0xff] %v1517
        %1520 = vst [vmem:[#allocation7 + $0x8] sm:$0xff] %v1518
        %s1521 = sshll.u32 %s299, 4
        %1522 = dma.done [#allocation6], %s1521
        %s1523 = sadd.s32 %s266, 7
        %s1524 = smul.u32 %s1523, 32
        %s1525 = smul.addr %s1524, 4
        %s1526 = scalar_lea.hbm %s3, %s1525
        // Predicated region
        $region81: #{hyper_network_forward.3} parent=35 // pred_check
          _
        $region82: #{hyper_network_forward.3} parent=35 // pred_check_branch
          %1528 = sbr.rel target = $region84
        $region83: #{hyper_network_forward.3} parent=35 // pred_region
          %1529 = sst [smem:[#allocation17]] [#allocation38]
          %1530 = sst [smem:[#allocation18]] [#allocation37]
        $region84: #{hyper_network_forward.3} parent=35 // pred_fallthru
          _
        %1532 = shalt.err (0)
        %s1534 = sshll.u32 %s1526, 4
        %s1535 = int_to_ptr.hbm [resolvable:$true] %s1534
        %s1536 = sshll.u32 %s619, 4
        %s1537 = int_to_ptr.vmem [resolvable:$true] %s1536
        %1539 = dma.hbm_to_vmem [thread:$0]  %s1535, 2048, %s1537, %s620
        %v1540 = vld [vmem:[#allocation7] sm:$0xff]
        %v1541 = vld [vmem:[#allocation7 + $0x8] sm:$0xff]
        %v1542 = vld [vmem:[#allocation11 + $0x8] sm:$0xf]
        %v1543 = vld [vmem:[#allocation5] sm:$0xff]
        %v1544 = vld [vmem:[#allocation5 + $0x8] sm:$0xff]
        %v1545 = vld [vmem:[#allocation5 + $0x10] sm:$0xff]
        %v1546 = vld [vmem:[#allocation5 + $0x18] sm:$0xff]
        %v1547 = vld [vmem:[#allocation5 + $0x20] sm:$0xff]
        %v1548 = vld [vmem:[#allocation5 + $0x28] sm:$0xff]
        %v1549 = vld [vmem:[#allocation5 + $0x30] sm:$0xff]
        %v1550 = vld [vmem:[#allocation5 + $0x38] sm:$0xff]
        %v1551 = vld [vmem:[#allocation5 + $0x40] sm:$0xff]
        %v1552 = vld [vmem:[#allocation5 + $0x48] sm:$0xff]
        %v1553 = vld [vmem:[#allocation5 + $0x50] sm:$0xff]
        %v1554 = vld [vmem:[#allocation5 + $0x58] sm:$0xff]
        %v1555 = vld [vmem:[#allocation5 + $0x60] sm:$0xff]
        %v1556 = vld [vmem:[#allocation5 + $0x68] sm:$0xff]
        %v1557 = vld [vmem:[#allocation5 + $0x70] sm:$0xff]
        %v1558 = vld [vmem:[#allocation5 + $0x78] sm:$0xff]
        %v1575 = vunpack.c.l.b16 %v1543
        %v1576 = vunpack.c.h.b16 %v1543
        %v1577 = vunpack.c.l.b16 %v1544
        %v1578 = vunpack.c.h.b16 %v1544
        %v1579 = vunpack.c.l.b16 %v1545
        %v1580 = vunpack.c.h.b16 %v1545
        %v1581 = vunpack.c.l.b16 %v1546
        %v1582 = vunpack.c.h.b16 %v1546
        %v1583 = vunpack.c.l.b16 %v1547
        %v1584 = vunpack.c.h.b16 %v1547
        %v1585 = vunpack.c.l.b16 %v1548
        %v1586 = vunpack.c.h.b16 %v1548
        %v1587 = vunpack.c.l.b16 %v1549
        %v1588 = vunpack.c.h.b16 %v1549
        %v1589 = vunpack.c.l.b16 %v1550
        %v1590 = vunpack.c.h.b16 %v1550
        %v1591 = vunpack.c.l.b16 %v1551
        %v1592 = vunpack.c.h.b16 %v1551
        %v1593 = vunpack.c.l.b16 %v1552
        %v1594 = vunpack.c.h.b16 %v1552
        %v1595 = vunpack.c.l.b16 %v1553
        %v1596 = vunpack.c.h.b16 %v1553
        %v1597 = vunpack.c.l.b16 %v1554
        %v1598 = vunpack.c.h.b16 %v1554
        %v1599 = vunpack.c.l.b16 %v1555
        %v1600 = vunpack.c.h.b16 %v1555
        %v1601 = vunpack.c.l.b16 %v1556
        %v1602 = vunpack.c.h.b16 %v1556
        %v1603 = vunpack.c.l.b16 %v1557
        %v1604 = vunpack.c.h.b16 %v1557
        %v1605 = vunpack.c.l.b16 %v1558
        %v1606 = vunpack.c.h.b16 %v1558
        %v1607 = vpack.c.b16 %v1577, %v1575
        %v1608 = vpack.c.b16 %v1578, %v1576
        %v1609 = vpack.c.b16 %v1581, %v1579
        %v1610 = vpack.c.b16 %v1582, %v1580
        %v1611 = vpack.c.b16 %v1585, %v1583
        %v1612 = vpack.c.b16 %v1586, %v1584
        %v1613 = vpack.c.b16 %v1589, %v1587
        %v1614 = vpack.c.b16 %v1590, %v1588
        %v1615 = vpack.c.b16 %v1593, %v1591
        %v1616 = vpack.c.b16 %v1594, %v1592
        %v1617 = vpack.c.b16 %v1597, %v1595
        %v1618 = vpack.c.b16 %v1598, %v1596
        %v1619 = vpack.c.b16 %v1601, %v1599
        %v1620 = vpack.c.b16 %v1602, %v1600
        %v1621 = vpack.c.b16 %v1605, %v1603
        %v1622 = vpack.c.b16 %v1606, %v1604
        %1639 = vmatpush.bf16.msra.mxu0 %v1621
        %1640 = vmatpush.bf16.msra.mxu0 %v1619
        %1641 = vmatpush.bf16.msra.mxu0 %v1617
        %1642 = vmatpush.bf16.msra.mxu0 %v1615
        %1643 = vmatpush.bf16.msra.mxu0 %v1613
        %1644 = vmatpush.bf16.msra.mxu0 %v1611
        %1645 = vmatpush.bf16.msra.mxu0 %v1609
        %1646 = vmatpush.bf16.msra.mxu0 %v1607
        %1647 = vmatmul.bf16.gmra.mxu0 %v1542
        %v1648 = vpop.f32.mrf.mxu0
        %v1649 = vadd.f32 0.0, %v1648
        %v1650 = vpop.f32.mrf.mxu0
        %1651 = vdwg.mxu0
        %1652 = vmatpush.bf16.msra.mxu0 %v1622
        %1653 = vmatpush.bf16.msra.mxu0 %v1620
        %1654 = vmatpush.bf16.msra.mxu0 %v1618
        %1655 = vmatpush.bf16.msra.mxu0 %v1616
        %1656 = vmatpush.bf16.msra.mxu0 %v1614
        %1657 = vmatpush.bf16.msra.mxu0 %v1612
        %1658 = vmatpush.bf16.msra.mxu0 %v1610
        %1659 = vmatpush.bf16.msra.mxu0 %v1608
        %1660 = vmatmul.bf16.gmra.mxu0 %v1542
        %v1661 = vpop.f32.mrf.mxu0
        %v1662 = vadd.f32 0.0, %v1661
        %v1663 = vpop.f32.mrf.mxu0
        %1664 = vdwg.mxu0
        %v1665 = vadd.f32 %v1540, %v1649
        %v1666 = vadd.f32 %v1541, %v1662
        %1667 = vst [vmem:[#allocation7] sm:$0xff] %v1665
        %1668 = vst [vmem:[#allocation7 + $0x8] sm:$0xff] %v1666
        %s1669 = sshll.u32 %s299, 4
        %1670 = dma.done %s620, %s1669
        %v1671 = vld [vmem:[#allocation7] sm:$0xff]
        %v1672 = vld [vmem:[#allocation7 + $0x8] sm:$0xff]
        %v1673 = vld [vmem:[#allocation11 + $0xc] sm:$0xf]
        %v1674 = vld [vmem:[%s619] sm:$0xff]
        %v1675 = vld [vmem:[%s619 + $0x8] sm:$0xff]
        %v1676 = vld [vmem:[%s619 + $0x10] sm:$0xff]
        %v1677 = vld [vmem:[%s619 + $0x18] sm:$0xff]
        %v1678 = vld [vmem:[%s619 + $0x20] sm:$0xff]
        %v1679 = vld [vmem:[%s619 + $0x28] sm:$0xff]
        %v1680 = vld [vmem:[%s619 + $0x30] sm:$0xff]
        %v1681 = vld [vmem:[%s619 + $0x38] sm:$0xff]
        %v1682 = vld [vmem:[%s619 + $0x40] sm:$0xff]
        %v1683 = vld [vmem:[%s619 + $0x48] sm:$0xff]
        %v1684 = vld [vmem:[%s619 + $0x50] sm:$0xff]
        %v1685 = vld [vmem:[%s619 + $0x58] sm:$0xff]
        %v1686 = vld [vmem:[%s619 + $0x60] sm:$0xff]
        %v1687 = vld [vmem:[%s619 + $0x68] sm:$0xff]
        %v1688 = vld [vmem:[%s619 + $0x70] sm:$0xff]
        %v1689 = vld [vmem:[%s619 + $0x78] sm:$0xff]
        %v1706 = vunpack.c.l.b16 %v1674
        %v1707 = vunpack.c.h.b16 %v1674
        %v1708 = vunpack.c.l.b16 %v1675
        %v1709 = vunpack.c.h.b16 %v1675
        %v1710 = vunpack.c.l.b16 %v1676
        %v1711 = vunpack.c.h.b16 %v1676
        %v1712 = vunpack.c.l.b16 %v1677
        %v1713 = vunpack.c.h.b16 %v1677
        %v1714 = vunpack.c.l.b16 %v1678
        %v1715 = vunpack.c.h.b16 %v1678
        %v1716 = vunpack.c.l.b16 %v1679
        %v1717 = vunpack.c.h.b16 %v1679
        %v1718 = vunpack.c.l.b16 %v1680
        %v1719 = vunpack.c.h.b16 %v1680
        %v1720 = vunpack.c.l.b16 %v1681
        %v1721 = vunpack.c.h.b16 %v1681
        %v1722 = vunpack.c.l.b16 %v1682
        %v1723 = vunpack.c.h.b16 %v1682
        %v1724 = vunpack.c.l.b16 %v1683
        %v1725 = vunpack.c.h.b16 %v1683
        %v1726 = vunpack.c.l.b16 %v1684
        %v1727 = vunpack.c.h.b16 %v1684
        %v1728 = vunpack.c.l.b16 %v1685
        %v1729 = vunpack.c.h.b16 %v1685
        %v1730 = vunpack.c.l.b16 %v1686
        %v1731 = vunpack.c.h.b16 %v1686
        %v1732 = vunpack.c.l.b16 %v1687
        %v1733 = vunpack.c.h.b16 %v1687
        %v1734 = vunpack.c.l.b16 %v1688
        %v1735 = vunpack.c.h.b16 %v1688
        %v1736 = vunpack.c.l.b16 %v1689
        %v1737 = vunpack.c.h.b16 %v1689
        %v1738 = vpack.c.b16 %v1708, %v1706
        %v1739 = vpack.c.b16 %v1709, %v1707
        %v1740 = vpack.c.b16 %v1712, %v1710
        %v1741 = vpack.c.b16 %v1713, %v1711
        %v1742 = vpack.c.b16 %v1716, %v1714
        %v1743 = vpack.c.b16 %v1717, %v1715
        %v1744 = vpack.c.b16 %v1720, %v1718
        %v1745 = vpack.c.b16 %v1721, %v1719
        %v1746 = vpack.c.b16 %v1724, %v1722
        %v1747 = vpack.c.b16 %v1725, %v1723
        %v1748 = vpack.c.b16 %v1728, %v1726
        %v1749 = vpack.c.b16 %v1729, %v1727
        %v1750 = vpack.c.b16 %v1732, %v1730
        %v1751 = vpack.c.b16 %v1733, %v1731
        %v1752 = vpack.c.b16 %v1736, %v1734
        %v1753 = vpack.c.b16 %v1737, %v1735
        %1770 = vmatpush.bf16.msra.mxu0 %v1752
        %1771 = vmatpush.bf16.msra.mxu0 %v1750
        %1772 = vmatpush.bf16.msra.mxu0 %v1748
        %1773 = vmatpush.bf16.msra.mxu0 %v1746
        %1774 = vmatpush.bf16.msra.mxu0 %v1744
        %1775 = vmatpush.bf16.msra.mxu0 %v1742
        %1776 = vmatpush.bf16.msra.mxu0 %v1740
        %1777 = vmatpush.bf16.msra.mxu0 %v1738
        %1778 = vmatmul.bf16.gmra.mxu0 %v1673
        %v1779 = vpop.f32.mrf.mxu0
        %v1780 = vadd.f32 0.0, %v1779
        %v1781 = vpop.f32.mrf.mxu0
        %1782 = vdwg.mxu0
        %1783 = vmatpush.bf16.msra.mxu0 %v1753
        %1784 = vmatpush.bf16.msra.mxu0 %v1751
        %1785 = vmatpush.bf16.msra.mxu0 %v1749
        %1786 = vmatpush.bf16.msra.mxu0 %v1747
        %1787 = vmatpush.bf16.msra.mxu0 %v1745
        %1788 = vmatpush.bf16.msra.mxu0 %v1743
        %1789 = vmatpush.bf16.msra.mxu0 %v1741
        %1790 = vmatpush.bf16.msra.mxu0 %v1739
        %1791 = vmatmul.bf16.gmra.mxu0 %v1673
        %v1792 = vpop.f32.mrf.mxu0
        %v1793 = vadd.f32 0.0, %v1792
        %v1794 = vpop.f32.mrf.mxu0
        %1795 = vdwg.mxu0
        %v1796 = vadd.f32 %v1671, %v1780
        %v1797 = vadd.f32 %v1672, %v1793
        %1798 = vst [vmem:[#allocation7] sm:$0xff] %v1796
        %1799 = vst [vmem:[#allocation7 + $0x8] sm:$0xff] %v1797
        %v1800 = vld [vmem:[#allocation7] sm:$0xff]
        %v1801 = vld [vmem:[#allocation7 + $0x8] sm:$0xff]
        %v1802 = vld [vmem:[%s206 + $0x2] sm:$0x3]
        %v1804 = vperm.slane %v1802, 0
        %v1805 = vperm.slane %v1802, 1
        %v1808 = vadd.f32 %v1800, %v1804
        %v1809 = vadd.f32 %v1801, %v1805
        %v1810 = vmax.f32 %v1808, 0.0
        %v1811 = vmax.f32 %v1809, 0.0
        %v1812 = vpack.c.bf16 %v1811, %v1810
        %1813 = vst [vmem:[#allocation12 + $0x8] sm:$0xff] %v1812
        %s1814 = smul.u32 4, 32
        %s1815 = smul.u32 %s1814, 1
        %s1816 = sshll.u32 %s1815, 4
        %1817 = dma.done [#allocation9], %s1816
        %s1818 = smul.addr %s303, 4
        %s1819 = scalar_lea.hbm %s5, %s1818
        %s1820 = scalar_lea.vmem [#allocation8], 128
        %s1821 = scalar_lea.sflag [#allocation9], 1
        // Predicated region
        $region85: #{hyper_network_forward.3} parent=35 // pred_check
          _
        $region86: #{hyper_network_forward.3} parent=35 // pred_check_branch
          %1823 = sbr.rel target = $region88
        $region87: #{hyper_network_forward.3} parent=35 // pred_region
          %1824 = sst [smem:[#allocation17]] [#allocation40]
          %1825 = sst [smem:[#allocation18]] [#allocation39]
        $region88: #{hyper_network_forward.3} parent=35 // pred_fallthru
          _
        %1827 = shalt.err (0)
        %s1829 = sshll.u32 %s1819, 4
        %s1830 = int_to_ptr.hbm [resolvable:$true] %s1829
        %s1831 = sshll.u32 %s1820, 4
        %s1832 = int_to_ptr.vmem [resolvable:$true] %s1831
        %1834 = dma.hbm_to_vmem [thread:$0]  %s1830, 2048, %s1832, %s1821
        %1835 = vst [vmem:[#allocation10] sm:$0xff] 0.0
        %v1836 = vld [vmem:[#allocation10] sm:$0xff]
        %v1837 = vld [vmem:[#allocation12] sm:$0xff]
        %v1838 = vld [vmem:[#allocation8] sm:$0xf]
        %v1839 = vld [vmem:[#allocation8 + $0x4] sm:$0xf]
        %v1840 = vld [vmem:[#allocation8 + $0x8] sm:$0xf]
        %v1841 = vld [vmem:[#allocation8 + $0xc] sm:$0xf]
        %v1842 = vld [vmem:[#allocation8 + $0x10] sm:$0xf]
        %v1843 = vld [vmem:[#allocation8 + $0x14] sm:$0xf]
        %v1844 = vld [vmem:[#allocation8 + $0x18] sm:$0xf]
        %v1845 = vld [vmem:[#allocation8 + $0x1c] sm:$0xf]
        %v1846 = vld [vmem:[#allocation8 + $0x20] sm:$0xf]
        %v1847 = vld [vmem:[#allocation8 + $0x24] sm:$0xf]
        %v1848 = vld [vmem:[#allocation8 + $0x28] sm:$0xf]
        %v1849 = vld [vmem:[#allocation8 + $0x2c] sm:$0xf]
        %v1850 = vld [vmem:[#allocation8 + $0x30] sm:$0xf]
        %v1851 = vld [vmem:[#allocation8 + $0x34] sm:$0xf]
        %v1852 = vld [vmem:[#allocation8 + $0x38] sm:$0xf]
        %v1853 = vld [vmem:[#allocation8 + $0x3c] sm:$0xf]
        %v1854 = vld [vmem:[#allocation8 + $0x40] sm:$0xf]
        %v1855 = vld [vmem:[#allocation8 + $0x44] sm:$0xf]
        %v1856 = vld [vmem:[#allocation8 + $0x48] sm:$0xf]
        %v1857 = vld [vmem:[#allocation8 + $0x4c] sm:$0xf]
        %v1858 = vld [vmem:[#allocation8 + $0x50] sm:$0xf]
        %v1859 = vld [vmem:[#allocation8 + $0x54] sm:$0xf]
        %v1860 = vld [vmem:[#allocation8 + $0x58] sm:$0xf]
        %v1861 = vld [vmem:[#allocation8 + $0x5c] sm:$0xf]
        %v1862 = vld [vmem:[#allocation8 + $0x60] sm:$0xf]
        %v1863 = vld [vmem:[#allocation8 + $0x64] sm:$0xf]
        %v1864 = vld [vmem:[#allocation8 + $0x68] sm:$0xf]
        %v1865 = vld [vmem:[#allocation8 + $0x6c] sm:$0xf]
        %v1866 = vld [vmem:[#allocation8 + $0x70] sm:$0xf]
        %v1867 = vld [vmem:[#allocation8 + $0x74] sm:$0xf]
        %v1868 = vld [vmem:[#allocation8 + $0x78] sm:$0xf]
        %v1869 = vld [vmem:[#allocation8 + $0x7c] sm:$0xf]
        %v1871 = vunpack.c.l.b16 %v1837
        %v1872 = vunpack.c.h.b16 %v1837
        %v1873 = vpack.c.b16 %v1871, %v1871
        %v1874 = vpack.c.b16 %v1872, %v1872
        %v1909 = vunpack.c.l.b16 %v1838
        %v1910 = vunpack.c.l.b16 %v1839
        %v1911 = vunpack.c.l.b16 %v1840
        %v1912 = vunpack.c.l.b16 %v1841
        %v1913 = vunpack.c.l.b16 %v1842
        %v1914 = vunpack.c.l.b16 %v1843
        %v1915 = vunpack.c.l.b16 %v1844
        %v1916 = vunpack.c.l.b16 %v1845
        %v1917 = vunpack.c.l.b16 %v1846
        %v1918 = vunpack.c.l.b16 %v1847
        %v1919 = vunpack.c.l.b16 %v1848
        %v1920 = vunpack.c.l.b16 %v1849
        %v1921 = vunpack.c.l.b16 %v1850
        %v1922 = vunpack.c.l.b16 %v1851
        %v1923 = vunpack.c.l.b16 %v1852
        %v1924 = vunpack.c.l.b16 %v1853
        %v1925 = vunpack.c.l.b16 %v1854
        %v1926 = vunpack.c.l.b16 %v1855
        %v1927 = vunpack.c.l.b16 %v1856
        %v1928 = vunpack.c.l.b16 %v1857
        %v1929 = vunpack.c.l.b16 %v1858
        %v1930 = vunpack.c.l.b16 %v1859
        %v1931 = vunpack.c.l.b16 %v1860
        %v1932 = vunpack.c.l.b16 %v1861
        %v1933 = vunpack.c.l.b16 %v1862
        %v1934 = vunpack.c.l.b16 %v1863
        %v1935 = vunpack.c.l.b16 %v1864
        %v1936 = vunpack.c.l.b16 %v1865
        %v1937 = vunpack.c.l.b16 %v1866
        %v1938 = vunpack.c.l.b16 %v1867
        %v1939 = vunpack.c.l.b16 %v1868
        %v1940 = vunpack.c.l.b16 %v1869
        %v1941 = vpack.c.b16 %v1910, %v1909
        %v1942 = vpack.c.b16 %v1912, %v1911
        %v1943 = vpack.c.b16 %v1914, %v1913
        %v1944 = vpack.c.b16 %v1916, %v1915
        %v1945 = vpack.c.b16 %v1918, %v1917
        %v1946 = vpack.c.b16 %v1920, %v1919
        %v1947 = vpack.c.b16 %v1922, %v1921
        %v1948 = vpack.c.b16 %v1924, %v1923
        %v1949 = vpack.c.b16 %v1926, %v1925
        %v1950 = vpack.c.b16 %v1928, %v1927
        %v1951 = vpack.c.b16 %v1930, %v1929
        %v1952 = vpack.c.b16 %v1932, %v1931
        %v1953 = vpack.c.b16 %v1934, %v1933
        %v1954 = vpack.c.b16 %v1936, %v1935
        %v1955 = vpack.c.b16 %v1938, %v1937
        %v1956 = vpack.c.b16 %v1940, %v1939
        %1973 = vmatpush.bf16.msra.mxu0 %v1948
        %1974 = vmatpush.bf16.msra.mxu0 %v1947
        %1975 = vmatpush.bf16.msra.mxu0 %v1946
        %1976 = vmatpush.bf16.msra.mxu0 %v1945
        %1977 = vmatpush.bf16.msra.mxu0 %v1944
        %1978 = vmatpush.bf16.msra.mxu0 %v1943
        %1979 = vmatpush.bf16.msra.mxu0 %v1942
        %1980 = vmatpush.bf16.msra.mxu0 %v1941
        %1981 = vmatmul.bf16.gmra.mxu0 %v1873
        %v1982 = vpop.f32.mrf.mxu0
        %v1983 = vadd.f32 0.0, %v1982
        %v1984 = vpop.f32.mrf.mxu0
        %1985 = vdwg.mxu0
        %1986 = vmatpush.bf16.msra.mxu0 %v1956
        %1987 = vmatpush.bf16.msra.mxu0 %v1955
        %1988 = vmatpush.bf16.msra.mxu0 %v1954
        %1989 = vmatpush.bf16.msra.mxu0 %v1953
        %1990 = vmatpush.bf16.msra.mxu0 %v1952
        %1991 = vmatpush.bf16.msra.mxu0 %v1951
        %1992 = vmatpush.bf16.msra.mxu0 %v1950
        %1993 = vmatpush.bf16.msra.mxu0 %v1949
        %1994 = vmatmul.bf16.gmra.mxu0 %v1874
        %v1995 = vpop.f32.mrf.mxu0
        %v1996 = vadd.f32 %v1983, %v1995
        %v1997 = vpop.f32.mrf.mxu0
        %1998 = vdwg.mxu0
        %v1999 = vadd.f32 %v1836, %v1996
        %2000 = vst [vmem:[#allocation10] sm:$0xff] %v1999
        %s2001 = sshll.u32 %s1815, 4
        %2002 = dma.done %s1821, %s2001
        %v2003 = vld [vmem:[#allocation10] sm:$0xff]
        %v2004 = vld [vmem:[#allocation12 + $0x8] sm:$0xff]
        %v2005 = vld [vmem:[%s1820] sm:$0xf]
        %v2006 = vld [vmem:[%s1820 + $0x4] sm:$0xf]
        %v2007 = vld [vmem:[%s1820 + $0x8] sm:$0xf]
        %v2008 = vld [vmem:[%s1820 + $0xc] sm:$0xf]
        %v2009 = vld [vmem:[%s1820 + $0x10] sm:$0xf]
        %v2010 = vld [vmem:[%s1820 + $0x14] sm:$0xf]
        %v2011 = vld [vmem:[%s1820 + $0x18] sm:$0xf]
        %v2012 = vld [vmem:[%s1820 + $0x1c] sm:$0xf]
        %v2013 = vld [vmem:[%s1820 + $0x20] sm:$0xf]
        %v2014 = vld [vmem:[%s1820 + $0x24] sm:$0xf]
        %v2015 = vld [vmem:[%s1820 + $0x28] sm:$0xf]
        %v2016 = vld [vmem:[%s1820 + $0x2c] sm:$0xf]
        %v2017 = vld [vmem:[%s1820 + $0x30] sm:$0xf]
        %v2018 = vld [vmem:[%s1820 + $0x34] sm:$0xf]
        %v2019 = vld [vmem:[%s1820 + $0x38] sm:$0xf]
        %v2020 = vld [vmem:[%s1820 + $0x3c] sm:$0xf]
        %v2021 = vld [vmem:[%s1820 + $0x40] sm:$0xf]
        %v2022 = vld [vmem:[%s1820 + $0x44] sm:$0xf]
        %v2023 = vld [vmem:[%s1820 + $0x48] sm:$0xf]
        %v2024 = vld [vmem:[%s1820 + $0x4c] sm:$0xf]
        %v2025 = vld [vmem:[%s1820 + $0x50] sm:$0xf]
        %v2026 = vld [vmem:[%s1820 + $0x54] sm:$0xf]
        %v2027 = vld [vmem:[%s1820 + $0x58] sm:$0xf]
        %v2028 = vld [vmem:[%s1820 + $0x5c] sm:$0xf]
        %v2029 = vld [vmem:[%s1820 + $0x60] sm:$0xf]
        %v2030 = vld [vmem:[%s1820 + $0x64] sm:$0xf]
        %v2031 = vld [vmem:[%s1820 + $0x68] sm:$0xf]
        %v2032 = vld [vmem:[%s1820 + $0x6c] sm:$0xf]
        %v2033 = vld [vmem:[%s1820 + $0x70] sm:$0xf]
        %v2034 = vld [vmem:[%s1820 + $0x74] sm:$0xf]
        %v2035 = vld [vmem:[%s1820 + $0x78] sm:$0xf]
        %v2036 = vld [vmem:[%s1820 + $0x7c] sm:$0xf]
        %v2038 = vunpack.c.l.b16 %v2004
        %v2039 = vunpack.c.h.b16 %v2004
        %v2040 = vpack.c.b16 %v2038, %v2038
        %v2041 = vpack.c.b16 %v2039, %v2039
        %v2076 = vunpack.c.l.b16 %v2005
        %v2077 = vunpack.c.l.b16 %v2006
        %v2078 = vunpack.c.l.b16 %v2007
        %v2079 = vunpack.c.l.b16 %v2008
        %v2080 = vunpack.c.l.b16 %v2009
        %v2081 = vunpack.c.l.b16 %v2010
        %v2082 = vunpack.c.l.b16 %v2011
        %v2083 = vunpack.c.l.b16 %v2012
        %v2084 = vunpack.c.l.b16 %v2013
        %v2085 = vunpack.c.l.b16 %v2014
        %v2086 = vunpack.c.l.b16 %v2015
        %v2087 = vunpack.c.l.b16 %v2016
        %v2088 = vunpack.c.l.b16 %v2017
        %v2089 = vunpack.c.l.b16 %v2018
        %v2090 = vunpack.c.l.b16 %v2019
        %v2091 = vunpack.c.l.b16 %v2020
        %v2092 = vunpack.c.l.b16 %v2021
        %v2093 = vunpack.c.l.b16 %v2022
        %v2094 = vunpack.c.l.b16 %v2023
        %v2095 = vunpack.c.l.b16 %v2024
        %v2096 = vunpack.c.l.b16 %v2025
        %v2097 = vunpack.c.l.b16 %v2026
        %v2098 = vunpack.c.l.b16 %v2027
        %v2099 = vunpack.c.l.b16 %v2028
        %v2100 = vunpack.c.l.b16 %v2029
        %v2101 = vunpack.c.l.b16 %v2030
        %v2102 = vunpack.c.l.b16 %v2031
        %v2103 = vunpack.c.l.b16 %v2032
        %v2104 = vunpack.c.l.b16 %v2033
        %v2105 = vunpack.c.l.b16 %v2034
        %v2106 = vunpack.c.l.b16 %v2035
        %v2107 = vunpack.c.l.b16 %v2036
        %v2108 = vpack.c.b16 %v2077, %v2076
        %v2109 = vpack.c.b16 %v2079, %v2078
        %v2110 = vpack.c.b16 %v2081, %v2080
        %v2111 = vpack.c.b16 %v2083, %v2082
        %v2112 = vpack.c.b16 %v2085, %v2084
        %v2113 = vpack.c.b16 %v2087, %v2086
        %v2114 = vpack.c.b16 %v2089, %v2088
        %v2115 = vpack.c.b16 %v2091, %v2090
        %v2116 = vpack.c.b16 %v2093, %v2092
        %v2117 = vpack.c.b16 %v2095, %v2094
        %v2118 = vpack.c.b16 %v2097, %v2096
        %v2119 = vpack.c.b16 %v2099, %v2098
        %v2120 = vpack.c.b16 %v2101, %v2100
        %v2121 = vpack.c.b16 %v2103, %v2102
        %v2122 = vpack.c.b16 %v2105, %v2104
        %v2123 = vpack.c.b16 %v2107, %v2106
        %2140 = vmatpush.bf16.msra.mxu0 %v2115
        %2141 = vmatpush.bf16.msra.mxu0 %v2114
        %2142 = vmatpush.bf16.msra.mxu0 %v2113
        %2143 = vmatpush.bf16.msra.mxu0 %v2112
        %2144 = vmatpush.bf16.msra.mxu0 %v2111
        %2145 = vmatpush.bf16.msra.mxu0 %v2110
        %2146 = vmatpush.bf16.msra.mxu0 %v2109
        %2147 = vmatpush.bf16.msra.mxu0 %v2108
        %2148 = vmatmul.bf16.gmra.mxu0 %v2040
        %v2149 = vpop.f32.mrf.mxu0
        %v2150 = vadd.f32 0.0, %v2149
        %v2151 = vpop.f32.mrf.mxu0
        %2152 = vdwg.mxu0
        %2153 = vmatpush.bf16.msra.mxu0 %v2123
        %2154 = vmatpush.bf16.msra.mxu0 %v2122
        %2155 = vmatpush.bf16.msra.mxu0 %v2121
        %2156 = vmatpush.bf16.msra.mxu0 %v2120
        %2157 = vmatpush.bf16.msra.mxu0 %v2119
        %2158 = vmatpush.bf16.msra.mxu0 %v2118
        %2159 = vmatpush.bf16.msra.mxu0 %v2117
        %2160 = vmatpush.bf16.msra.mxu0 %v2116
        %2161 = vmatmul.bf16.gmra.mxu0 %v2041
        %v2162 = vpop.f32.mrf.mxu0
        %v2163 = vadd.f32 %v2150, %v2162
        %v2164 = vpop.f32.mrf.mxu0
        %2165 = vdwg.mxu0
        %v2166 = vadd.f32 %v2003, %v2163
        %2167 = vst [vmem:[#allocation10] sm:$0xff] %v2166
        %v2168 = vld [vmem:[#allocation10] sm:$0xff]
        %v2169 = vld [vmem:[%s244] sm:$0x1]
        %v2171 = vperm.slane %v2169, 0
        %v2173 = vadd.f32 %v2168, %v2171
        %vm2174 = vcmp.ge.f32.partialorder %v2173, 0.0
        %v2175 = vmul.f32 %v2173, 0.1
        %v2176 = vsel %vm2174, %v2173, %v2175
        %2177 = vst [vmem:[%s248] sm:$0xff] %v2176
        %p2178 = scmp.lt.s32.totalorder %s21, 1
        %s2179 = scalar_select %p2178, %s21, 1
        %s2180 = smul.addr %s2179, 8
        %s2181 = scalar_lea.vmem %s7, %s2180
        // Predicated region
        $region89: #{hyper_network_forward.3} parent=35 // pred_check
          %p2182 = pneg %p138
        $region90: #{hyper_network_forward.3} parent=35 // pred_check_branch
          %2184 = sbr.rel (%p2182) target = $region92
        $region91: #{hyper_network_forward.3} parent=35 // pred_region
          _
        $region92: #{hyper_network_forward.3} parent=35 // pred_fallthru
          _
      $region36: #{hyper_network_forward.3} parent=5 // pred_fallthru
        _
      %p2185 = scmp.le.s32.totalorder 2, %s16
      // Predicated region
      $region93: #{hyper_network_forward.3} parent=5 // pred_check
        %p2186 = pneg %p2185
      $region94: #{hyper_network_forward.3} parent=5 // pred_check_branch
        %2188 = sbr.rel (%p2186) target = $region96
      $region95: #{hyper_network_forward.3} parent=5 // pred_region
        %s2189 = ssub.s32 %s16, 2
        // Predicated region
        $region97: #{hyper_network_forward.3} parent=95 // pred_check
          %p2190 = pneg %p144
        $region98: #{hyper_network_forward.3} parent=95 // pred_check_branch
          %2192 = sbr.rel (%p2190) target = $region100
        $region99: #{hyper_network_forward.3} parent=95 // pred_region
          %p2193 = scmp.lt.s32.totalorder %s22, 1
          %s2194 = scalar_select %p2193, %s22, 1
          %s2195 = smul.addr %s2194, 8
          %s2196 = scalar_lea.vmem %s7, %s2195
        $region100: #{hyper_network_forward.3} parent=95 // pred_fallthru
          _
      $region96: #{hyper_network_forward.3} parent=5 // pred_fallthru
        _
    $region6: #{hyper_network_forward.3} parent=1 // loop_footer
      %s20 = sadd.s32 1, %s16
    $region7: #{hyper_network_forward.3} parent=1 // loop_footer_branch
      %15 = sbr.rel target = $region3
    $region8: #{hyper_network_forward.3} parent=1 // loop_exit
      _
    %2197 = vsyncpa [#allocation14], 1
    %s2198 = scalar_lea.sflag [#allocation14], 1
    %2199 = vsyncpa %s2198, 1
  %2200 = vsyncmov [#allocation3]
  %s2201 = vpop.sfrf %2200
  %p2202 = scmp.eq.s32.totalorder %s2201, 0
  %p2203 = pneg %p2202
  %2205 = shalt.err (%p2203)
  %s2206 = scalar_lea.sflag [#allocation3], 1
  %2207 = vsyncmov %s2206
  %s2208 = vpop.sfrf %2207
  %p2209 = scmp.eq.s32.totalorder %s2208, 0
  %p2210 = pneg %p2209
  %2212 = shalt.err (%p2210)
  %2213 = vsyncmov [#allocation6]
  %s2214 = vpop.sfrf %2213
  %p2215 = scmp.eq.s32.totalorder %s2214, 0
  %p2216 = pneg %p2215
  %2218 = shalt.err (%p2216)
  %s2219 = scalar_lea.sflag [#allocation6], 1
  %2220 = vsyncmov %s2219
  %s2221 = vpop.sfrf %2220
  %p2222 = scmp.eq.s32.totalorder %s2221, 0
  %p2223 = pneg %p2222
  %2225 = shalt.err (%p2223)
  %2226 = vsyncmov [#allocation9]
  %s2227 = vpop.sfrf %2226
  %p2228 = scmp.eq.s32.totalorder %s2227, 0
  %p2229 = pneg %p2228
  %2231 = shalt.err (%p2229)
  %s2232 = scalar_lea.sflag [#allocation9], 1
  %2233 = vsyncmov %s2232
  %s2234 = vpop.sfrf %2233
  %p2235 = scmp.eq.s32.totalorder %s2234, 0
  %p2236 = pneg %p2235
  %2238 = shalt.err (%p2236)

</llo_original>
